<compile_context>
chip_gen: v7x
topology: tpu7x:2x2x1
jax: 0.10.0
libtpu: 0.0.40
codegen_flags: <defaults>
</compile_context>

<pallas_src>
import math
from functools import partial

import jax
import jax.numpy as jnp
from jax.experimental import pallas as pl
from jax.experimental.pallas import tpu as pltpu

TOKEN_SELF_ATTN_VALUE = -50000.0
MASKED_VALUE = float(-jnp.finfo(jnp.float32).max)


# ----------------------------------------------------------------------------
# Pallas kernel: Cb chunks of bucketed attention per grid step
# ----------------------------------------------------------------------------
def _lsh_attn_kernel(bq_ref, bk_ref, bv_ref, qid_ref, kvid_ref,
                     o_ref, lse_ref, *, scale, id_bits):
    q = bq_ref[...]                       # (Cb, bs,  D)  bf16
    k = bk_ref[...]                       # (Cb, 2bs, D)  bf16
    v = bv_ref[...]                       # (Cb, 2bs, D)  bf16
    qid = qid_ref[...]                    # (Cb, bs)      int32 = (bucket<<id_bits)|t
    kvid = kvid_ref[...]                  # (Cb, 2bs)     int32

    # Fold the softmax scale into q: bs*D multiplies instead of bs*2bs.
    qs = q * scale                        # stays bf16 (weak-typed scalar)

    # Batched QK^T on the MXU with f32 accumulation.
    dots = jnp.einsum('cqd,ckd->cqk', qs, k,
                      preferred_element_type=jnp.float32)     # (Cb, bs, 2bs) f32

    # Split packed ids with bit ops (VPU-friendly; no integer div/mod).
    t_mask = (1 << id_bits) - 1
    qt, qb = qid & t_mask, qid >> id_bits
    kvt, kvb = kvid & t_mask, kvid >> id_bits

    # Same masking order as the PyTorch reference: self-attention value first,
    # then the cross-bucket mask (which overrides self on a bucket mismatch).
    dots = jnp.where(qt[:, :, None] == kvt[:, None, :],
                     TOKEN_SELF_ATTN_VALUE, dots)
    dots = jnp.where(qb[:, :, None] != kvb[:, None, :], MASKED_VALUE, dots)

    # Numerically stable softmax: single exp + approx reciprocal (EUP relief);
    # probs == exp(dots - lse) exactly up to ~1-ulp reciprocal error.
    m = jnp.max(dots, axis=-1, keepdims=True)
    p = jnp.exp(dots - m)
    s = jnp.sum(p, axis=-1, keepdims=True)
    lse = m + jnp.log(s)                                       # (Cb, bs, 1)
    probs = p * pl.reciprocal(s, approx=True)

    # PV matmul on the MXU, bf16 inputs, f32 accumulation.
    o = jnp.einsum('cqk,ckd->cqd', probs.astype(v.dtype), v,
                   preferred_element_type=jnp.float32)         # (Cb, bs, D)

    o_ref[...] = o.astype(o_ref.dtype)
    lse_ref[...] = lse[..., 0].astype(lse_ref.dtype)           # (Cb, bs), lane=bs


def _choose_chunk_block(C, B, bs, dim):
    """How many sorted chunks to process per grid step."""
    # Rough per-chunk VMEM footprint (bytes): bf16 q/k/v + f32 o (lane-padded
    # to 128), int32 ids + f32 lse, double-buffered, plus the f32 dots/p/probs
    # intermediates.  Conservative budget so the same choice fits v7x's 64 MiB
    # VMEM as well as v5e/v6e's 128 MiB.
    lanes = 128
    per_buf = (bs * lanes * 2 + 2 * (2 * bs) * lanes * 2 + bs * lanes * 4
               + 4 * lanes * 4)
    per_chunk = 2 * per_buf + 3 * bs * (2 * bs) * 4
    budget = 12 * 1024 * 1024
    max_cb = max(1, min(C, budget // per_chunk))
    divisors = [d for d in range(1, C + 1) if C % d == 0]
    # The (..., Cb, bs) id / lse blocks need Cb % 8 == 0 (or Cb == C) to
    # satisfy the (8, 128) tiling rule on their second-to-last dim.
    ok = [d for d in divisors if d <= max_cb and (d % 8 == 0 or d == C)]
    if not ok:
        return C      # rare (tiny / odd C): whole chunk axis in one block
    cb = max(ok)
    if B == 1 and C // cb < 2:
        smaller = [d for d in ok if C // d >= 2]  # keep >=2 steps for megacore
        if smaller:
            cb = max(smaller)
    return cb


def lsh_bucket_attention(bq, bk, bv, qid, kvid, scale, id_bits):
    """bq:(B,C,bs,D) bf16   bk,bv:(B,C,2bs,D) bf16
    qid:(B,C,bs) i32   kvid:(B,C,2bs) i32
    ->  o:(B,C,bs,D) f32,  lse:(B,C,bs) f32"""
    B, C, bs, dim = bq.shape
    two_bs = bk.shape[2]
    Cb = _choose_chunk_block(C, B, bs, dim)

    kernel = partial(_lsh_attn_kernel, scale=scale, id_bits=id_bits)

    in_specs = [
        pl.BlockSpec((None, Cb, bs, dim), lambda b, c: (b, c, 0, 0)),
        pl.BlockSpec((None, Cb, two_bs, dim), lambda b, c: (b, c, 0, 0)),
        pl.BlockSpec((None, Cb, two_bs, dim), lambda b, c: (b, c, 0, 0)),
        pl.BlockSpec((None, Cb, bs), lambda b, c: (b, c, 0)),
        pl.BlockSpec((None, Cb, two_bs), lambda b, c: (b, c, 0)),
    ]
    out_specs = [
        pl.BlockSpec((None, Cb, bs, dim), lambda b, c: (b, c, 0, 0)),
        pl.BlockSpec((None, Cb, bs), lambda b, c: (b, c, 0)),
    ]
    out_shape = (
        jax.ShapeDtypeStruct((B, C, bs, dim), jnp.float32),
        jax.ShapeDtypeStruct((B, C, bs), jnp.float32),
    )

    return pl.pallas_call(
        kernel,
        out_shape=out_shape,
        grid_spec=pltpu.PrefetchScalarGridSpec(
            num_scalar_prefetch=0,
            grid=(B, C // Cb),
            in_specs=in_specs,
            out_specs=out_specs,
        ),
        compiler_params=pltpu.CompilerParams(
            dimension_semantics=("parallel", "parallel"),
            vmem_limit_bytes=32 * 1024 * 1024),
    )(bq, bk, bv, qid, kvid)


# ----------------------------------------------------------------------------
# Plain-JAX glue reproducing LSHAttention.forward (dropout=0, no input_mask,
# return_attn=False, query_len == seqlen)
# ----------------------------------------------------------------------------
def hash_vectors(vecs, rotations, n_buckets, n_hashes):
    B = vecs.shape[0]
    rot = jnp.broadcast_to(rotations, (B,) + rotations.shape[1:])
    rotated = jnp.einsum('btf,bfhi->bhti', vecs, rot)
    rotated = jnp.concatenate([rotated, -rotated], axis=-1)
    buckets = jnp.argmax(rotated, axis=-1).astype(jnp.int32)     # (B,h,t)
    offsets = (jnp.arange(n_hashes, dtype=jnp.int32)
               * n_buckets).reshape(1, n_hashes, 1)
    return (buckets + offsets).reshape(B, -1)                    # (B, h*t)


def look_one_back(x):
    x_extra = jnp.concatenate([x[:, -1:], x[:, :-1]], axis=1)
    return jnp.concatenate([x, x_extra], axis=2)


def lsh_attention_forward(qk, v, rotations, *, bucket_size, n_hashes):
    B, seqlen, dim = qk.shape
    assert seqlen % (bucket_size * 2) == 0
    n_buckets = seqlen // bucket_size

    buckets = hash_vectors(qk, rotations, n_buckets, n_hashes)   # (B, h*S) i32
    total = n_hashes * seqlen
    ticker = jnp.broadcast_to(jnp.arange(total, dtype=jnp.int32)[None],
                              (B, total))

    # Pack (bucket, t) into one int32 with a power-of-two shift so the kernel
    # can split it with bit ops.  Keys are unique, so this sorts into exactly
    # the same permutation as the reference's seqlen*bucket + t key.
    id_bits = max((seqlen - 1).bit_length(), 1)
    packed = (buckets << id_bits) | (ticker % seqlen)

    sticker = jnp.argsort(packed, axis=-1).astype(jnp.int32)
    spacked = jnp.take_along_axis(packed, sticker, axis=-1)
    undo_sort = jnp.argsort(sticker, axis=-1).astype(jnp.int32)

    st = sticker % seqlen
    sqk = jnp.take_along_axis(qk, st[..., None], axis=1)
    sv = jnp.take_along_axis(v, st[..., None], axis=1)

    chunk_size = n_hashes * n_buckets                            # C
    bqk = sqk.reshape(B, chunk_size, -1, dim)
    bv_ = sv.reshape(B, chunk_size, -1, dim)
    norm = jnp.sqrt(jnp.sum(bqk * bqk, axis=-1, keepdims=True))
    bk_f32 = bqk / jnp.maximum(norm, 1e-12)                      # F.normalize

    # bf16 at the MXU inputs (and half the HBM->VMEM bytes for q/k/v);
    # masking + softmax stay f32 inside the kernel.
    bq = bqk.astype(jnp.bfloat16)
    bk = look_one_back(bk_f32.astype(jnp.bfloat16))
    bv_b = look_one_back(bv_.astype(jnp.bfloat16))

    qid = spacked.reshape(B, chunk_size, -1).astype(jnp.int32)   # (B,C,bs)
    kvid = look_one_back(qid)                                    # (B,C,2bs)

    scale = float(dim) ** -0.5
    bo, lse = lsh_bucket_attention(bq, bk, bv_b, qid, kvid, scale, id_bits)

    so = bo.reshape(B, -1, dim)
    slogits = lse.reshape(B, -1)
    o = jnp.take_along_axis(so, undo_sort[..., None], axis=1)
    logits = jnp.take_along_axis(slogits, undo_sort, axis=1)
    o = o.reshape(B, n_hashes, seqlen, dim)
    logits = logits.reshape(B, n_hashes, seqlen, 1)

    probs = jnp.exp(logits - jax.nn.logsumexp(logits, axis=1, keepdims=True))
    out = jnp.sum(o * probs, axis=1)                             # (B,S,D)
    # TODO(synk): return_attn=True scatter_add path (unsorted attention map)
    # not implemented; the module default returns an empty attn tensor.
    attn = jnp.zeros((0,), dtype=jnp.float32)
    return out, attn, buckets


if __name__ == "__main__":
    B, seqlen, dim = 2, 256, 16
    bucket_size, n_hashes = 64, 2
    n_buckets = seqlen // bucket_size

    key = jax.random.PRNGKey(0)
    k1, k2, k3 = jax.random.split(key, 3)
    qk = jax.random.normal(k1, (B, seqlen, dim), dtype=jnp.float32)
    v = jax.random.normal(k2, (B, seqlen, dim), dtype=jnp.float32)
    # random rotations for hashing (deterministic, synthetic "weights")
    rotations = jax.random.normal(
        k3, (1, dim, n_hashes, n_buckets // 2), dtype=jnp.float32)

    fwd = jax.jit(partial(lsh_attention_forward,
                          bucket_size=bucket_size, n_hashes=n_hashes))
    out, attn, buckets = fwd(qk, v, rotations)
    out = jax.block_until_ready(out)

    assert out.shape == (B, seqlen, dim)
    assert buckets.shape == (B, n_hashes * seqlen)
    assert bool(jnp.all(jnp.isfinite(out)))
    print("KERNEL_OK")
</pallas_src>

<mosaic_0001>
module attributes {stable_mosaic.version = 11 : i64} {
  func.func @_lsh_attn_kernel(%arg0: i32, %arg1: i32, %arg2: memref<1x8x64x16xbf16, #tpu.memory_space<vmem>>, %arg3: memref<1x8x128x16xbf16, #tpu.memory_space<vmem>>, %arg4: memref<1x8x128x16xbf16, #tpu.memory_space<vmem>>, %arg5: memref<1x8x64xi32, #tpu.memory_space<vmem>>, %arg6: memref<1x8x128xi32, #tpu.memory_space<vmem>>, %arg7: memref<1x8x64x16xf32, #tpu.memory_space<vmem>>, %arg8: memref<1x8x64xf32, #tpu.memory_space<vmem>>) attributes {dimension_semantics = [#tpu.dimension_semantics<parallel>, #tpu.dimension_semantics<parallel>], iteration_bounds = array<i64: 2, 1>, scalar_prefetch = 0 : i64, scratch_operands = 0 : i64, tpu.core_type = #tpu.core_type<tc>, window_params = [{transform_indices = @transform_0, window_bounds = array<i64: 1, 8, 64, 16>}, {transform_indices = @transform_1, window_bounds = array<i64: 1, 8, 128, 16>}, {transform_indices = @transform_2, window_bounds = array<i64: 1, 8, 128, 16>}, {transform_indices = @transform_3, window_bounds = array<i64: 1, 8, 64>}, {transform_indices = @transform_4, window_bounds = array<i64: 1, 8, 128>}, {transform_indices = @transform_5, window_bounds = array<i64: 1, 8, 64, 16>}, {transform_indices = @transform_6, window_bounds = array<i64: 1, 8, 64>}]} {
    %c0 = arith.constant 0 : index
    %c0_0 = arith.constant 0 : index
    %c0_1 = arith.constant 0 : index
    %c0_2 = arith.constant 0 : index
    %0 = vector.load %arg2[%c0, %c0_0, %c0_1, %c0_2] : memref<1x8x64x16xbf16, #tpu.memory_space<vmem>>, vector<1x8x64x16xbf16>
    %1 = vector.shape_cast %0 : vector<1x8x64x16xbf16> to vector<8x64x16xbf16>
    %c0_3 = arith.constant 0 : index
    %c0_4 = arith.constant 0 : index
    %c0_5 = arith.constant 0 : index
    %c0_6 = arith.constant 0 : index
    %2 = vector.load %arg3[%c0_3, %c0_4, %c0_5, %c0_6] : memref<1x8x128x16xbf16, #tpu.memory_space<vmem>>, vector<1x8x128x16xbf16>
    %3 = vector.shape_cast %2 : vector<1x8x128x16xbf16> to vector<8x128x16xbf16>
    %c0_7 = arith.constant 0 : index
    %c0_8 = arith.constant 0 : index
    %c0_9 = arith.constant 0 : index
    %c0_10 = arith.constant 0 : index
    %4 = vector.load %arg4[%c0_7, %c0_8, %c0_9, %c0_10] : memref<1x8x128x16xbf16, #tpu.memory_space<vmem>>, vector<1x8x128x16xbf16>
    %5 = vector.shape_cast %4 : vector<1x8x128x16xbf16> to vector<8x128x16xbf16>
    %c0_11 = arith.constant 0 : index
    %c0_12 = arith.constant 0 : index
    %c0_13 = arith.constant 0 : index
    %6 = vector.load %arg5[%c0_11, %c0_12, %c0_13] : memref<1x8x64xi32, #tpu.memory_space<vmem>>, vector<1x8x64xi32>
    %7 = vector.shape_cast %6 : vector<1x8x64xi32> to vector<8x64xi32>
    %c0_14 = arith.constant 0 : index
    %c0_15 = arith.constant 0 : index
    %c0_16 = arith.constant 0 : index
    %8 = vector.load %arg6[%c0_14, %c0_15, %c0_16] : memref<1x8x128xi32, #tpu.memory_space<vmem>>, vector<1x8x128xi32>
    %9 = vector.shape_cast %8 : vector<1x8x128xi32> to vector<8x128xi32>
    %cst = arith.constant 2.500000e-01 : bf16
    %10 = vector.broadcast %cst : bf16 to vector<8x64x16xbf16>
    %11 = arith.mulf %1, %10 : vector<8x64x16xbf16>
    "tpu.trace_start"() <{level = 10 : i32, message = "cqd,ckd->cqk"}> : () -> ()
    %cst_17 = arith.constant dense<0.000000e+00> : vector<8x64x128xf32>
    %12 = tpu.matmul %11, %3, %cst_17 {dimension_numbers = #tpu.dot_dimension_numbers<[2], [2], [1], [1], [0, 0, 0, 1, 1, 1], [0], [0]>} : vector<8x64x16xbf16>, vector<8x128x16xbf16>, vector<8x64x128xf32> -> vector<8x64x128xf32>
    "tpu.trace_stop"() : () -> ()
    %c255_i32 = arith.constant 255 : i32
    %13 = vector.broadcast %c255_i32 : i32 to vector<8x64xi32>
    %14 = arith.andi %7, %13 : vector<8x64xi32>
    %c8_i32 = arith.constant 8 : i32
    %15 = vector.broadcast %c8_i32 : i32 to vector<8x64xi32>
    %16 = arith.shrsi %7, %15 : vector<8x64xi32>
    %c255_i32_18 = arith.constant 255 : i32
    %17 = vector.broadcast %c255_i32_18 : i32 to vector<8x128xi32>
    %18 = arith.andi %9, %17 : vector<8x128xi32>
    %c8_i32_19 = arith.constant 8 : i32
    %19 = vector.broadcast %c8_i32_19 : i32 to vector<8x128xi32>
    %20 = arith.shrsi %9, %19 : vector<8x128xi32>
    %21 = vector.shape_cast %14 : vector<8x64xi32> to vector<8x64x1xi32>
    %22 = vector.shape_cast %18 : vector<8x128xi32> to vector<8x1x128xi32>
    %23 = vector.broadcast %21 : vector<8x64x1xi32> to vector<8x64x128xi32>
    %24 = vector.broadcast %22 : vector<8x1x128xi32> to vector<8x64x128xi32>
    %25 = arith.cmpi eq, %23, %24 : vector<8x64x128xi32>
    %cst_20 = arith.constant -5.000000e+04 : f32
    %26 = vector.broadcast %cst_20 : f32 to vector<8x64x128xf32>
    %27 = arith.select %25, %26, %12 : vector<8x64x128xi1>, vector<8x64x128xf32>
    %28 = vector.shape_cast %16 : vector<8x64xi32> to vector<8x64x1xi32>
    %29 = vector.shape_cast %20 : vector<8x128xi32> to vector<8x1x128xi32>
    %30 = vector.broadcast %28 : vector<8x64x1xi32> to vector<8x64x128xi32>
    %31 = vector.broadcast %29 : vector<8x1x128xi32> to vector<8x64x128xi32>
    %32 = arith.cmpi ne, %30, %31 : vector<8x64x128xi32>
    %cst_21 = arith.constant -3.40282347E+38 : f32
    %33 = vector.broadcast %cst_21 : f32 to vector<8x64x128xf32>
    %34 = arith.select %32, %33, %27 : vector<8x64x128xi1>, vector<8x64x128xf32>
    %cst_22 = arith.constant dense<0xFF800000> : vector<8x64xf32>
    %35 = vector.multi_reduction <maximumf>, %34, %cst_22 [2] : vector<8x64x128xf32> to vector<8x64xf32>
    %36 = vector.shape_cast %35 : vector<8x64xf32> to vector<8x64x1xf32>
    %37 = vector.broadcast %36 : vector<8x64x1xf32> to vector<8x64x128xf32>
    %38 = arith.subf %34, %37 : vector<8x64x128xf32>
    %39 = math.exp %38 : vector<8x64x128xf32>
    %cst_23 = arith.constant dense<0.000000e+00> : vector<8x64xf32>
    %40 = vector.multi_reduction <add>, %39, %cst_23 [2] : vector<8x64x128xf32> to vector<8x64xf32>
    %41 = vector.shape_cast %40 : vector<8x64xf32> to vector<8x64x1xf32>
    %42 = math.log %41 : vector<8x64x1xf32>
    %43 = arith.addf %36, %42 : vector<8x64x1xf32>
    %44 = tpu.reciprocal %41 {approx = true} : vector<8x64x1xf32> -> vector<8x64x1xf32>
    %45 = vector.broadcast %44 : vector<8x64x1xf32> to vector<8x64x128xf32>
    %46 = arith.mulf %39, %45 : vector<8x64x128xf32>
    %47 = arith.truncf %46 : vector<8x64x128xf32> to vector<8x64x128xbf16>
    "tpu.trace_start"() <{level = 10 : i32, message = "cqk,ckd->cqd"}> : () -> ()
    %cst_24 = arith.constant dense<0.000000e+00> : vector<8x64x16xf32>
    %48 = tpu.matmul %47, %5, %cst_24 {dimension_numbers = #tpu.dot_dimension_numbers<[2], [1], [1], [2], [0, 0, 0, 1, 1, 2], [0], [0]>} : vector<8x64x128xbf16>, vector<8x128x16xbf16>, vector<8x64x16xf32> -> vector<8x64x16xf32>
    "tpu.trace_stop"() : () -> ()
    %c0_25 = arith.constant 0 : index
    %c0_26 = arith.constant 0 : index
    %c0_27 = arith.constant 0 : index
    %c0_28 = arith.constant 0 : index
    %49 = vector.load %arg7[%c0_25, %c0_26, %c0_27, %c0_28] : memref<1x8x64x16xf32, #tpu.memory_space<vmem>>, vector<1x8x64x16xf32>
    %50 = vector.shape_cast %49 : vector<1x8x64x16xf32> to vector<8x64x16xf32>
    %51 = vector.shape_cast %48 : vector<8x64x16xf32> to vector<1x8x64x16xf32>
    tpu.vector_store %arg7[%c0_25, %c0_26, %c0_27, %c0_28], %51 {strides = array<i32>} : memref<1x8x64x16xf32, #tpu.memory_space<vmem>>, vector<1x8x64x16xf32>,
    %52 = vector.shape_cast %43 : vector<8x64x1xf32> to vector<8x64xf32>
    %c0_29 = arith.constant 0 : index
    %c0_30 = arith.constant 0 : index
    %c0_31 = arith.constant 0 : index
    %53 = vector.load %arg8[%c0_29, %c0_30, %c0_31] : memref<1x8x64xf32, #tpu.memory_space<vmem>>, vector<1x8x64xf32>
    %54 = vector.shape_cast %53 : vector<1x8x64xf32> to vector<8x64xf32>
    %55 = vector.shape_cast %52 : vector<8x64xf32> to vector<1x8x64xf32>
    tpu.vector_store %arg8[%c0_29, %c0_30, %c0_31], %55 {strides = array<i32>} : memref<1x8x64xf32, #tpu.memory_space<vmem>>, vector<1x8x64xf32>,
    return
  }
  func.func @transform_0(%arg0: i32, %arg1: i32) -> (i32, i32, i32, i32) {
    %c0_i32 = arith.constant 0 : i32
    %c0_i32_0 = arith.constant 0 : i32
    %c0_i32_1 = arith.constant 0 : i32
    return %arg0, %arg1, %c0_i32, %c0_i32_0 : i32, i32, i32, i32
  }
  func.func @transform_1(%arg0: i32, %arg1: i32) -> (i32, i32, i32, i32) {
    %c0_i32 = arith.constant 0 : i32
    %c0_i32_0 = arith.constant 0 : i32
    %c0_i32_1 = arith.constant 0 : i32
    return %arg0, %arg1, %c0_i32, %c0_i32_0 : i32, i32, i32, i32
  }
  func.func @transform_2(%arg0: i32, %arg1: i32) -> (i32, i32, i32, i32) {
    %c0_i32 = arith.constant 0 : i32
    %c0_i32_0 = arith.constant 0 : i32
    %c0_i32_1 = arith.constant 0 : i32
    return %arg0, %arg1, %c0_i32, %c0_i32_0 : i32, i32, i32, i32
  }
  func.func @transform_3(%arg0: i32, %arg1: i32) -> (i32, i32, i32) {
    %c0_i32 = arith.constant 0 : i32
    %c0_i32_0 = arith.constant 0 : i32
    return %arg0, %arg1, %c0_i32 : i32, i32, i32
  }
  func.func @transform_4(%arg0: i32, %arg1: i32) -> (i32, i32, i32) {
    %c0_i32 = arith.constant 0 : i32
    %c0_i32_0 = arith.constant 0 : i32
    return %arg0, %arg1, %c0_i32 : i32, i32, i32
  }
  func.func @transform_5(%arg0: i32, %arg1: i32) -> (i32, i32, i32, i32) {
    %c0_i32 = arith.constant 0 : i32
    %c0_i32_0 = arith.constant 0 : i32
    %c0_i32_1 = arith.constant 0 : i32
    return %arg0, %arg1, %c0_i32, %c0_i32_0 : i32, i32, i32, i32
  }
  func.func @transform_6(%arg0: i32, %arg1: i32) -> (i32, i32, i32) {
    %c0_i32 = arith.constant 0 : i32
    %c0_i32_0 = arith.constant 0 : i32
    return %arg0, %arg1, %c0_i32 : i32, i32, i32
  }
}

</mosaic_0001>

<llo_original>
// kernel: lsh_attention_forward.1
$region0: #{lsh_attention_forward.1}
  #allocation0 [shape = 'u32[]', space=smem, size = 0x4, offset = 0x4, fixed_abs, tag = 'smem constant byte address 0x4 - core index']
  #allocation1 [shape = 'u32[144,128]{1,0:T(1,128)}', space=vmem, size = 0x12000, scoped, tag = 'internal scratch']
  %s0 = inlined_call_operand.vmem [shape: bf16[2,8,64,16], index: 0, kind: input, shape index: {}]
  %s1 = inlined_call_operand.vmem [shape: bf16[2,8,128,16], index: 1, kind: input, shape index: {}]
  %s2 = inlined_call_operand.vmem [shape: bf16[2,8,128,16], index: 2, kind: input, shape index: {}]
  %s3 = inlined_call_operand.vmem [shape: s32[2,8,64], index: 3, kind: input, shape index: {}]
  %s4 = inlined_call_operand.vmem [shape: s32[2,8,128], index: 4, kind: input, shape index: {}]
  %s5 = inlined_call_operand.vmem [shape: f32[2,8,64,16], index: 5, kind: output, shape index: {0}]
  %s6 = inlined_call_operand.vmem [shape: f32[2,8,64], index: 6, kind: output, shape index: {1}]
  %7 = xla_tuple %s5, %s6
  %s8 = sld [smem:[#allocation0]]
  $region61: #{lsh_attention_forward.1} parent=0
    _
  %s10 = ssub.s32 1, %s8
  %s11 = scalar_select 0, %s10, %s8
  loop: start=0, step=1, limit=4
  $region2: #{lsh_attention_forward.1} parent=0 // loop_pre_header
    _
  $region3: #{lsh_attention_forward.1} parent=0 // loop_header
    %s13 = sphi 0, %s17
    %p14 = scmp.ge.s32.totalorder %s13, 4
    %s20 = sphi 0, %s32
    %s21 = sphi 0, %s28
    %s22 = sphi 0, %s20
    %s23 = sphi 0, %s21
    %s24 = sphi 0, %s22
    %s25 = sphi 0, %s23
    %s37 = sphi 0, %s39
    %s40 = sphi 0, %s37
    %s41 = sphi 0, %s40
    %s57 = sphi 0, %s41
    %s65 = sphi 0, %s67
    %s68 = sphi 0, %s65
    %s69 = sphi 0, %s68
    %s85 = sphi 0, %s69
    %s93 = sphi 0, %s95
    %s96 = sphi 0, %s93
    %s97 = sphi 0, %s96
    %s113 = sphi 0, %s97
    %s121 = sphi 0, %s123
    %s124 = sphi 0, %s121
    %s125 = sphi 0, %s124
    %s141 = sphi 0, %s125
    %s149 = sphi 0, %s151
    %s152 = sphi 0, %s149
    %s153 = sphi 0, %s152
    %s169 = sphi 0, %s153
    %s177 = sphi 0, %s179
    %s180 = sphi 0, %s177
    %s181 = sphi 0, %s180
    %s197 = sphi 0, %s181
    %s205 = sphi 0, %s207
    %s208 = sphi 0, %s205
    %s209 = sphi 0, %s208
    %s225 = sphi 0, %s209
  $region4: #{lsh_attention_forward.1} parent=0 // loop_header_branch
    %16 = sbr.rel (%p14) target = $region8
  $region5: #{lsh_attention_forward.1} parent=0 // loop_body
    %s18 = ssub.s32 %s13, 1
    %s19 = ssub.s32 %s13, 2
    %s26 = sadd.s32 1, %s21
    %p27 = scmp.ge.s32.totalorder %s26, 1
    %s28 = scalar_select %p27, 0, %s26
    %s29 = sadd.s32 1, %s20
    %s30 = scalar_select %p27, %s29, %s20
    %p31 = scmp.ge.s32.totalorder %s30, 2
    %s32 = scalar_select %p31, 0, %s30
    %s33 = ssub.s32 %s20, %s32
    %s34 = ssub.s32 %s21, %s28
    %s35 = sor.u32 %s33, %s34
    %p36 = scmp.eq.s32.totalorder %s35, 0
    %s38 = sadd.s32 %s37, 1
    %s39 = scalar_select %p36, %s37, %s38
    %p42 = pneg %p36
    %p43 = scmp.eq.s32.totalorder %s13, 1
    %p44 = por %p42, %p43
    %p45 = scmp.ne.s32.totalorder %s37, %s40
    %p46 = scmp.eq.s32.totalorder %s13, 0
    %p47 = por %p45, %p46
    %p48 = scmp.ne.s32.totalorder %s37, %s40
    %p49 = scmp.eq.s32.totalorder %s18, 1
    %p50 = por %p48, %p49
    %p51 = scmp.ne.s32.totalorder %s40, %s41
    %p52 = scmp.eq.s32.totalorder %s18, 0
    %p53 = por %p51, %p52
    %p54 = scmp.ne.s32.totalorder %s40, %s41
    %p55 = scmp.eq.s32.totalorder %s19, 1
    %p56 = por %p54, %p55
    %p58 = scmp.ne.s32.totalorder %s41, %s57
    %p59 = scmp.eq.s32.totalorder %s19, 0
    %p60 = por %p58, %p59
    %s61 = ssub.s32 %s20, %s32
    %s62 = ssub.s32 %s21, %s28
    %s63 = sor.u32 %s61, %s62
    %p64 = scmp.eq.s32.totalorder %s63, 0
    %s66 = sadd.s32 %s65, 1
    %s67 = scalar_select %p64, %s65, %s66
    %p70 = pneg %p64
    %p71 = scmp.eq.s32.totalorder %s13, 1
    %p72 = por %p70, %p71
    %p73 = scmp.ne.s32.totalorder %s65, %s68
    %p74 = scmp.eq.s32.totalorder %s13, 0
    %p75 = por %p73, %p74
    %p76 = scmp.ne.s32.totalorder %s65, %s68
    %p77 = scmp.eq.s32.totalorder %s18, 1
    %p78 = por %p76, %p77
    %p79 = scmp.ne.s32.totalorder %s68, %s69
    %p80 = scmp.eq.s32.totalorder %s18, 0
    %p81 = por %p79, %p80
    %p82 = scmp.ne.s32.totalorder %s68, %s69
    %p83 = scmp.eq.s32.totalorder %s19, 1
    %p84 = por %p82, %p83
    %p86 = scmp.ne.s32.totalorder %s69, %s85
    %p87 = scmp.eq.s32.totalorder %s19, 0
    %p88 = por %p86, %p87
    %s89 = ssub.s32 %s20, %s32
    %s90 = ssub.s32 %s21, %s28
    %s91 = sor.u32 %s89, %s90
    %p92 = scmp.eq.s32.totalorder %s91, 0
    %s94 = sadd.s32 %s93, 1
    %s95 = scalar_select %p92, %s93, %s94
    %p98 = pneg %p92
    %p99 = scmp.eq.s32.totalorder %s13, 1
    %p100 = por %p98, %p99
    %p101 = scmp.ne.s32.totalorder %s93, %s96
    %p102 = scmp.eq.s32.totalorder %s13, 0
    %p103 = por %p101, %p102
    %p104 = scmp.ne.s32.totalorder %s93, %s96
    %p105 = scmp.eq.s32.totalorder %s18, 1
    %p106 = por %p104, %p105
    %p107 = scmp.ne.s32.totalorder %s96, %s97
    %p108 = scmp.eq.s32.totalorder %s18, 0
    %p109 = por %p107, %p108
    %p110 = scmp.ne.s32.totalorder %s96, %s97
    %p111 = scmp.eq.s32.totalorder %s19, 1
    %p112 = por %p110, %p111
    %p114 = scmp.ne.s32.totalorder %s97, %s113
    %p115 = scmp.eq.s32.totalorder %s19, 0
    %p116 = por %p114, %p115
    %s117 = ssub.s32 %s20, %s32
    %s118 = ssub.s32 %s21, %s28
    %s119 = sor.u32 %s117, %s118
    %p120 = scmp.eq.s32.totalorder %s119, 0
    %s122 = sadd.s32 %s121, 1
    %s123 = scalar_select %p120, %s121, %s122
    %p126 = pneg %p120
    %p127 = scmp.eq.s32.totalorder %s13, 1
    %p128 = por %p126, %p127
    %p129 = scmp.ne.s32.totalorder %s121, %s124
    %p130 = scmp.eq.s32.totalorder %s13, 0
    %p131 = por %p129, %p130
    %p132 = scmp.ne.s32.totalorder %s121, %s124
    %p133 = scmp.eq.s32.totalorder %s18, 1
    %p134 = por %p132, %p133
    %p135 = scmp.ne.s32.totalorder %s124, %s125
    %p136 = scmp.eq.s32.totalorder %s18, 0
    %p137 = por %p135, %p136
    %p138 = scmp.ne.s32.totalorder %s124, %s125
    %p139 = scmp.eq.s32.totalorder %s19, 1
    %p140 = por %p138, %p139
    %p142 = scmp.ne.s32.totalorder %s125, %s141
    %p143 = scmp.eq.s32.totalorder %s19, 0
    %p144 = por %p142, %p143
    %s145 = ssub.s32 %s20, %s32
    %s146 = ssub.s32 %s21, %s28
    %s147 = sor.u32 %s145, %s146
    %p148 = scmp.eq.s32.totalorder %s147, 0
    %s150 = sadd.s32 %s149, 1
    %s151 = scalar_select %p148, %s149, %s150
    %p154 = pneg %p148
    %p155 = scmp.eq.s32.totalorder %s13, 1
    %p156 = por %p154, %p155
    %p157 = scmp.ne.s32.totalorder %s149, %s152
    %p158 = scmp.eq.s32.totalorder %s13, 0
    %p159 = por %p157, %p158
    %p160 = scmp.ne.s32.totalorder %s149, %s152
    %p161 = scmp.eq.s32.totalorder %s18, 1
    %p162 = por %p160, %p161
    %p163 = scmp.ne.s32.totalorder %s152, %s153
    %p164 = scmp.eq.s32.totalorder %s18, 0
    %p165 = por %p163, %p164
    %p166 = scmp.ne.s32.totalorder %s152, %s153
    %p167 = scmp.eq.s32.totalorder %s19, 1
    %p168 = por %p166, %p167
    %p170 = scmp.ne.s32.totalorder %s153, %s169
    %p171 = scmp.eq.s32.totalorder %s19, 0
    %p172 = por %p170, %p171
    %s173 = ssub.s32 %s20, %s32
    %s174 = ssub.s32 %s21, %s28
    %s175 = sor.u32 %s173, %s174
    %p176 = scmp.eq.s32.totalorder %s175, 0
    %s178 = sadd.s32 %s177, 1
    %s179 = scalar_select %p176, %s177, %s178
    %p182 = pneg %p176
    %p183 = scmp.eq.s32.totalorder %s13, 1
    %p184 = por %p182, %p183
    %p185 = scmp.ne.s32.totalorder %s177, %s180
    %p186 = scmp.eq.s32.totalorder %s13, 0
    %p187 = por %p185, %p186
    %p188 = scmp.ne.s32.totalorder %s177, %s180
    %p189 = scmp.eq.s32.totalorder %s18, 1
    %p190 = por %p188, %p189
    %p191 = scmp.ne.s32.totalorder %s180, %s181
    %p192 = scmp.eq.s32.totalorder %s18, 0
    %p193 = por %p191, %p192
    %p194 = scmp.ne.s32.totalorder %s180, %s181
    %p195 = scmp.eq.s32.totalorder %s19, 1
    %p196 = por %p194, %p195
    %p198 = scmp.ne.s32.totalorder %s181, %s197
    %p199 = scmp.eq.s32.totalorder %s19, 0
    %p200 = por %p198, %p199
    %s201 = ssub.s32 %s20, %s32
    %s202 = ssub.s32 %s21, %s28
    %s203 = sor.u32 %s201, %s202
    %p204 = scmp.eq.s32.totalorder %s203, 0
    %s206 = sadd.s32 %s205, 1
    %s207 = scalar_select %p204, %s205, %s206
    %p210 = pneg %p204
    %p211 = scmp.eq.s32.totalorder %s13, 1
    %p212 = por %p210, %p211
    %p213 = scmp.ne.s32.totalorder %s205, %s208
    %p214 = scmp.eq.s32.totalorder %s13, 0
    %p215 = por %p213, %p214
    %p216 = scmp.ne.s32.totalorder %s205, %s208
    %p217 = scmp.eq.s32.totalorder %s18, 1
    %p218 = por %p216, %p217
    %p219 = scmp.ne.s32.totalorder %s208, %s209
    %p220 = scmp.eq.s32.totalorder %s18, 0
    %p221 = por %p219, %p220
    %p222 = scmp.ne.s32.totalorder %s208, %s209
    %p223 = scmp.eq.s32.totalorder %s19, 1
    %p224 = por %p222, %p223
    %p226 = scmp.ne.s32.totalorder %s209, %s225
    %p227 = scmp.eq.s32.totalorder %s19, 0
    %p228 = por %p226, %p227
    %p229 = scmp.le.s32.totalorder 1, %s13
    %p230 = scmp.lt.s32.totalorder %s13, 3
    %p231 = pnand %p229, %p230
    %p232 = pneg %p231
    // Predicated region
    $region9: #{lsh_attention_forward.1} parent=5 // pred_check
      _
    $region10: #{lsh_attention_forward.1} parent=5 // pred_check_branch
      %234 = sbr.rel (%p231) target = $region12
    $region11: #{lsh_attention_forward.1} parent=5 // pred_region
      %s235 = ssub.s32 %s13, 1
    $region12: #{lsh_attention_forward.1} parent=5 // pred_fallthru
      _
    %p236 = scmp.lt.s32.totalorder %s13, 2
    // Predicated region
    $region13: #{lsh_attention_forward.1} parent=5 // pred_check
      %p237 = pneg %p236
    $region14: #{lsh_attention_forward.1} parent=5 // pred_check_branch
      %239 = sbr.rel (%p237) target = $region16
    $region15: #{lsh_attention_forward.1} parent=5 // pred_region
      // Predicated region
      $region17: #{lsh_attention_forward.1} parent=15 // pred_check
        %p240 = pneg %p47
      $region18: #{lsh_attention_forward.1} parent=15 // pred_check_branch
        %242 = sbr.rel (%p240) target = $region20
      $region19: #{lsh_attention_forward.1} parent=15 // pred_region
        %s243 = smul.u32 8, %s21
        %p244 = scmp.lt.s32.totalorder %s20, 1
        %s245 = scalar_select %p244, %s20, 1
        %p246 = scmp.lt.s32.totalorder %s243, 7
        %s247 = scalar_select %p246, %s243, 7
        %s248 = smul.addr %s247, 8
        %s249 = smul.addr %s245, 64
        %s250 = sadd.s32 %s248, %s249
        %s251 = smul.addr %s250, 4
        %s252 = scalar_lea.vmem %s0, %s251
        %s253 = smul.u32 8, %s21
      $region20: #{lsh_attention_forward.1} parent=15 // pred_fallthru
        _
      // Predicated region
      $region21: #{lsh_attention_forward.1} parent=15 // pred_check
        %p254 = pneg %p75
      $region22: #{lsh_attention_forward.1} parent=15 // pred_check_branch
        %256 = sbr.rel (%p254) target = $region24
      $region23: #{lsh_attention_forward.1} parent=15 // pred_region
        %s257 = smul.u32 8, %s21
        %p258 = scmp.lt.s32.totalorder %s20, 1
        %s259 = scalar_select %p258, %s20, 1
        %p260 = scmp.lt.s32.totalorder %s257, 7
        %s261 = scalar_select %p260, %s257, 7
        %s262 = smul.addr %s261, 16
        %s263 = smul.addr %s259, 128
        %s264 = sadd.s32 %s262, %s263
        %s265 = smul.addr %s264, 4
        %s266 = scalar_lea.vmem %s1, %s265
        %s267 = smul.u32 8, %s21
      $region24: #{lsh_attention_forward.1} parent=15 // pred_fallthru
        _
      // Predicated region
      $region25: #{lsh_attention_forward.1} parent=15 // pred_check
        %p268 = pneg %p103
      $region26: #{lsh_attention_forward.1} parent=15 // pred_check_branch
        %270 = sbr.rel (%p268) target = $region28
      $region27: #{lsh_attention_forward.1} parent=15 // pred_region
        %s271 = smul.u32 8, %s21
        %p272 = scmp.lt.s32.totalorder %s20, 1
        %s273 = scalar_select %p272, %s20, 1
        %p274 = scmp.lt.s32.totalorder %s271, 7
        %s275 = scalar_select %p274, %s271, 7
        %s276 = smul.addr %s275, 16
        %s277 = smul.addr %s273, 128
        %s278 = sadd.s32 %s276, %s277
        %s279 = smul.addr %s278, 4
        %s280 = scalar_lea.vmem %s2, %s279
        %s281 = smul.u32 8, %s21
      $region28: #{lsh_attention_forward.1} parent=15 // pred_fallthru
        _
      // Predicated region
      $region29: #{lsh_attention_forward.1} parent=15 // pred_check
        %p282 = pneg %p131
      $region30: #{lsh_attention_forward.1} parent=15 // pred_check_branch
        %284 = sbr.rel (%p282) target = $region32
      $region31: #{lsh_attention_forward.1} parent=15 // pred_region
        %p285 = scmp.lt.s32.totalorder %s20, 1
        %s286 = scalar_select %p285, %s20, 1
        %p287 = scmp.lt.s32.totalorder %s21, 0
        %s288 = scalar_select %p287, %s21, 0
        %s289 = sadd.s32 %s288, %s286
        %s290 = smul.addr %s289, 8
        %s291 = scalar_lea.vmem %s3, %s290
      $region32: #{lsh_attention_forward.1} parent=15 // pred_fallthru
        _
      // Predicated region
      $region33: #{lsh_attention_forward.1} parent=15 // pred_check
        %p292 = pneg %p159
      $region34: #{lsh_attention_forward.1} parent=15 // pred_check_branch
        %294 = sbr.rel (%p292) target = $region36
      $region35: #{lsh_attention_forward.1} parent=15 // pred_region
        %p295 = scmp.lt.s32.totalorder %s20, 1
        %s296 = scalar_select %p295, %s20, 1
        %p297 = scmp.lt.s32.totalorder %s21, 0
        %s298 = scalar_select %p297, %s21, 0
        %s299 = sadd.s32 %s298, %s296
        %s300 = smul.addr %s299, 8
        %s301 = scalar_lea.vmem %s4, %s300
      $region36: #{lsh_attention_forward.1} parent=15 // pred_fallthru
        _
    $region16: #{lsh_attention_forward.1} parent=5 // pred_fallthru
      _
    %p302 = scmp.le.s32.totalorder 1, %s13
    %p303 = scmp.lt.s32.totalorder %s13, 3
    %p304 = pnand %p302, %p303
    %p305 = pneg %p304
    // Predicated region
    $region37: #{lsh_attention_forward.1} parent=5 // pred_check
      _
    $region38: #{lsh_attention_forward.1} parent=5 // pred_check_branch
      %307 = sbr.rel (%p304) target = $region40
    $region39: #{lsh_attention_forward.1} parent=5 // pred_region
      %s308 = ssub.s32 %s13, 1
      %s309 = smul.u32 8, %s23
      %p310 = scmp.lt.s32.totalorder %s22, 1
      %s311 = scalar_select %p310, %s22, 1
      %p312 = scmp.lt.s32.totalorder %s309, 7
      %s313 = scalar_select %p312, %s309, 7
      %s314 = smul.addr %s313, 8
      %s315 = smul.addr %s311, 64
      %s316 = sadd.s32 %s314, %s315
      %s317 = smul.addr %s316, 4
      %s318 = scalar_lea.vmem %s0, %s317
      %p319 = pneg %p53
      %p320 = pneg %p50
      %s321 = smul.u32 8, %s23
      %p322 = scmp.lt.s32.totalorder %s22, 1
      %s323 = scalar_select %p322, %s22, 1
      %p324 = scmp.lt.s32.totalorder %s321, 7
      %s325 = scalar_select %p324, %s321, 7
      %s326 = smul.addr %s325, 16
      %s327 = smul.addr %s323, 128
      %s328 = sadd.s32 %s326, %s327
      %s329 = smul.addr %s328, 4
      %s330 = scalar_lea.vmem %s1, %s329
      %p331 = pneg %p81
      %p332 = pneg %p78
      %s333 = smul.u32 8, %s23
      %p334 = scmp.lt.s32.totalorder %s22, 1
      %s335 = scalar_select %p334, %s22, 1
      %p336 = scmp.lt.s32.totalorder %s333, 7
      %s337 = scalar_select %p336, %s333, 7
      %s338 = smul.addr %s337, 16
      %s339 = smul.addr %s335, 128
      %s340 = sadd.s32 %s338, %s339
      %s341 = smul.addr %s340, 4
      %s342 = scalar_lea.vmem %s2, %s341
      %p343 = pneg %p109
      %p344 = pneg %p106
      %p345 = scmp.lt.s32.totalorder %s22, 1
      %s346 = scalar_select %p345, %s22, 1
      %p347 = scmp.lt.s32.totalorder %s23, 0
      %s348 = scalar_select %p347, %s23, 0
      %s349 = sadd.s32 %s348, %s346
      %s350 = smul.addr %s349, 8
      %s351 = scalar_lea.vmem %s3, %s350
      %p352 = pneg %p137
      %p353 = pneg %p134
      %p354 = scmp.lt.s32.totalorder %s22, 1
      %s355 = scalar_select %p354, %s22, 1
      %p356 = scmp.lt.s32.totalorder %s23, 0
      %s357 = scalar_select %p356, %s23, 0
      %s358 = sadd.s32 %s357, %s355
      %s359 = smul.addr %s358, 8
      %s360 = scalar_lea.vmem %s4, %s359
      %p361 = pneg %p165
      %p362 = pneg %p162
      %p363 = pneg %p193
      %p364 = pneg %p190
      %s365 = smul.u32 8, %s23
      %p366 = scmp.lt.s32.totalorder %s22, 1
      %s367 = scalar_select %p366, %s22, 1
      %p368 = scmp.lt.s32.totalorder %s365, 7
      %s369 = scalar_select %p368, %s365, 7
      %s370 = smul.addr %s369, 8
      %s371 = smul.addr %s367, 64
      %s372 = sadd.s32 %s370, %s371
      %s373 = smul.addr %s372, 8
      %s374 = scalar_lea.vmem %s5, %s373
      %p375 = pneg %p221
      %p376 = pneg %p218
      %p377 = scmp.lt.s32.totalorder %s22, 1
      %s378 = scalar_select %p377, %s22, 1
      %p379 = scmp.lt.s32.totalorder %s23, 0
      %s380 = scalar_select %p379, %s23, 0
      %s381 = sadd.s32 %s380, %s378
      %s382 = smul.addr %s381, 8
      %s383 = scalar_lea.vmem %s6, %s382
      %s384 = smul.u32 8, %s23
      %p385 = scmp.lt.s32.totalorder %s22, 1
      %s386 = scalar_select %p385, %s22, 1
      %p387 = scmp.lt.s32.totalorder %s384, 7
      %s388 = scalar_select %p387, %s384, 7
      %s389 = smul.addr %s388, 8
      %s390 = smul.addr %s386, 64
      %s391 = sadd.s32 %s389, %s390
      %s392 = smul.addr %s391, 4
      %s393 = scalar_lea.vmem %s0, %s392
      %s394 = smul.u32 8, %s23
      %s395 = smul.u32 8, %s23
      %p396 = scmp.lt.s32.totalorder %s22, 1
      %s397 = scalar_select %p396, %s22, 1
      %p398 = scmp.lt.s32.totalorder %s395, 7
      %s399 = scalar_select %p398, %s395, 7
      %s400 = smul.addr %s399, 16
      %s401 = smul.addr %s397, 128
      %s402 = sadd.s32 %s400, %s401
      %s403 = smul.addr %s402, 4
      %s404 = scalar_lea.vmem %s1, %s403
      %s405 = smul.u32 8, %s23
      %s406 = smul.u32 8, %s23
      %p407 = scmp.lt.s32.totalorder %s22, 1
      %s408 = scalar_select %p407, %s22, 1
      %p409 = scmp.lt.s32.totalorder %s406, 7
      %s410 = scalar_select %p409, %s406, 7
      %s411 = smul.addr %s410, 16
      %s412 = smul.addr %s408, 128
      %s413 = sadd.s32 %s411, %s412
      %s414 = smul.addr %s413, 4
      %s415 = scalar_lea.vmem %s2, %s414
      %s416 = smul.u32 8, %s23
      %p417 = scmp.lt.s32.totalorder %s22, 1
      %s418 = scalar_select %p417, %s22, 1
      %p419 = scmp.lt.s32.totalorder %s23, 0
      %s420 = scalar_select %p419, %s23, 0
      %s421 = sadd.s32 %s420, %s418
      %s422 = smul.addr %s421, 8
      %s423 = scalar_lea.vmem %s3, %s422
      %p424 = scmp.lt.s32.totalorder %s22, 1
      %s425 = scalar_select %p424, %s22, 1
      %p426 = scmp.lt.s32.totalorder %s23, 0
      %s427 = scalar_select %p426, %s23, 0
      %s428 = sadd.s32 %s427, %s425
      %s429 = smul.addr %s428, 8
      %s430 = scalar_lea.vmem %s4, %s429
      %s431 = smul.u32 8, %s23
      %p432 = scmp.lt.s32.totalorder %s22, 1
      %s433 = scalar_select %p432, %s22, 1
      %p434 = scmp.lt.s32.totalorder %s431, 7
      %s435 = scalar_select %p434, %s431, 7
      %s436 = smul.addr %s435, 8
      %s437 = smul.addr %s433, 64
      %s438 = sadd.s32 %s436, %s437
      %s439 = smul.addr %s438, 8
      %s440 = scalar_lea.vmem %s5, %s439
      %s441 = smul.u32 8, %s23
      %p442 = scmp.lt.s32.totalorder %s22, 1
      %s443 = scalar_select %p442, %s22, 1
      %p444 = scmp.lt.s32.totalorder %s23, 0
      %s445 = scalar_select %p444, %s23, 0
      %s446 = sadd.s32 %s445, %s443
      %s447 = smul.addr %s446, 8
      %s448 = scalar_lea.vmem %s6, %s447
      %v451 = vld [vmem:[%s393] sm:$0xf]
      %v452 = vld [vmem:[%s393 + $0x4] sm:$0xf]
      %v453 = vld [vmem:[%s393 + $0x8] sm:$0xf]
      %v454 = vld [vmem:[%s393 + $0xc] sm:$0xf]
      %v455 = vld [vmem:[%s393 + $0x10] sm:$0xf]
      %v456 = vld [vmem:[%s393 + $0x14] sm:$0xf]
      %v457 = vld [vmem:[%s393 + $0x18] sm:$0xf]
      %v458 = vld [vmem:[%s393 + $0x1c] sm:$0xf]
      %v459 = vld [vmem:[%s393 + $0x20] sm:$0xf]
      %v460 = vld [vmem:[%s393 + $0x24] sm:$0xf]
      %v461 = vld [vmem:[%s393 + $0x28] sm:$0xf]
      %v462 = vld [vmem:[%s393 + $0x2c] sm:$0xf]
      %v463 = vld [vmem:[%s393 + $0x30] sm:$0xf]
      %v464 = vld [vmem:[%s393 + $0x34] sm:$0xf]
      %v465 = vld [vmem:[%s393 + $0x38] sm:$0xf]
      %v466 = vld [vmem:[%s393 + $0x3c] sm:$0xf]
      %v467 = vld [vmem:[%s393 + $0x40] sm:$0xf]
      %v468 = vld [vmem:[%s393 + $0x44] sm:$0xf]
      %v469 = vld [vmem:[%s393 + $0x48] sm:$0xf]
      %v470 = vld [vmem:[%s393 + $0x4c] sm:$0xf]
      %v471 = vld [vmem:[%s393 + $0x50] sm:$0xf]
      %v472 = vld [vmem:[%s393 + $0x54] sm:$0xf]
      %v473 = vld [vmem:[%s393 + $0x58] sm:$0xf]
      %v474 = vld [vmem:[%s393 + $0x5c] sm:$0xf]
      %v475 = vld [vmem:[%s393 + $0x60] sm:$0xf]
      %v476 = vld [vmem:[%s393 + $0x64] sm:$0xf]
      %v477 = vld [vmem:[%s393 + $0x68] sm:$0xf]
      %v478 = vld [vmem:[%s393 + $0x6c] sm:$0xf]
      %v479 = vld [vmem:[%s393 + $0x70] sm:$0xf]
      %v480 = vld [vmem:[%s393 + $0x74] sm:$0xf]
      %v481 = vld [vmem:[%s393 + $0x78] sm:$0xf]
      %v482 = vld [vmem:[%s393 + $0x7c] sm:$0xf]
      %v483 = vld [vmem:[%s393 + $0x80] sm:$0xf]
      %v484 = vld [vmem:[%s393 + $0x84] sm:$0xf]
      %v485 = vld [vmem:[%s393 + $0x88] sm:$0xf]
      %v486 = vld [vmem:[%s393 + $0x8c] sm:$0xf]
      %v487 = vld [vmem:[%s393 + $0x90] sm:$0xf]
      %v488 = vld [vmem:[%s393 + $0x94] sm:$0xf]
      %v489 = vld [vmem:[%s393 + $0x98] sm:$0xf]
      %v490 = vld [vmem:[%s393 + $0x9c] sm:$0xf]
      %v491 = vld [vmem:[%s393 + $0xa0] sm:$0xf]
      %v492 = vld [vmem:[%s393 + $0xa4] sm:$0xf]
      %v493 = vld [vmem:[%s393 + $0xa8] sm:$0xf]
      %v494 = vld [vmem:[%s393 + $0xac] sm:$0xf]
      %v495 = vld [vmem:[%s393 + $0xb0] sm:$0xf]
      %v496 = vld [vmem:[%s393 + $0xb4] sm:$0xf]
      %v497 = vld [vmem:[%s393 + $0xb8] sm:$0xf]
      %v498 = vld [vmem:[%s393 + $0xbc] sm:$0xf]
      %v499 = vld [vmem:[%s393 + $0xc0] sm:$0xf]
      %v500 = vld [vmem:[%s393 + $0xc4] sm:$0xf]
      %v501 = vld [vmem:[%s393 + $0xc8] sm:$0xf]
      %v502 = vld [vmem:[%s393 + $0xcc] sm:$0xf]
      %v503 = vld [vmem:[%s393 + $0xd0] sm:$0xf]
      %v504 = vld [vmem:[%s393 + $0xd4] sm:$0xf]
      %v505 = vld [vmem:[%s393 + $0xd8] sm:$0xf]
      %v506 = vld [vmem:[%s393 + $0xdc] sm:$0xf]
      %v507 = vld [vmem:[%s393 + $0xe0] sm:$0xf]
      %v508 = vld [vmem:[%s393 + $0xe4] sm:$0xf]
      %v509 = vld [vmem:[%s393 + $0xe8] sm:$0xf]
      %v510 = vld [vmem:[%s393 + $0xec] sm:$0xf]
      %v511 = vld [vmem:[%s393 + $0xf0] sm:$0xf]
      %v512 = vld [vmem:[%s393 + $0xf4] sm:$0xf]
      %v513 = vld [vmem:[%s393 + $0xf8] sm:$0xf]
      %v514 = vld [vmem:[%s393 + $0xfc] sm:$0xf]
      %v515 = vld [vmem:[%s404] sm:$0xf]
      %v516 = vld [vmem:[%s404 + $0x4] sm:$0xf]
      %v517 = vld [vmem:[%s404 + $0x8] sm:$0xf]
      %v518 = vld [vmem:[%s404 + $0xc] sm:$0xf]
      %v519 = vld [vmem:[%s404 + $0x10] sm:$0xf]
      %v520 = vld [vmem:[%s404 + $0x14] sm:$0xf]
      %v521 = vld [vmem:[%s404 + $0x18] sm:$0xf]
      %v522 = vld [vmem:[%s404 + $0x1c] sm:$0xf]
      %v523 = vld [vmem:[%s404 + $0x20] sm:$0xf]
      %v524 = vld [vmem:[%s404 + $0x24] sm:$0xf]
      %v525 = vld [vmem:[%s404 + $0x28] sm:$0xf]
      %v526 = vld [vmem:[%s404 + $0x2c] sm:$0xf]
      %v527 = vld [vmem:[%s404 + $0x30] sm:$0xf]
      %v528 = vld [vmem:[%s404 + $0x34] sm:$0xf]
      %v529 = vld [vmem:[%s404 + $0x38] sm:$0xf]
      %v530 = vld [vmem:[%s404 + $0x3c] sm:$0xf]
      %v531 = vld [vmem:[%s404 + $0x40] sm:$0xf]
      %v532 = vld [vmem:[%s404 + $0x44] sm:$0xf]
      %v533 = vld [vmem:[%s404 + $0x48] sm:$0xf]
      %v534 = vld [vmem:[%s404 + $0x4c] sm:$0xf]
      %v535 = vld [vmem:[%s404 + $0x50] sm:$0xf]
      %v536 = vld [vmem:[%s404 + $0x54] sm:$0xf]
      %v537 = vld [vmem:[%s404 + $0x58] sm:$0xf]
      %v538 = vld [vmem:[%s404 + $0x5c] sm:$0xf]
      %v539 = vld [vmem:[%s404 + $0x60] sm:$0xf]
      %v540 = vld [vmem:[%s404 + $0x64] sm:$0xf]
      %v541 = vld [vmem:[%s404 + $0x68] sm:$0xf]
      %v542 = vld [vmem:[%s404 + $0x6c] sm:$0xf]
      %v543 = vld [vmem:[%s404 + $0x70] sm:$0xf]
      %v544 = vld [vmem:[%s404 + $0x74] sm:$0xf]
      %v545 = vld [vmem:[%s404 + $0x78] sm:$0xf]
      %v546 = vld [vmem:[%s404 + $0x7c] sm:$0xf]
      %v547 = vld [vmem:[%s404 + $0x80] sm:$0xf]
      %v548 = vld [vmem:[%s404 + $0x84] sm:$0xf]
      %v549 = vld [vmem:[%s404 + $0x88] sm:$0xf]
      %v550 = vld [vmem:[%s404 + $0x8c] sm:$0xf]
      %v551 = vld [vmem:[%s404 + $0x90] sm:$0xf]
      %v552 = vld [vmem:[%s404 + $0x94] sm:$0xf]
      %v553 = vld [vmem:[%s404 + $0x98] sm:$0xf]
      %v554 = vld [vmem:[%s404 + $0x9c] sm:$0xf]
      %v555 = vld [vmem:[%s404 + $0xa0] sm:$0xf]
      %v556 = vld [vmem:[%s404 + $0xa4] sm:$0xf]
      %v557 = vld [vmem:[%s404 + $0xa8] sm:$0xf]
      %v558 = vld [vmem:[%s404 + $0xac] sm:$0xf]
      %v559 = vld [vmem:[%s404 + $0xb0] sm:$0xf]
      %v560 = vld [vmem:[%s404 + $0xb4] sm:$0xf]
      %v561 = vld [vmem:[%s404 + $0xb8] sm:$0xf]
      %v562 = vld [vmem:[%s404 + $0xbc] sm:$0xf]
      %v563 = vld [vmem:[%s404 + $0xc0] sm:$0xf]
      %v564 = vld [vmem:[%s404 + $0xc4] sm:$0xf]
      %v565 = vld [vmem:[%s404 + $0xc8] sm:$0xf]
      %v566 = vld [vmem:[%s404 + $0xcc] sm:$0xf]
      %v567 = vld [vmem:[%s404 + $0xd0] sm:$0xf]
      %v568 = vld [vmem:[%s404 + $0xd4] sm:$0xf]
      %v569 = vld [vmem:[%s404 + $0xd8] sm:$0xf]
      %v570 = vld [vmem:[%s404 + $0xdc] sm:$0xf]
      %v571 = vld [vmem:[%s404 + $0xe0] sm:$0xf]
      %v572 = vld [vmem:[%s404 + $0xe4] sm:$0xf]
      %v573 = vld [vmem:[%s404 + $0xe8] sm:$0xf]
      %v574 = vld [vmem:[%s404 + $0xec] sm:$0xf]
      %v575 = vld [vmem:[%s404 + $0xf0] sm:$0xf]
      %v576 = vld [vmem:[%s404 + $0xf4] sm:$0xf]
      %v577 = vld [vmem:[%s404 + $0xf8] sm:$0xf]
      %v578 = vld [vmem:[%s404 + $0xfc] sm:$0xf]
      %v579 = vld [vmem:[%s404 + $0x100] sm:$0xf]
      %v580 = vld [vmem:[%s404 + $0x104] sm:$0xf]
      %v581 = vld [vmem:[%s404 + $0x108] sm:$0xf]
      %v582 = vld [vmem:[%s404 + $0x10c] sm:$0xf]
      %v583 = vld [vmem:[%s404 + $0x110] sm:$0xf]
      %v584 = vld [vmem:[%s404 + $0x114] sm:$0xf]
      %v585 = vld [vmem:[%s404 + $0x118] sm:$0xf]
      %v586 = vld [vmem:[%s404 + $0x11c] sm:$0xf]
      %v587 = vld [vmem:[%s404 + $0x120] sm:$0xf]
      %v588 = vld [vmem:[%s404 + $0x124] sm:$0xf]
      %v589 = vld [vmem:[%s404 + $0x128] sm:$0xf]
      %v590 = vld [vmem:[%s404 + $0x12c] sm:$0xf]
      %v591 = vld [vmem:[%s404 + $0x130] sm:$0xf]
      %v592 = vld [vmem:[%s404 + $0x134] sm:$0xf]
      %v593 = vld [vmem:[%s404 + $0x138] sm:$0xf]
      %v594 = vld [vmem:[%s404 + $0x13c] sm:$0xf]
      %v595 = vld [vmem:[%s404 + $0x140] sm:$0xf]
      %v596 = vld [vmem:[%s404 + $0x144] sm:$0xf]
      %v597 = vld [vmem:[%s404 + $0x148] sm:$0xf]
      %v598 = vld [vmem:[%s404 + $0x14c] sm:$0xf]
      %v599 = vld [vmem:[%s404 + $0x150] sm:$0xf]
      %v600 = vld [vmem:[%s404 + $0x154] sm:$0xf]
      %v601 = vld [vmem:[%s404 + $0x158] sm:$0xf]
      %v602 = vld [vmem:[%s404 + $0x15c] sm:$0xf]
      %v603 = vld [vmem:[%s404 + $0x160] sm:$0xf]
      %v604 = vld [vmem:[%s404 + $0x164] sm:$0xf]
      %v605 = vld [vmem:[%s404 + $0x168] sm:$0xf]
      %v606 = vld [vmem:[%s404 + $0x16c] sm:$0xf]
      %v607 = vld [vmem:[%s404 + $0x170] sm:$0xf]
      %v608 = vld [vmem:[%s404 + $0x174] sm:$0xf]
      %v609 = vld [vmem:[%s404 + $0x178] sm:$0xf]
      %v610 = vld [vmem:[%s404 + $0x17c] sm:$0xf]
      %v611 = vld [vmem:[%s404 + $0x180] sm:$0xf]
      %v612 = vld [vmem:[%s404 + $0x184] sm:$0xf]
      %v613 = vld [vmem:[%s404 + $0x188] sm:$0xf]
      %v614 = vld [vmem:[%s404 + $0x18c] sm:$0xf]
      %v615 = vld [vmem:[%s404 + $0x190] sm:$0xf]
      %v616 = vld [vmem:[%s404 + $0x194] sm:$0xf]
      %v617 = vld [vmem:[%s404 + $0x198] sm:$0xf]
      %v618 = vld [vmem:[%s404 + $0x19c] sm:$0xf]
      %v619 = vld [vmem:[%s404 + $0x1a0] sm:$0xf]
      %v620 = vld [vmem:[%s404 + $0x1a4] sm:$0xf]
      %v621 = vld [vmem:[%s404 + $0x1a8] sm:$0xf]
      %v622 = vld [vmem:[%s404 + $0x1ac] sm:$0xf]
      %v623 = vld [vmem:[%s404 + $0x1b0] sm:$0xf]
      %v624 = vld [vmem:[%s404 + $0x1b4] sm:$0xf]
      %v625 = vld [vmem:[%s404 + $0x1b8] sm:$0xf]
      %v626 = vld [vmem:[%s404 + $0x1bc] sm:$0xf]
      %v627 = vld [vmem:[%s404 + $0x1c0] sm:$0xf]
      %v628 = vld [vmem:[%s404 + $0x1c4] sm:$0xf]
      %v629 = vld [vmem:[%s404 + $0x1c8] sm:$0xf]
      %v630 = vld [vmem:[%s404 + $0x1cc] sm:$0xf]
      %v631 = vld [vmem:[%s404 + $0x1d0] sm:$0xf]
      %v632 = vld [vmem:[%s404 + $0x1d4] sm:$0xf]
      %v633 = vld [vmem:[%s404 + $0x1d8] sm:$0xf]
      %v634 = vld [vmem:[%s404 + $0x1dc] sm:$0xf]
      %v635 = vld [vmem:[%s404 + $0x1e0] sm:$0xf]
      %v636 = vld [vmem:[%s404 + $0x1e4] sm:$0xf]
      %v637 = vld [vmem:[%s404 + $0x1e8] sm:$0xf]
      %v638 = vld [vmem:[%s404 + $0x1ec] sm:$0xf]
      %v639 = vld [vmem:[%s404 + $0x1f0] sm:$0xf]
      %v640 = vld [vmem:[%s404 + $0x1f4] sm:$0xf]
      %v641 = vld [vmem:[%s404 + $0x1f8] sm:$0xf]
      %v642 = vld [vmem:[%s404 + $0x1fc] sm:$0xf]
      %v643 = vld [vmem:[%s415] sm:$0xf]
      %v644 = vld [vmem:[%s415 + $0x4] sm:$0xf]
      %v645 = vld [vmem:[%s415 + $0x8] sm:$0xf]
      %v646 = vld [vmem:[%s415 + $0xc] sm:$0xf]
      %v647 = vld [vmem:[%s415 + $0x10] sm:$0xf]
      %v648 = vld [vmem:[%s415 + $0x14] sm:$0xf]
      %v649 = vld [vmem:[%s415 + $0x18] sm:$0xf]
      %v650 = vld [vmem:[%s415 + $0x1c] sm:$0xf]
      %v651 = vld [vmem:[%s415 + $0x20] sm:$0xf]
      %v652 = vld [vmem:[%s415 + $0x24] sm:$0xf]
      %v653 = vld [vmem:[%s415 + $0x28] sm:$0xf]
      %v654 = vld [vmem:[%s415 + $0x2c] sm:$0xf]
      %v655 = vld [vmem:[%s415 + $0x30] sm:$0xf]
      %v656 = vld [vmem:[%s415 + $0x34] sm:$0xf]
      %v657 = vld [vmem:[%s415 + $0x38] sm:$0xf]
      %v658 = vld [vmem:[%s415 + $0x3c] sm:$0xf]
      %v659 = vld [vmem:[%s415 + $0x40] sm:$0xf]
      %v660 = vld [vmem:[%s415 + $0x44] sm:$0xf]
      %v661 = vld [vmem:[%s415 + $0x48] sm:$0xf]
      %v662 = vld [vmem:[%s415 + $0x4c] sm:$0xf]
      %v663 = vld [vmem:[%s415 + $0x50] sm:$0xf]
      %v664 = vld [vmem:[%s415 + $0x54] sm:$0xf]
      %v665 = vld [vmem:[%s415 + $0x58] sm:$0xf]
      %v666 = vld [vmem:[%s415 + $0x5c] sm:$0xf]
      %v667 = vld [vmem:[%s415 + $0x60] sm:$0xf]
      %v668 = vld [vmem:[%s415 + $0x64] sm:$0xf]
      %v669 = vld [vmem:[%s415 + $0x68] sm:$0xf]
      %v670 = vld [vmem:[%s415 + $0x6c] sm:$0xf]
      %v671 = vld [vmem:[%s415 + $0x70] sm:$0xf]
      %v672 = vld [vmem:[%s415 + $0x74] sm:$0xf]
      %v673 = vld [vmem:[%s415 + $0x78] sm:$0xf]
      %v674 = vld [vmem:[%s415 + $0x7c] sm:$0xf]
      %v675 = vld [vmem:[%s415 + $0x80] sm:$0xf]
      %v676 = vld [vmem:[%s415 + $0x84] sm:$0xf]
      %v677 = vld [vmem:[%s415 + $0x88] sm:$0xf]
      %v678 = vld [vmem:[%s415 + $0x8c] sm:$0xf]
      %v679 = vld [vmem:[%s415 + $0x90] sm:$0xf]
      %v680 = vld [vmem:[%s415 + $0x94] sm:$0xf]
      %v681 = vld [vmem:[%s415 + $0x98] sm:$0xf]
      %v682 = vld [vmem:[%s415 + $0x9c] sm:$0xf]
      %v683 = vld [vmem:[%s415 + $0xa0] sm:$0xf]
      %v684 = vld [vmem:[%s415 + $0xa4] sm:$0xf]
      %v685 = vld [vmem:[%s415 + $0xa8] sm:$0xf]
      %v686 = vld [vmem:[%s415 + $0xac] sm:$0xf]
      %v687 = vld [vmem:[%s415 + $0xb0] sm:$0xf]
      %v688 = vld [vmem:[%s415 + $0xb4] sm:$0xf]
      %v689 = vld [vmem:[%s415 + $0xb8] sm:$0xf]
      %v690 = vld [vmem:[%s415 + $0xbc] sm:$0xf]
      %v691 = vld [vmem:[%s415 + $0xc0] sm:$0xf]
      %v692 = vld [vmem:[%s415 + $0xc4] sm:$0xf]
      %v693 = vld [vmem:[%s415 + $0xc8] sm:$0xf]
      %v694 = vld [vmem:[%s415 + $0xcc] sm:$0xf]
      %v695 = vld [vmem:[%s415 + $0xd0] sm:$0xf]
      %v696 = vld [vmem:[%s415 + $0xd4] sm:$0xf]
      %v697 = vld [vmem:[%s415 + $0xd8] sm:$0xf]
      %v698 = vld [vmem:[%s415 + $0xdc] sm:$0xf]
      %v699 = vld [vmem:[%s415 + $0xe0] sm:$0xf]
      %v700 = vld [vmem:[%s415 + $0xe4] sm:$0xf]
      %v701 = vld [vmem:[%s415 + $0xe8] sm:$0xf]
      %v702 = vld [vmem:[%s415 + $0xec] sm:$0xf]
      %v703 = vld [vmem:[%s415 + $0xf0] sm:$0xf]
      %v704 = vld [vmem:[%s415 + $0xf4] sm:$0xf]
      %v705 = vld [vmem:[%s415 + $0xf8] sm:$0xf]
      %v706 = vld [vmem:[%s415 + $0xfc] sm:$0xf]
      %v707 = vld [vmem:[%s415 + $0x100] sm:$0xf]
      %v708 = vld [vmem:[%s415 + $0x104] sm:$0xf]
      %v709 = vld [vmem:[%s415 + $0x108] sm:$0xf]
      %v710 = vld [vmem:[%s415 + $0x10c] sm:$0xf]
      %v711 = vld [vmem:[%s415 + $0x110] sm:$0xf]
      %v712 = vld [vmem:[%s415 + $0x114] sm:$0xf]
      %v713 = vld [vmem:[%s415 + $0x118] sm:$0xf]
      %v714 = vld [vmem:[%s415 + $0x11c] sm:$0xf]
      %v715 = vld [vmem:[%s415 + $0x120] sm:$0xf]
      %v716 = vld [vmem:[%s415 + $0x124] sm:$0xf]
      %v717 = vld [vmem:[%s415 + $0x128] sm:$0xf]
      %v718 = vld [vmem:[%s415 + $0x12c] sm:$0xf]
      %v719 = vld [vmem:[%s415 + $0x130] sm:$0xf]
      %v720 = vld [vmem:[%s415 + $0x134] sm:$0xf]
      %v721 = vld [vmem:[%s415 + $0x138] sm:$0xf]
      %v722 = vld [vmem:[%s415 + $0x13c] sm:$0xf]
      %v723 = vld [vmem:[%s415 + $0x140] sm:$0xf]
      %v724 = vld [vmem:[%s415 + $0x144] sm:$0xf]
      %v725 = vld [vmem:[%s415 + $0x148] sm:$0xf]
      %v726 = vld [vmem:[%s415 + $0x14c] sm:$0xf]
      %v727 = vld [vmem:[%s415 + $0x150] sm:$0xf]
      %v728 = vld [vmem:[%s415 + $0x154] sm:$0xf]
      %v729 = vld [vmem:[%s415 + $0x158] sm:$0xf]
      %v730 = vld [vmem:[%s415 + $0x15c] sm:$0xf]
      %v731 = vld [vmem:[%s415 + $0x160] sm:$0xf]
      %v732 = vld [vmem:[%s415 + $0x164] sm:$0xf]
      %v733 = vld [vmem:[%s415 + $0x168] sm:$0xf]
      %v734 = vld [vmem:[%s415 + $0x16c] sm:$0xf]
      %v735 = vld [vmem:[%s415 + $0x170] sm:$0xf]
      %v736 = vld [vmem:[%s415 + $0x174] sm:$0xf]
      %v737 = vld [vmem:[%s415 + $0x178] sm:$0xf]
      %v738 = vld [vmem:[%s415 + $0x17c] sm:$0xf]
      %v739 = vld [vmem:[%s415 + $0x180] sm:$0xf]
      %v740 = vld [vmem:[%s415 + $0x184] sm:$0xf]
      %v741 = vld [vmem:[%s415 + $0x188] sm:$0xf]
      %v742 = vld [vmem:[%s415 + $0x18c] sm:$0xf]
      %v743 = vld [vmem:[%s415 + $0x190] sm:$0xf]
      %v744 = vld [vmem:[%s415 + $0x194] sm:$0xf]
      %v745 = vld [vmem:[%s415 + $0x198] sm:$0xf]
      %v746 = vld [vmem:[%s415 + $0x19c] sm:$0xf]
      %v747 = vld [vmem:[%s415 + $0x1a0] sm:$0xf]
      %v748 = vld [vmem:[%s415 + $0x1a4] sm:$0xf]
      %v749 = vld [vmem:[%s415 + $0x1a8] sm:$0xf]
      %v750 = vld [vmem:[%s415 + $0x1ac] sm:$0xf]
      %v751 = vld [vmem:[%s415 + $0x1b0] sm:$0xf]
      %v752 = vld [vmem:[%s415 + $0x1b4] sm:$0xf]
      %v753 = vld [vmem:[%s415 + $0x1b8] sm:$0xf]
      %v754 = vld [vmem:[%s415 + $0x1bc] sm:$0xf]
      %v755 = vld [vmem:[%s415 + $0x1c0] sm:$0xf]
      %v756 = vld [vmem:[%s415 + $0x1c4] sm:$0xf]
      %v757 = vld [vmem:[%s415 + $0x1c8] sm:$0xf]
      %v758 = vld [vmem:[%s415 + $0x1cc] sm:$0xf]
      %v759 = vld [vmem:[%s415 + $0x1d0] sm:$0xf]
      %v760 = vld [vmem:[%s415 + $0x1d4] sm:$0xf]
      %v761 = vld [vmem:[%s415 + $0x1d8] sm:$0xf]
      %v762 = vld [vmem:[%s415 + $0x1dc] sm:$0xf]
      %v763 = vld [vmem:[%s415 + $0x1e0] sm:$0xf]
      %v764 = vld [vmem:[%s415 + $0x1e4] sm:$0xf]
      %v765 = vld [vmem:[%s415 + $0x1e8] sm:$0xf]
      %v766 = vld [vmem:[%s415 + $0x1ec] sm:$0xf]
      %v767 = vld [vmem:[%s415 + $0x1f0] sm:$0xf]
      %v768 = vld [vmem:[%s415 + $0x1f4] sm:$0xf]
      %v769 = vld [vmem:[%s415 + $0x1f8] sm:$0xf]
      %v770 = vld [vmem:[%s415 + $0x1fc] sm:$0xf]
      %v771 = vld [vmem:[%s423] sm:$0xff]
      %v772 = vld [vmem:[%s430] sm:$0xff]
      %v773 = vmul.bf16 %v451, 1048592000
      %v774 = vmul.bf16 %v452, 1048592000
      %v775 = vmul.bf16 %v453, 1048592000
      %v776 = vmul.bf16 %v454, 1048592000
      %v777 = vmul.bf16 %v455, 1048592000
      %v778 = vmul.bf16 %v456, 1048592000
      %v779 = vmul.bf16 %v457, 1048592000
      %v780 = vmul.bf16 %v458, 1048592000
      %v781 = vmul.bf16 %v459, 1048592000
      %v782 = vmul.bf16 %v460, 1048592000
      %v783 = vmul.bf16 %v461, 1048592000
      %v784 = vmul.bf16 %v462, 1048592000
      %v785 = vmul.bf16 %v463, 1048592000
      %v786 = vmul.bf16 %v464, 1048592000
      %v787 = vmul.bf16 %v465, 1048592000
      %v788 = vmul.bf16 %v466, 1048592000
      %v789 = vmul.bf16 %v467, 1048592000
      %v790 = vmul.bf16 %v468, 1048592000
      %v791 = vmul.bf16 %v469, 1048592000
      %v792 = vmul.bf16 %v470, 1048592000
      %v793 = vmul.bf16 %v471, 1048592000
      %v794 = vmul.bf16 %v472, 1048592000
      %v795 = vmul.bf16 %v473, 1048592000
      %v796 = vmul.bf16 %v474, 1048592000
      %v797 = vmul.bf16 %v475, 1048592000
      %v798 = vmul.bf16 %v476, 1048592000
      %v799 = vmul.bf16 %v477, 1048592000
      %v800 = vmul.bf16 %v478, 1048592000
      %v801 = vmul.bf16 %v479, 1048592000
      %v802 = vmul.bf16 %v480, 1048592000
      %v803 = vmul.bf16 %v481, 1048592000
      %v804 = vmul.bf16 %v482, 1048592000
      %v805 = vmul.bf16 %v483, 1048592000
      %v806 = vmul.bf16 %v484, 1048592000
      %v807 = vmul.bf16 %v485, 1048592000
      %v808 = vmul.bf16 %v486, 1048592000
      %v809 = vmul.bf16 %v487, 1048592000
      %v810 = vmul.bf16 %v488, 1048592000
      %v811 = vmul.bf16 %v489, 1048592000
      %v812 = vmul.bf16 %v490, 1048592000
      %v813 = vmul.bf16 %v491, 1048592000
      %v814 = vmul.bf16 %v492, 1048592000
      %v815 = vmul.bf16 %v493, 1048592000
      %v816 = vmul.bf16 %v494, 1048592000
      %v817 = vmul.bf16 %v495, 1048592000
      %v818 = vmul.bf16 %v496, 1048592000
      %v819 = vmul.bf16 %v497, 1048592000
      %v820 = vmul.bf16 %v498, 1048592000
      %v821 = vmul.bf16 %v499, 1048592000
      %v822 = vmul.bf16 %v500, 1048592000
      %v823 = vmul.bf16 %v501, 1048592000
      %v824 = vmul.bf16 %v502, 1048592000
      %v825 = vmul.bf16 %v503, 1048592000
      %v826 = vmul.bf16 %v504, 1048592000
      %v827 = vmul.bf16 %v505, 1048592000
      %v828 = vmul.bf16 %v506, 1048592000
      %v829 = vmul.bf16 %v507, 1048592000
      %v830 = vmul.bf16 %v508, 1048592000
      %v831 = vmul.bf16 %v509, 1048592000
      %v832 = vmul.bf16 %v510, 1048592000
      %v833 = vmul.bf16 %v511, 1048592000
      %v834 = vmul.bf16 %v512, 1048592000
      %v835 = vmul.bf16 %v513, 1048592000
      %v836 = vmul.bf16 %v514, 1048592000
      %v845 = vunpack.c.l.b16 %v773
      %v846 = vunpack.c.l.b16 %v774
      %v847 = vunpack.c.l.b16 %v775
      %v848 = vunpack.c.l.b16 %v776
      %v849 = vunpack.c.l.b16 %v777
      %v850 = vunpack.c.l.b16 %v778
      %v851 = vunpack.c.l.b16 %v779
      %v852 = vunpack.c.l.b16 %v780
      %v853 = vpack.c.b16 %v846, %v845
      %v854 = vpack.c.b16 %v848, %v847
      %v855 = vpack.c.b16 %v850, %v849
      %v856 = vpack.c.b16 %v852, %v851
      %v873 = vunpack.c.l.b16 %v515
      %v874 = vunpack.c.l.b16 %v516
      %v875 = vunpack.c.l.b16 %v517
      %v876 = vunpack.c.l.b16 %v518
      %v877 = vunpack.c.l.b16 %v519
      %v878 = vunpack.c.l.b16 %v520
      %v879 = vunpack.c.l.b16 %v521
      %v880 = vunpack.c.l.b16 %v522
      %v881 = vunpack.c.l.b16 %v523
      %v882 = vunpack.c.l.b16 %v524
      %v883 = vunpack.c.l.b16 %v525
      %v884 = vunpack.c.l.b16 %v526
      %v885 = vunpack.c.l.b16 %v527
      %v886 = vunpack.c.l.b16 %v528
      %v887 = vunpack.c.l.b16 %v529
      %v888 = vunpack.c.l.b16 %v530
      %v889 = vpack.c.b16 %v874, %v873
      %v890 = vpack.c.b16 %v876, %v875
      %v891 = vpack.c.b16 %v878, %v877
      %v892 = vpack.c.b16 %v880, %v879
      %v893 = vpack.c.b16 %v882, %v881
      %v894 = vpack.c.b16 %v884, %v883
      %v895 = vpack.c.b16 %v886, %v885
      %v896 = vpack.c.b16 %v888, %v887
      %vm897 = vcmask 130048
      %v899 = vsel %vm897, %v853, 0
      %v902 = vsel %vm897, %v854, 0
      %v905 = vsel %vm897, %v855, 0
      %v908 = vsel %vm897, %v856, 0
      %v911 = vsel %vm897, %v889, 0
      %v914 = vsel %vm897, %v890, 0
      %v917 = vsel %vm897, %v891, 0
      %v920 = vsel %vm897, %v892, 0
      %v923 = vsel %vm897, %v893, 0
      %v926 = vsel %vm897, %v894, 0
      %v929 = vsel %vm897, %v895, 0
      %v932 = vsel %vm897, %v896, 0
      %934 = vmatprep.subr.bf16.mxu0 0
      %935 = vmatpush1.bf16.xpose.msra.mxu0 %v911
      %936 = vmatprep.subr.bf16.mxu0 0
      %937 = vmatpush1.bf16.xpose.msra.mxu0 %v914
      %938 = vmatprep.subr.bf16.mxu0 0
      %939 = vmatpush1.bf16.xpose.msra.mxu0 %v917
      %940 = vmatprep.subr.bf16.mxu0 0
      %941 = vmatpush1.bf16.xpose.msra.mxu0 %v920
      %942 = vmatprep.subr.bf16.mxu0 0
      %943 = vmatpush1.bf16.xpose.msra.mxu0 %v923
      %944 = vmatprep.subr.bf16.mxu0 0
      %945 = vmatpush1.bf16.xpose.msra.mxu0 %v926
      %946 = vmatprep.subr.bf16.mxu0 0
      %947 = vmatpush1.bf16.xpose.msra.mxu0 %v929
      %948 = vmatprep.subr.bf16.mxu0 0
      %949 = vmatpush1.bf16.xpose.msra.mxu0 %v932
      %950 = vmatprep.subr.bf16.mxu0 0
      %951 = vmatpush1.bf16.xpose.msra.mxu0 0
      %952 = vmatprep.subr.bf16.mxu0 0
      %953 = vmatpush1.bf16.xpose.msra.mxu0 0
      %954 = vmatprep.subr.bf16.mxu0 0
      %955 = vmatpush1.bf16.xpose.msra.mxu0 0
      %956 = vmatprep.subr.bf16.mxu0 0
      %957 = vmatpush1.bf16.xpose.msra.mxu0 0
      %958 = vmatprep.subr.bf16.mxu0 0
      %959 = vmatpush1.bf16.xpose.msra.mxu0 0
      %960 = vmatprep.subr.bf16.mxu0 0
      %961 = vmatpush1.bf16.xpose.msra.mxu0 0
      %962 = vmatprep.subr.bf16.mxu0 0
      %963 = vmatpush1.bf16.xpose.msra.mxu0 0
      %964 = vmatprep.subr.bf16.mxu0 0
      %965 = vmatpush1.bf16.xpose.msra.mxu0 0
      %966 = vmatprep.mubr.bf16.mxu0 0
      %967 = vmatmul.mubr.bf16.gmra.mrb[0].mxu0 %v899
      %v968 = vpop.f32.mrb[0].mxu0
      %v969 = vadd.f32 0.0, %v968
      %v970 = vpop.f32.mrb[0].mxu0
      %v971 = vpop.f32.mrb[0].mxu0
      %v972 = vadd.f32 0.0, %v971
      %v973 = vpop.f32.mrb[0].mxu0
      %974 = vmatprep.mubr.bf16.mxu0 0
      %975 = vmatmul.mubr.bf16.gmra.mrb[0].mxu0 %v902
      %v976 = vpop.f32.mrb[0].mxu0
      %v977 = vadd.f32 0.0, %v976
      %v978 = vpop.f32.mrb[0].mxu0
      %v979 = vpop.f32.mrb[0].mxu0
      %v980 = vadd.f32 0.0, %v979
      %v981 = vpop.f32.mrb[0].mxu0
      %982 = vmatprep.mubr.bf16.mxu0 0
      %983 = vmatmul.mubr.bf16.gmra.mrb[0].mxu0 %v905
      %v984 = vpop.f32.mrb[0].mxu0
      %v985 = vadd.f32 0.0, %v984
      %v986 = vpop.f32.mrb[0].mxu0
      %v987 = vpop.f32.mrb[0].mxu0
      %v988 = vadd.f32 0.0, %v987
      %v989 = vpop.f32.mrb[0].mxu0
      %990 = vmatprep.mubr.bf16.mxu0 0
      %991 = vmatmul.mubr.bf16.gmra.mrb[0].mxu0 %v908
      %v992 = vpop.f32.mrb[0].mxu0
      %v993 = vadd.f32 0.0, %v992
      %v994 = vpop.f32.mrb[0].mxu0
      %v995 = vpop.f32.mrb[0].mxu0
      %v996 = vadd.f32 0.0, %v995
      %v997 = vpop.f32.mrb[0].mxu0
      %998 = vdwg.mxu0
      %v1007 = vunpack.c.l.b16 %v781
      %v1008 = vunpack.c.l.b16 %v782
      %v1009 = vunpack.c.l.b16 %v783
      %v1010 = vunpack.c.l.b16 %v784
      %v1011 = vunpack.c.l.b16 %v785
      %v1012 = vunpack.c.l.b16 %v786
      %v1013 = vunpack.c.l.b16 %v787
      %v1014 = vunpack.c.l.b16 %v788
      %v1015 = vpack.c.b16 %v1008, %v1007
      %v1016 = vpack.c.b16 %v1010, %v1009
      %v1017 = vpack.c.b16 %v1012, %v1011
      %v1018 = vpack.c.b16 %v1014, %v1013
      %v1035 = vunpack.c.l.b16 %v531
      %v1036 = vunpack.c.l.b16 %v532
      %v1037 = vunpack.c.l.b16 %v533
      %v1038 = vunpack.c.l.b16 %v534
      %v1039 = vunpack.c.l.b16 %v535
      %v1040 = vunpack.c.l.b16 %v536
      %v1041 = vunpack.c.l.b16 %v537
      %v1042 = vunpack.c.l.b16 %v538
      %v1043 = vunpack.c.l.b16 %v539
      %v1044 = vunpack.c.l.b16 %v540
      %v1045 = vunpack.c.l.b16 %v541
      %v1046 = vunpack.c.l.b16 %v542
      %v1047 = vunpack.c.l.b16 %v543
      %v1048 = vunpack.c.l.b16 %v544
      %v1049 = vunpack.c.l.b16 %v545
      %v1050 = vunpack.c.l.b16 %v546
      %v1051 = vpack.c.b16 %v1036, %v1035
      %v1052 = vpack.c.b16 %v1038, %v1037
      %v1053 = vpack.c.b16 %v1040, %v1039
      %v1054 = vpack.c.b16 %v1042, %v1041
      %v1055 = vpack.c.b16 %v1044, %v1043
      %v1056 = vpack.c.b16 %v1046, %v1045
      %v1057 = vpack.c.b16 %v1048, %v1047
      %v1058 = vpack.c.b16 %v1050, %v1049
      %v1060 = vsel %vm897, %v1015, 0
      %v1063 = vsel %vm897, %v1016, 0
      %v1066 = vsel %vm897, %v1017, 0
      %v1069 = vsel %vm897, %v1018, 0
      %v1072 = vsel %vm897, %v1051, 0
      %v1075 = vsel %vm897, %v1052, 0
      %v1078 = vsel %vm897, %v1053, 0
      %v1081 = vsel %vm897, %v1054, 0
      %v1084 = vsel %vm897, %v1055, 0
      %v1087 = vsel %vm897, %v1056, 0
      %v1090 = vsel %vm897, %v1057, 0
      %v1093 = vsel %vm897, %v1058, 0
      %1095 = vmatprep.subr.bf16.mxu0 0
      %1096 = vmatpush1.bf16.xpose.msra.mxu0 %v1072
      %1097 = vmatprep.subr.bf16.mxu0 0
      %1098 = vmatpush1.bf16.xpose.msra.mxu0 %v1075
      %1099 = vmatprep.subr.bf16.mxu0 0
      %1100 = vmatpush1.bf16.xpose.msra.mxu0 %v1078
      %1101 = vmatprep.subr.bf16.mxu0 0
      %1102 = vmatpush1.bf16.xpose.msra.mxu0 %v1081
      %1103 = vmatprep.subr.bf16.mxu0 0
      %1104 = vmatpush1.bf16.xpose.msra.mxu0 %v1084
      %1105 = vmatprep.subr.bf16.mxu0 0
      %1106 = vmatpush1.bf16.xpose.msra.mxu0 %v1087
      %1107 = vmatprep.subr.bf16.mxu0 0
      %1108 = vmatpush1.bf16.xpose.msra.mxu0 %v1090
      %1109 = vmatprep.subr.bf16.mxu0 0
      %1110 = vmatpush1.bf16.xpose.msra.mxu0 %v1093
      %1111 = vmatprep.subr.bf16.mxu0 0
      %1112 = vmatpush1.bf16.xpose.msra.mxu0 0
      %1113 = vmatprep.subr.bf16.mxu0 0
      %1114 = vmatpush1.bf16.xpose.msra.mxu0 0
      %1115 = vmatprep.subr.bf16.mxu0 0
      %1116 = vmatpush1.bf16.xpose.msra.mxu0 0
      %1117 = vmatprep.subr.bf16.mxu0 0
      %1118 = vmatpush1.bf16.xpose.msra.mxu0 0
      %1119 = vmatprep.subr.bf16.mxu0 0
      %1120 = vmatpush1.bf16.xpose.msra.mxu0 0
      %1121 = vmatprep.subr.bf16.mxu0 0
      %1122 = vmatpush1.bf16.xpose.msra.mxu0 0
      %1123 = vmatprep.subr.bf16.mxu0 0
      %1124 = vmatpush1.bf16.xpose.msra.mxu0 0
      %1125 = vmatprep.subr.bf16.mxu0 0
      %1126 = vmatpush1.bf16.xpose.msra.mxu0 0
      %1127 = vmatprep.mubr.bf16.mxu0 0
      %1128 = vmatmul.mubr.bf16.gmra.mrb[0].mxu0 %v1060
      %v1129 = vpop.f32.mrb[0].mxu0
      %v1130 = vadd.f32 0.0, %v1129
      %v1131 = vpop.f32.mrb[0].mxu0
      %v1132 = vpop.f32.mrb[0].mxu0
      %v1133 = vadd.f32 0.0, %v1132
      %v1134 = vpop.f32.mrb[0].mxu0
      %1135 = vmatprep.mubr.bf16.mxu0 0
      %1136 = vmatmul.mubr.bf16.gmra.mrb[0].mxu0 %v1063
      %v1137 = vpop.f32.mrb[0].mxu0
      %v1138 = vadd.f32 0.0, %v1137
      %v1139 = vpop.f32.mrb[0].mxu0
      %v1140 = vpop.f32.mrb[0].mxu0
      %v1141 = vadd.f32 0.0, %v1140
      %v1142 = vpop.f32.mrb[0].mxu0
      %1143 = vmatprep.mubr.bf16.mxu0 0
      %1144 = vmatmul.mubr.bf16.gmra.mrb[0].mxu0 %v1066
      %v1145 = vpop.f32.mrb[0].mxu0
      %v1146 = vadd.f32 0.0, %v1145
      %v1147 = vpop.f32.mrb[0].mxu0
      %v1148 = vpop.f32.mrb[0].mxu0
      %v1149 = vadd.f32 0.0, %v1148
      %v1150 = vpop.f32.mrb[0].mxu0
      %1151 = vmatprep.mubr.bf16.mxu0 0
      %1152 = vmatmul.mubr.bf16.gmra.mrb[0].mxu0 %v1069
      %v1153 = vpop.f32.mrb[0].mxu0
      %v1154 = vadd.f32 0.0, %v1153
      %v1155 = vpop.f32.mrb[0].mxu0
      %v1156 = vpop.f32.mrb[0].mxu0
      %v1157 = vadd.f32 0.0, %v1156
      %v1158 = vpop.f32.mrb[0].mxu0
      %1159 = vdwg.mxu0
      %v1168 = vunpack.c.l.b16 %v789
      %v1169 = vunpack.c.l.b16 %v790
      %v1170 = vunpack.c.l.b16 %v791
      %v1171 = vunpack.c.l.b16 %v792
      %v1172 = vunpack.c.l.b16 %v793
      %v1173 = vunpack.c.l.b16 %v794
      %v1174 = vunpack.c.l.b16 %v795
      %v1175 = vunpack.c.l.b16 %v796
      %v1176 = vpack.c.b16 %v1169, %v1168
      %v1177 = vpack.c.b16 %v1171, %v1170
      %v1178 = vpack.c.b16 %v1173, %v1172
      %v1179 = vpack.c.b16 %v1175, %v1174
      %v1196 = vunpack.c.l.b16 %v547
      %v1197 = vunpack.c.l.b16 %v548
      %v1198 = vunpack.c.l.b16 %v549
      %v1199 = vunpack.c.l.b16 %v550
      %v1200 = vunpack.c.l.b16 %v551
      %v1201 = vunpack.c.l.b16 %v552
      %v1202 = vunpack.c.l.b16 %v553
      %v1203 = vunpack.c.l.b16 %v554
      %v1204 = vunpack.c.l.b16 %v555
      %v1205 = vunpack.c.l.b16 %v556
      %v1206 = vunpack.c.l.b16 %v557
      %v1207 = vunpack.c.l.b16 %v558
      %v1208 = vunpack.c.l.b16 %v559
      %v1209 = vunpack.c.l.b16 %v560
      %v1210 = vunpack.c.l.b16 %v561
      %v1211 = vunpack.c.l.b16 %v562
      %v1212 = vpack.c.b16 %v1197, %v1196
      %v1213 = vpack.c.b16 %v1199, %v1198
      %v1214 = vpack.c.b16 %v1201, %v1200
      %v1215 = vpack.c.b16 %v1203, %v1202
      %v1216 = vpack.c.b16 %v1205, %v1204
      %v1217 = vpack.c.b16 %v1207, %v1206
      %v1218 = vpack.c.b16 %v1209, %v1208
      %v1219 = vpack.c.b16 %v1211, %v1210
      %v1221 = vsel %vm897, %v1176, 0
      %v1224 = vsel %vm897, %v1177, 0
      %v1227 = vsel %vm897, %v1178, 0
      %v1230 = vsel %vm897, %v1179, 0
      %v1233 = vsel %vm897, %v1212, 0
      %v1236 = vsel %vm897, %v1213, 0
      %v1239 = vsel %vm897, %v1214, 0
      %v1242 = vsel %vm897, %v1215, 0
      %v1245 = vsel %vm897, %v1216, 0
      %v1248 = vsel %vm897, %v1217, 0
      %v1251 = vsel %vm897, %v1218, 0
      %v1254 = vsel %vm897, %v1219, 0
      %1256 = vmatprep.subr.bf16.mxu0 0
      %1257 = vmatpush1.bf16.xpose.msra.mxu0 %v1233
      %1258 = vmatprep.subr.bf16.mxu0 0
      %1259 = vmatpush1.bf16.xpose.msra.mxu0 %v1236
      %1260 = vmatprep.subr.bf16.mxu0 0
      %1261 = vmatpush1.bf16.xpose.msra.mxu0 %v1239
      %1262 = vmatprep.subr.bf16.mxu0 0
      %1263 = vmatpush1.bf16.xpose.msra.mxu0 %v1242
      %1264 = vmatprep.subr.bf16.mxu0 0
      %1265 = vmatpush1.bf16.xpose.msra.mxu0 %v1245
      %1266 = vmatprep.subr.bf16.mxu0 0
      %1267 = vmatpush1.bf16.xpose.msra.mxu0 %v1248
      %1268 = vmatprep.subr.bf16.mxu0 0
      %1269 = vmatpush1.bf16.xpose.msra.mxu0 %v1251
      %1270 = vmatprep.subr.bf16.mxu0 0
      %1271 = vmatpush1.bf16.xpose.msra.mxu0 %v1254
      %1272 = vmatprep.subr.bf16.mxu0 0
      %1273 = vmatpush1.bf16.xpose.msra.mxu0 0
      %1274 = vmatprep.subr.bf16.mxu0 0
      %1275 = vmatpush1.bf16.xpose.msra.mxu0 0
      %1276 = vmatprep.subr.bf16.mxu0 0
      %1277 = vmatpush1.bf16.xpose.msra.mxu0 0
      %1278 = vmatprep.subr.bf16.mxu0 0
      %1279 = vmatpush1.bf16.xpose.msra.mxu0 0
      %1280 = vmatprep.subr.bf16.mxu0 0
      %1281 = vmatpush1.bf16.xpose.msra.mxu0 0
      %1282 = vmatprep.subr.bf16.mxu0 0
      %1283 = vmatpush1.bf16.xpose.msra.mxu0 0
      %1284 = vmatprep.subr.bf16.mxu0 0
      %1285 = vmatpush1.bf16.xpose.msra.mxu0 0
      %1286 = vmatprep.subr.bf16.mxu0 0
      %1287 = vmatpush1.bf16.xpose.msra.mxu0 0
      %1288 = vmatprep.mubr.bf16.mxu0 0
      %1289 = vmatmul.mubr.bf16.gmra.mrb[0].mxu0 %v1221
      %v1290 = vpop.f32.mrb[0].mxu0
      %v1291 = vadd.f32 0.0, %v1290
      %v1292 = vpop.f32.mrb[0].mxu0
      %v1293 = vpop.f32.mrb[0].mxu0
      %v1294 = vadd.f32 0.0, %v1293
      %v1295 = vpop.f32.mrb[0].mxu0
      %1296 = vmatprep.mubr.bf16.mxu0 0
      %1297 = vmatmul.mubr.bf16.gmra.mrb[0].mxu0 %v1224
      %v1298 = vpop.f32.mrb[0].mxu0
      %v1299 = vadd.f32 0.0, %v1298
      %v1300 = vpop.f32.mrb[0].mxu0
      %v1301 = vpop.f32.mrb[0].mxu0
      %v1302 = vadd.f32 0.0, %v1301
      %v1303 = vpop.f32.mrb[0].mxu0
      %1304 = vmatprep.mubr.bf16.mxu0 0
      %1305 = vmatmul.mubr.bf16.gmra.mrb[0].mxu0 %v1227
      %v1306 = vpop.f32.mrb[0].mxu0
      %v1307 = vadd.f32 0.0, %v1306
      %v1308 = vpop.f32.mrb[0].mxu0
      %v1309 = vpop.f32.mrb[0].mxu0
      %v1310 = vadd.f32 0.0, %v1309
      %v1311 = vpop.f32.mrb[0].mxu0
      %1312 = vmatprep.mubr.bf16.mxu0 0
      %1313 = vmatmul.mubr.bf16.gmra.mrb[0].mxu0 %v1230
      %v1314 = vpop.f32.mrb[0].mxu0
      %v1315 = vadd.f32 0.0, %v1314
      %v1316 = vpop.f32.mrb[0].mxu0
      %v1317 = vpop.f32.mrb[0].mxu0
      %v1318 = vadd.f32 0.0, %v1317
      %v1319 = vpop.f32.mrb[0].mxu0
      %1320 = vdwg.mxu0
      %v1329 = vunpack.c.l.b16 %v797
      %v1330 = vunpack.c.l.b16 %v798
      %v1331 = vunpack.c.l.b16 %v799
      %v1332 = vunpack.c.l.b16 %v800
      %v1333 = vunpack.c.l.b16 %v801
      %v1334 = vunpack.c.l.b16 %v802
      %v1335 = vunpack.c.l.b16 %v803
      %v1336 = vunpack.c.l.b16 %v804
      %v1337 = vpack.c.b16 %v1330, %v1329
      %v1338 = vpack.c.b16 %v1332, %v1331
      %v1339 = vpack.c.b16 %v1334, %v1333
      %v1340 = vpack.c.b16 %v1336, %v1335
      %v1357 = vunpack.c.l.b16 %v563
      %v1358 = vunpack.c.l.b16 %v564
      %v1359 = vunpack.c.l.b16 %v565
      %v1360 = vunpack.c.l.b16 %v566
      %v1361 = vunpack.c.l.b16 %v567
      %v1362 = vunpack.c.l.b16 %v568
      %v1363 = vunpack.c.l.b16 %v569
      %v1364 = vunpack.c.l.b16 %v570
      %v1365 = vunpack.c.l.b16 %v571
      %v1366 = vunpack.c.l.b16 %v572
      %v1367 = vunpack.c.l.b16 %v573
      %v1368 = vunpack.c.l.b16 %v574
      %v1369 = vunpack.c.l.b16 %v575
      %v1370 = vunpack.c.l.b16 %v576
      %v1371 = vunpack.c.l.b16 %v577
      %v1372 = vunpack.c.l.b16 %v578
      %v1373 = vpack.c.b16 %v1358, %v1357
      %v1374 = vpack.c.b16 %v1360, %v1359
      %v1375 = vpack.c.b16 %v1362, %v1361
      %v1376 = vpack.c.b16 %v1364, %v1363
      %v1377 = vpack.c.b16 %v1366, %v1365
      %v1378 = vpack.c.b16 %v1368, %v1367
      %v1379 = vpack.c.b16 %v1370, %v1369
      %v1380 = vpack.c.b16 %v1372, %v1371
      %v1382 = vsel %vm897, %v1337, 0
      %v1385 = vsel %vm897, %v1338, 0
      %v1388 = vsel %vm897, %v1339, 0
      %v1391 = vsel %vm897, %v1340, 0
      %v1394 = vsel %vm897, %v1373, 0
      %v1397 = vsel %vm897, %v1374, 0
      %v1400 = vsel %vm897, %v1375, 0
      %v1403 = vsel %vm897, %v1376, 0
      %v1406 = vsel %vm897, %v1377, 0
      %v1409 = vsel %vm897, %v1378, 0
      %v1412 = vsel %vm897, %v1379, 0
      %v1415 = vsel %vm897, %v1380, 0
      %1417 = vmatprep.subr.bf16.mxu0 0
      %1418 = vmatpush1.bf16.xpose.msra.mxu0 %v1394
      %1419 = vmatprep.subr.bf16.mxu0 0
      %1420 = vmatpush1.bf16.xpose.msra.mxu0 %v1397
      %1421 = vmatprep.subr.bf16.mxu0 0
      %1422 = vmatpush1.bf16.xpose.msra.mxu0 %v1400
      %1423 = vmatprep.subr.bf16.mxu0 0
      %1424 = vmatpush1.bf16.xpose.msra.mxu0 %v1403
      %1425 = vmatprep.subr.bf16.mxu0 0
      %1426 = vmatpush1.bf16.xpose.msra.mxu0 %v1406
      %1427 = vmatprep.subr.bf16.mxu0 0
      %1428 = vmatpush1.bf16.xpose.msra.mxu0 %v1409
      %1429 = vmatprep.subr.bf16.mxu0 0
      %1430 = vmatpush1.bf16.xpose.msra.mxu0 %v1412
      %1431 = vmatprep.subr.bf16.mxu0 0
      %1432 = vmatpush1.bf16.xpose.msra.mxu0 %v1415
      %1433 = vmatprep.subr.bf16.mxu0 0
      %1434 = vmatpush1.bf16.xpose.msra.mxu0 0
      %1435 = vmatprep.subr.bf16.mxu0 0
      %1436 = vmatpush1.bf16.xpose.msra.mxu0 0
      %1437 = vmatprep.subr.bf16.mxu0 0
      %1438 = vmatpush1.bf16.xpose.msra.mxu0 0
      %1439 = vmatprep.subr.bf16.mxu0 0
      %1440 = vmatpush1.bf16.xpose.msra.mxu0 0
      %1441 = vmatprep.subr.bf16.mxu0 0
      %1442 = vmatpush1.bf16.xpose.msra.mxu0 0
      %1443 = vmatprep.subr.bf16.mxu0 0
      %1444 = vmatpush1.bf16.xpose.msra.mxu0 0
      %1445 = vmatprep.subr.bf16.mxu0 0
      %1446 = vmatpush1.bf16.xpose.msra.mxu0 0
      %1447 = vmatprep.subr.bf16.mxu0 0
      %1448 = vmatpush1.bf16.xpose.msra.mxu0 0
      %1449 = vmatprep.mubr.bf16.mxu0 0
      %1450 = vmatmul.mubr.bf16.gmra.mrb[0].mxu0 %v1382
      %v1451 = vpop.f32.mrb[0].mxu0
      %v1452 = vadd.f32 0.0, %v1451
      %v1453 = vpop.f32.mrb[0].mxu0
      %v1454 = vpop.f32.mrb[0].mxu0
      %v1455 = vadd.f32 0.0, %v1454
      %v1456 = vpop.f32.mrb[0].mxu0
      %1457 = vmatprep.mubr.bf16.mxu0 0
      %1458 = vmatmul.mubr.bf16.gmra.mrb[0].mxu0 %v1385
      %v1459 = vpop.f32.mrb[0].mxu0
      %v1460 = vadd.f32 0.0, %v1459
      %v1461 = vpop.f32.mrb[0].mxu0
      %v1462 = vpop.f32.mrb[0].mxu0
      %v1463 = vadd.f32 0.0, %v1462
      %v1464 = vpop.f32.mrb[0].mxu0
      %1465 = vmatprep.mubr.bf16.mxu0 0
      %1466 = vmatmul.mubr.bf16.gmra.mrb[0].mxu0 %v1388
      %v1467 = vpop.f32.mrb[0].mxu0
      %v1468 = vadd.f32 0.0, %v1467
      %v1469 = vpop.f32.mrb[0].mxu0
      %v1470 = vpop.f32.mrb[0].mxu0
      %v1471 = vadd.f32 0.0, %v1470
      %v1472 = vpop.f32.mrb[0].mxu0
      %1473 = vmatprep.mubr.bf16.mxu0 0
      %1474 = vmatmul.mubr.bf16.gmra.mrb[0].mxu0 %v1391
      %v1475 = vpop.f32.mrb[0].mxu0
      %v1476 = vadd.f32 0.0, %v1475
      %v1477 = vpop.f32.mrb[0].mxu0
      %v1478 = vpop.f32.mrb[0].mxu0
      %v1479 = vadd.f32 0.0, %v1478
      %v1480 = vpop.f32.mrb[0].mxu0
      %1481 = vdwg.mxu0
      %v1490 = vunpack.c.l.b16 %v805
      %v1491 = vunpack.c.l.b16 %v806
      %v1492 = vunpack.c.l.b16 %v807
      %v1493 = vunpack.c.l.b16 %v808
      %v1494 = vunpack.c.l.b16 %v809
      %v1495 = vunpack.c.l.b16 %v810
      %v1496 = vunpack.c.l.b16 %v811
      %v1497 = vunpack.c.l.b16 %v812
      %v1498 = vpack.c.b16 %v1491, %v1490
      %v1499 = vpack.c.b16 %v1493, %v1492
      %v1500 = vpack.c.b16 %v1495, %v1494
      %v1501 = vpack.c.b16 %v1497, %v1496
      %v1518 = vunpack.c.l.b16 %v579
      %v1519 = vunpack.c.l.b16 %v580
      %v1520 = vunpack.c.l.b16 %v581
      %v1521 = vunpack.c.l.b16 %v582
      %v1522 = vunpack.c.l.b16 %v583
      %v1523 = vunpack.c.l.b16 %v584
      %v1524 = vunpack.c.l.b16 %v585
      %v1525 = vunpack.c.l.b16 %v586
      %v1526 = vunpack.c.l.b16 %v587
      %v1527 = vunpack.c.l.b16 %v588
      %v1528 = vunpack.c.l.b16 %v589
      %v1529 = vunpack.c.l.b16 %v590
      %v1530 = vunpack.c.l.b16 %v591
      %v1531 = vunpack.c.l.b16 %v592
      %v1532 = vunpack.c.l.b16 %v593
      %v1533 = vunpack.c.l.b16 %v594
      %v1534 = vpack.c.b16 %v1519, %v1518
      %v1535 = vpack.c.b16 %v1521, %v1520
      %v1536 = vpack.c.b16 %v1523, %v1522
      %v1537 = vpack.c.b16 %v1525, %v1524
      %v1538 = vpack.c.b16 %v1527, %v1526
      %v1539 = vpack.c.b16 %v1529, %v1528
      %v1540 = vpack.c.b16 %v1531, %v1530
      %v1541 = vpack.c.b16 %v1533, %v1532
      %v1543 = vsel %vm897, %v1498, 0
      %v1546 = vsel %vm897, %v1499, 0
      %v1549 = vsel %vm897, %v1500, 0
      %v1552 = vsel %vm897, %v1501, 0
      %v1555 = vsel %vm897, %v1534, 0
      %v1558 = vsel %vm897, %v1535, 0
      %v1561 = vsel %vm897, %v1536, 0
      %v1564 = vsel %vm897, %v1537, 0
      %v1567 = vsel %vm897, %v1538, 0
      %v1570 = vsel %vm897, %v1539, 0
      %v1573 = vsel %vm897, %v1540, 0
      %v1576 = vsel %vm897, %v1541, 0
      %1578 = vmatprep.subr.bf16.mxu0 0
      %1579 = vmatpush1.bf16.xpose.msra.mxu0 %v1555
      %1580 = vmatprep.subr.bf16.mxu0 0
      %1581 = vmatpush1.bf16.xpose.msra.mxu0 %v1558
      %1582 = vmatprep.subr.bf16.mxu0 0
      %1583 = vmatpush1.bf16.xpose.msra.mxu0 %v1561
      %1584 = vmatprep.subr.bf16.mxu0 0
      %1585 = vmatpush1.bf16.xpose.msra.mxu0 %v1564
      %1586 = vmatprep.subr.bf16.mxu0 0
      %1587 = vmatpush1.bf16.xpose.msra.mxu0 %v1567
      %1588 = vmatprep.subr.bf16.mxu0 0
      %1589 = vmatpush1.bf16.xpose.msra.mxu0 %v1570
      %1590 = vmatprep.subr.bf16.mxu0 0
      %1591 = vmatpush1.bf16.xpose.msra.mxu0 %v1573
      %1592 = vmatprep.subr.bf16.mxu0 0
      %1593 = vmatpush1.bf16.xpose.msra.mxu0 %v1576
      %1594 = vmatprep.subr.bf16.mxu0 0
      %1595 = vmatpush1.bf16.xpose.msra.mxu0 0
      %1596 = vmatprep.subr.bf16.mxu0 0
      %1597 = vmatpush1.bf16.xpose.msra.mxu0 0
      %1598 = vmatprep.subr.bf16.mxu0 0
      %1599 = vmatpush1.bf16.xpose.msra.mxu0 0
      %1600 = vmatprep.subr.bf16.mxu0 0
      %1601 = vmatpush1.bf16.xpose.msra.mxu0 0
      %1602 = vmatprep.subr.bf16.mxu0 0
      %1603 = vmatpush1.bf16.xpose.msra.mxu0 0
      %1604 = vmatprep.subr.bf16.mxu0 0
      %1605 = vmatpush1.bf16.xpose.msra.mxu0 0
      %1606 = vmatprep.subr.bf16.mxu0 0
      %1607 = vmatpush1.bf16.xpose.msra.mxu0 0
      %1608 = vmatprep.subr.bf16.mxu0 0
      %1609 = vmatpush1.bf16.xpose.msra.mxu0 0
      %1610 = vmatprep.mubr.bf16.mxu0 0
      %1611 = vmatmul.mubr.bf16.gmra.mrb[0].mxu0 %v1543
      %v1612 = vpop.f32.mrb[0].mxu0
      %v1613 = vadd.f32 0.0, %v1612
      %v1614 = vpop.f32.mrb[0].mxu0
      %v1615 = vpop.f32.mrb[0].mxu0
      %v1616 = vadd.f32 0.0, %v1615
      %v1617 = vpop.f32.mrb[0].mxu0
      %1618 = vmatprep.mubr.bf16.mxu0 0
      %1619 = vmatmul.mubr.bf16.gmra.mrb[0].mxu0 %v1546
      %v1620 = vpop.f32.mrb[0].mxu0
      %v1621 = vadd.f32 0.0, %v1620
      %v1622 = vpop.f32.mrb[0].mxu0
      %v1623 = vpop.f32.mrb[0].mxu0
      %v1624 = vadd.f32 0.0, %v1623
      %v1625 = vpop.f32.mrb[0].mxu0
      %1626 = vmatprep.mubr.bf16.mxu0 0
      %1627 = vmatmul.mubr.bf16.gmra.mrb[0].mxu0 %v1549
      %v1628 = vpop.f32.mrb[0].mxu0
      %v1629 = vadd.f32 0.0, %v1628
      %v1630 = vpop.f32.mrb[0].mxu0
      %v1631 = vpop.f32.mrb[0].mxu0
      %v1632 = vadd.f32 0.0, %v1631
      %v1633 = vpop.f32.mrb[0].mxu0
      %1634 = vmatprep.mubr.bf16.mxu0 0
      %1635 = vmatmul.mubr.bf16.gmra.mrb[0].mxu0 %v1552
      %v1636 = vpop.f32.mrb[0].mxu0
      %v1637 = vadd.f32 0.0, %v1636
      %v1638 = vpop.f32.mrb[0].mxu0
      %v1639 = vpop.f32.mrb[0].mxu0
      %v1640 = vadd.f32 0.0, %v1639
      %v1641 = vpop.f32.mrb[0].mxu0
      %1642 = vdwg.mxu0
      %v1651 = vunpack.c.l.b16 %v813
      %v1652 = vunpack.c.l.b16 %v814
      %v1653 = vunpack.c.l.b16 %v815
      %v1654 = vunpack.c.l.b16 %v816
      %v1655 = vunpack.c.l.b16 %v817
      %v1656 = vunpack.c.l.b16 %v818
      %v1657 = vunpack.c.l.b16 %v819
      %v1658 = vunpack.c.l.b16 %v820
      %v1659 = vpack.c.b16 %v1652, %v1651
      %v1660 = vpack.c.b16 %v1654, %v1653
      %v1661 = vpack.c.b16 %v1656, %v1655
      %v1662 = vpack.c.b16 %v1658, %v1657
      %v1679 = vunpack.c.l.b16 %v595
      %v1680 = vunpack.c.l.b16 %v596
      %v1681 = vunpack.c.l.b16 %v597
      %v1682 = vunpack.c.l.b16 %v598
      %v1683 = vunpack.c.l.b16 %v599
      %v1684 = vunpack.c.l.b16 %v600
      %v1685 = vunpack.c.l.b16 %v601
      %v1686 = vunpack.c.l.b16 %v602
      %v1687 = vunpack.c.l.b16 %v603
      %v1688 = vunpack.c.l.b16 %v604
      %v1689 = vunpack.c.l.b16 %v605
      %v1690 = vunpack.c.l.b16 %v606
      %v1691 = vunpack.c.l.b16 %v607
      %v1692 = vunpack.c.l.b16 %v608
      %v1693 = vunpack.c.l.b16 %v609
      %v1694 = vunpack.c.l.b16 %v610
      %v1695 = vpack.c.b16 %v1680, %v1679
      %v1696 = vpack.c.b16 %v1682, %v1681
      %v1697 = vpack.c.b16 %v1684, %v1683
      %v1698 = vpack.c.b16 %v1686, %v1685
      %v1699 = vpack.c.b16 %v1688, %v1687
      %v1700 = vpack.c.b16 %v1690, %v1689
      %v1701 = vpack.c.b16 %v1692, %v1691
      %v1702 = vpack.c.b16 %v1694, %v1693
      %v1704 = vsel %vm897, %v1659, 0
      %v1707 = vsel %vm897, %v1660, 0
      %v1710 = vsel %vm897, %v1661, 0
      %v1713 = vsel %vm897, %v1662, 0
      %v1716 = vsel %vm897, %v1695, 0
      %v1719 = vsel %vm897, %v1696, 0
      %v1722 = vsel %vm897, %v1697, 0
      %v1725 = vsel %vm897, %v1698, 0
      %v1728 = vsel %vm897, %v1699, 0
      %v1731 = vsel %vm897, %v1700, 0
      %v1734 = vsel %vm897, %v1701, 0
      %v1737 = vsel %vm897, %v1702, 0
      %1739 = vmatprep.subr.bf16.mxu0 0
      %1740 = vmatpush1.bf16.xpose.msra.mxu0 %v1716
      %1741 = vmatprep.subr.bf16.mxu0 0
      %1742 = vmatpush1.bf16.xpose.msra.mxu0 %v1719
      %1743 = vmatprep.subr.bf16.mxu0 0
      %1744 = vmatpush1.bf16.xpose.msra.mxu0 %v1722
      %1745 = vmatprep.subr.bf16.mxu0 0
      %1746 = vmatpush1.bf16.xpose.msra.mxu0 %v1725
      %1747 = vmatprep.subr.bf16.mxu0 0
      %1748 = vmatpush1.bf16.xpose.msra.mxu0 %v1728
      %1749 = vmatprep.subr.bf16.mxu0 0
      %1750 = vmatpush1.bf16.xpose.msra.mxu0 %v1731
      %1751 = vmatprep.subr.bf16.mxu0 0
      %1752 = vmatpush1.bf16.xpose.msra.mxu0 %v1734
      %1753 = vmatprep.subr.bf16.mxu0 0
      %1754 = vmatpush1.bf16.xpose.msra.mxu0 %v1737
      %1755 = vmatprep.subr.bf16.mxu0 0
      %1756 = vmatpush1.bf16.xpose.msra.mxu0 0
      %1757 = vmatprep.subr.bf16.mxu0 0
      %1758 = vmatpush1.bf16.xpose.msra.mxu0 0
      %1759 = vmatprep.subr.bf16.mxu0 0
      %1760 = vmatpush1.bf16.xpose.msra.mxu0 0
      %1761 = vmatprep.subr.bf16.mxu0 0
      %1762 = vmatpush1.bf16.xpose.msra.mxu0 0
      %1763 = vmatprep.subr.bf16.mxu0 0
      %1764 = vmatpush1.bf16.xpose.msra.mxu0 0
      %1765 = vmatprep.subr.bf16.mxu0 0
      %1766 = vmatpush1.bf16.xpose.msra.mxu0 0
      %1767 = vmatprep.subr.bf16.mxu0 0
      %1768 = vmatpush1.bf16.xpose.msra.mxu0 0
      %1769 = vmatprep.subr.bf16.mxu0 0
      %1770 = vmatpush1.bf16.xpose.msra.mxu0 0
      %1771 = vmatprep.mubr.bf16.mxu0 0
      %1772 = vmatmul.mubr.bf16.gmra.mrb[0].mxu0 %v1704
      %v1773 = vpop.f32.mrb[0].mxu0
      %v1774 = vadd.f32 0.0, %v1773
      %v1775 = vpop.f32.mrb[0].mxu0
      %v1776 = vpop.f32.mrb[0].mxu0
      %v1777 = vadd.f32 0.0, %v1776
      %v1778 = vpop.f32.mrb[0].mxu0
      %1779 = vmatprep.mubr.bf16.mxu0 0
      %1780 = vmatmul.mubr.bf16.gmra.mrb[0].mxu0 %v1707
      %v1781 = vpop.f32.mrb[0].mxu0
      %v1782 = vadd.f32 0.0, %v1781
      %v1783 = vpop.f32.mrb[0].mxu0
      %v1784 = vpop.f32.mrb[0].mxu0
      %v1785 = vadd.f32 0.0, %v1784
      %v1786 = vpop.f32.mrb[0].mxu0
      %1787 = vmatprep.mubr.bf16.mxu0 0
      %1788 = vmatmul.mubr.bf16.gmra.mrb[0].mxu0 %v1710
      %v1789 = vpop.f32.mrb[0].mxu0
      %v1790 = vadd.f32 0.0, %v1789
      %v1791 = vpop.f32.mrb[0].mxu0
      %v1792 = vpop.f32.mrb[0].mxu0
      %v1793 = vadd.f32 0.0, %v1792
      %v1794 = vpop.f32.mrb[0].mxu0
      %1795 = vmatprep.mubr.bf16.mxu0 0
      %1796 = vmatmul.mubr.bf16.gmra.mrb[0].mxu0 %v1713
      %v1797 = vpop.f32.mrb[0].mxu0
      %v1798 = vadd.f32 0.0, %v1797
      %v1799 = vpop.f32.mrb[0].mxu0
      %v1800 = vpop.f32.mrb[0].mxu0
      %v1801 = vadd.f32 0.0, %v1800
      %v1802 = vpop.f32.mrb[0].mxu0
      %1803 = vdwg.mxu0
      %v1812 = vunpack.c.l.b16 %v821
      %v1813 = vunpack.c.l.b16 %v822
      %v1814 = vunpack.c.l.b16 %v823
      %v1815 = vunpack.c.l.b16 %v824
      %v1816 = vunpack.c.l.b16 %v825
      %v1817 = vunpack.c.l.b16 %v826
      %v1818 = vunpack.c.l.b16 %v827
      %v1819 = vunpack.c.l.b16 %v828
      %v1820 = vpack.c.b16 %v1813, %v1812
      %v1821 = vpack.c.b16 %v1815, %v1814
      %v1822 = vpack.c.b16 %v1817, %v1816
      %v1823 = vpack.c.b16 %v1819, %v1818
      %v1840 = vunpack.c.l.b16 %v611
      %v1841 = vunpack.c.l.b16 %v612
      %v1842 = vunpack.c.l.b16 %v613
      %v1843 = vunpack.c.l.b16 %v614
      %v1844 = vunpack.c.l.b16 %v615
      %v1845 = vunpack.c.l.b16 %v616
      %v1846 = vunpack.c.l.b16 %v617
      %v1847 = vunpack.c.l.b16 %v618
      %v1848 = vunpack.c.l.b16 %v619
      %v1849 = vunpack.c.l.b16 %v620
      %v1850 = vunpack.c.l.b16 %v621
      %v1851 = vunpack.c.l.b16 %v622
      %v1852 = vunpack.c.l.b16 %v623
      %v1853 = vunpack.c.l.b16 %v624
      %v1854 = vunpack.c.l.b16 %v625
      %v1855 = vunpack.c.l.b16 %v626
      %v1856 = vpack.c.b16 %v1841, %v1840
      %v1857 = vpack.c.b16 %v1843, %v1842
      %v1858 = vpack.c.b16 %v1845, %v1844
      %v1859 = vpack.c.b16 %v1847, %v1846
      %v1860 = vpack.c.b16 %v1849, %v1848
      %v1861 = vpack.c.b16 %v1851, %v1850
      %v1862 = vpack.c.b16 %v1853, %v1852
      %v1863 = vpack.c.b16 %v1855, %v1854
      %v1865 = vsel %vm897, %v1820, 0
      %v1868 = vsel %vm897, %v1821, 0
      %v1871 = vsel %vm897, %v1822, 0
      %v1874 = vsel %vm897, %v1823, 0
      %v1877 = vsel %vm897, %v1856, 0
      %v1880 = vsel %vm897, %v1857, 0
      %v1883 = vsel %vm897, %v1858, 0
      %v1886 = vsel %vm897, %v1859, 0
      %v1889 = vsel %vm897, %v1860, 0
      %v1892 = vsel %vm897, %v1861, 0
      %v1895 = vsel %vm897, %v1862, 0
      %v1898 = vsel %vm897, %v1863, 0
      %1900 = vmatprep.subr.bf16.mxu0 0
      %1901 = vmatpush1.bf16.xpose.msra.mxu0 %v1877
      %1902 = vmatprep.subr.bf16.mxu0 0
      %1903 = vmatpush1.bf16.xpose.msra.mxu0 %v1880
      %1904 = vmatprep.subr.bf16.mxu0 0
      %1905 = vmatpush1.bf16.xpose.msra.mxu0 %v1883
      %1906 = vmatprep.subr.bf16.mxu0 0
      %1907 = vmatpush1.bf16.xpose.msra.mxu0 %v1886
      %1908 = vmatprep.subr.bf16.mxu0 0
      %1909 = vmatpush1.bf16.xpose.msra.mxu0 %v1889
      %1910 = vmatprep.subr.bf16.mxu0 0
      %1911 = vmatpush1.bf16.xpose.msra.mxu0 %v1892
      %1912 = vmatprep.subr.bf16.mxu0 0
      %1913 = vmatpush1.bf16.xpose.msra.mxu0 %v1895
      %1914 = vmatprep.subr.bf16.mxu0 0
      %1915 = vmatpush1.bf16.xpose.msra.mxu0 %v1898
      %1916 = vmatprep.subr.bf16.mxu0 0
      %1917 = vmatpush1.bf16.xpose.msra.mxu0 0
      %1918 = vmatprep.subr.bf16.mxu0 0
      %1919 = vmatpush1.bf16.xpose.msra.mxu0 0
      %1920 = vmatprep.subr.bf16.mxu0 0
      %1921 = vmatpush1.bf16.xpose.msra.mxu0 0
      %1922 = vmatprep.subr.bf16.mxu0 0
      %1923 = vmatpush1.bf16.xpose.msra.mxu0 0
      %1924 = vmatprep.subr.bf16.mxu0 0
      %1925 = vmatpush1.bf16.xpose.msra.mxu0 0
      %1926 = vmatprep.subr.bf16.mxu0 0
      %1927 = vmatpush1.bf16.xpose.msra.mxu0 0
      %1928 = vmatprep.subr.bf16.mxu0 0
      %1929 = vmatpush1.bf16.xpose.msra.mxu0 0
      %1930 = vmatprep.subr.bf16.mxu0 0
      %1931 = vmatpush1.bf16.xpose.msra.mxu0 0
      %1932 = vmatprep.mubr.bf16.mxu0 0
      %1933 = vmatmul.mubr.bf16.gmra.mrb[0].mxu0 %v1865
      %v1934 = vpop.f32.mrb[0].mxu0
      %v1935 = vadd.f32 0.0, %v1934
      %v1936 = vpop.f32.mrb[0].mxu0
      %v1937 = vpop.f32.mrb[0].mxu0
      %v1938 = vadd.f32 0.0, %v1937
      %v1939 = vpop.f32.mrb[0].mxu0
      %1940 = vmatprep.mubr.bf16.mxu0 0
      %1941 = vmatmul.mubr.bf16.gmra.mrb[0].mxu0 %v1868
      %v1942 = vpop.f32.mrb[0].mxu0
      %v1943 = vadd.f32 0.0, %v1942
      %v1944 = vpop.f32.mrb[0].mxu0
      %v1945 = vpop.f32.mrb[0].mxu0
      %v1946 = vadd.f32 0.0, %v1945
      %v1947 = vpop.f32.mrb[0].mxu0
      %1948 = vmatprep.mubr.bf16.mxu0 0
      %1949 = vmatmul.mubr.bf16.gmra.mrb[0].mxu0 %v1871
      %v1950 = vpop.f32.mrb[0].mxu0
      %v1951 = vadd.f32 0.0, %v1950
      %v1952 = vpop.f32.mrb[0].mxu0
      %v1953 = vpop.f32.mrb[0].mxu0
      %v1954 = vadd.f32 0.0, %v1953
      %v1955 = vpop.f32.mrb[0].mxu0
      %1956 = vmatprep.mubr.bf16.mxu0 0
      %1957 = vmatmul.mubr.bf16.gmra.mrb[0].mxu0 %v1874
      %v1958 = vpop.f32.mrb[0].mxu0
      %v1959 = vadd.f32 0.0, %v1958
      %v1960 = vpop.f32.mrb[0].mxu0
      %v1961 = vpop.f32.mrb[0].mxu0
      %v1962 = vadd.f32 0.0, %v1961
      %v1963 = vpop.f32.mrb[0].mxu0
      %1964 = vdwg.mxu0
      %v1973 = vunpack.c.l.b16 %v829
      %v1974 = vunpack.c.l.b16 %v830
      %v1975 = vunpack.c.l.b16 %v831
      %v1976 = vunpack.c.l.b16 %v832
      %v1977 = vunpack.c.l.b16 %v833
      %v1978 = vunpack.c.l.b16 %v834
      %v1979 = vunpack.c.l.b16 %v835
      %v1980 = vunpack.c.l.b16 %v836
      %v1981 = vpack.c.b16 %v1974, %v1973
      %v1982 = vpack.c.b16 %v1976, %v1975
      %v1983 = vpack.c.b16 %v1978, %v1977
      %v1984 = vpack.c.b16 %v1980, %v1979
      %v2001 = vunpack.c.l.b16 %v627
      %v2002 = vunpack.c.l.b16 %v628
      %v2003 = vunpack.c.l.b16 %v629
      %v2004 = vunpack.c.l.b16 %v630
      %v2005 = vunpack.c.l.b16 %v631
      %v2006 = vunpack.c.l.b16 %v632
      %v2007 = vunpack.c.l.b16 %v633
      %v2008 = vunpack.c.l.b16 %v634
      %v2009 = vunpack.c.l.b16 %v635
      %v2010 = vunpack.c.l.b16 %v636
      %v2011 = vunpack.c.l.b16 %v637
      %v2012 = vunpack.c.l.b16 %v638
      %v2013 = vunpack.c.l.b16 %v639
      %v2014 = vunpack.c.l.b16 %v640
      %v2015 = vunpack.c.l.b16 %v641
      %v2016 = vunpack.c.l.b16 %v642
      %v2017 = vpack.c.b16 %v2002, %v2001
      %v2018 = vpack.c.b16 %v2004, %v2003
      %v2019 = vpack.c.b16 %v2006, %v2005
      %v2020 = vpack.c.b16 %v2008, %v2007
      %v2021 = vpack.c.b16 %v2010, %v2009
      %v2022 = vpack.c.b16 %v2012, %v2011
      %v2023 = vpack.c.b16 %v2014, %v2013
      %v2024 = vpack.c.b16 %v2016, %v2015
      %v2026 = vsel %vm897, %v1981, 0
      %v2029 = vsel %vm897, %v1982, 0
      %v2032 = vsel %vm897, %v1983, 0
      %v2035 = vsel %vm897, %v1984, 0
      %v2038 = vsel %vm897, %v2017, 0
      %v2041 = vsel %vm897, %v2018, 0
      %v2044 = vsel %vm897, %v2019, 0
      %v2047 = vsel %vm897, %v2020, 0
      %v2050 = vsel %vm897, %v2021, 0
      %v2053 = vsel %vm897, %v2022, 0
      %v2056 = vsel %vm897, %v2023, 0
      %v2059 = vsel %vm897, %v2024, 0
      %2061 = vmatprep.subr.bf16.mxu0 0
      %2062 = vmatpush1.bf16.xpose.msra.mxu0 %v2038
      %2063 = vmatprep.subr.bf16.mxu0 0
      %2064 = vmatpush1.bf16.xpose.msra.mxu0 %v2041
      %2065 = vmatprep.subr.bf16.mxu0 0
      %2066 = vmatpush1.bf16.xpose.msra.mxu0 %v2044
      %2067 = vmatprep.subr.bf16.mxu0 0
      %2068 = vmatpush1.bf16.xpose.msra.mxu0 %v2047
      %2069 = vmatprep.subr.bf16.mxu0 0
      %2070 = vmatpush1.bf16.xpose.msra.mxu0 %v2050
      %2071 = vmatprep.subr.bf16.mxu0 0
      %2072 = vmatpush1.bf16.xpose.msra.mxu0 %v2053
      %2073 = vmatprep.subr.bf16.mxu0 0
      %2074 = vmatpush1.bf16.xpose.msra.mxu0 %v2056
      %2075 = vmatprep.subr.bf16.mxu0 0
      %2076 = vmatpush1.bf16.xpose.msra.mxu0 %v2059
      %2077 = vmatprep.subr.bf16.mxu0 0
      %2078 = vmatpush1.bf16.xpose.msra.mxu0 0
      %2079 = vmatprep.subr.bf16.mxu0 0
      %2080 = vmatpush1.bf16.xpose.msra.mxu0 0
      %2081 = vmatprep.subr.bf16.mxu0 0
      %2082 = vmatpush1.bf16.xpose.msra.mxu0 0
      %2083 = vmatprep.subr.bf16.mxu0 0
      %2084 = vmatpush1.bf16.xpose.msra.mxu0 0
      %2085 = vmatprep.subr.bf16.mxu0 0
      %2086 = vmatpush1.bf16.xpose.msra.mxu0 0
      %2087 = vmatprep.subr.bf16.mxu0 0
      %2088 = vmatpush1.bf16.xpose.msra.mxu0 0
      %2089 = vmatprep.subr.bf16.mxu0 0
      %2090 = vmatpush1.bf16.xpose.msra.mxu0 0
      %2091 = vmatprep.subr.bf16.mxu0 0
      %2092 = vmatpush1.bf16.xpose.msra.mxu0 0
      %2093 = vmatprep.mubr.bf16.mxu0 0
      %2094 = vmatmul.mubr.bf16.gmra.mrb[0].mxu0 %v2026
      %v2095 = vpop.f32.mrb[0].mxu0
      %v2096 = vadd.f32 0.0, %v2095
      %v2097 = vpop.f32.mrb[0].mxu0
      %v2098 = vpop.f32.mrb[0].mxu0
      %v2099 = vadd.f32 0.0, %v2098
      %v2100 = vpop.f32.mrb[0].mxu0
      %2101 = vmatprep.mubr.bf16.mxu0 0
      %2102 = vmatmul.mubr.bf16.gmra.mrb[0].mxu0 %v2029
      %v2103 = vpop.f32.mrb[0].mxu0
      %v2104 = vadd.f32 0.0, %v2103
      %v2105 = vpop.f32.mrb[0].mxu0
      %v2106 = vpop.f32.mrb[0].mxu0
      %v2107 = vadd.f32 0.0, %v2106
      %v2108 = vpop.f32.mrb[0].mxu0
      %2109 = vmatprep.mubr.bf16.mxu0 0
      %2110 = vmatmul.mubr.bf16.gmra.mrb[0].mxu0 %v2032
      %v2111 = vpop.f32.mrb[0].mxu0
      %v2112 = vadd.f32 0.0, %v2111
      %v2113 = vpop.f32.mrb[0].mxu0
      %v2114 = vpop.f32.mrb[0].mxu0
      %v2115 = vadd.f32 0.0, %v2114
      %v2116 = vpop.f32.mrb[0].mxu0
      %2117 = vmatprep.mubr.bf16.mxu0 0
      %2118 = vmatmul.mubr.bf16.gmra.mrb[0].mxu0 %v2035
      %v2119 = vpop.f32.mrb[0].mxu0
      %v2120 = vadd.f32 0.0, %v2119
      %v2121 = vpop.f32.mrb[0].mxu0
      %v2122 = vpop.f32.mrb[0].mxu0
      %v2123 = vadd.f32 0.0, %v2122
      %v2124 = vpop.f32.mrb[0].mxu0
      %2125 = vdwg.mxu0
      %v2126 = vand.u32 %v771, 255
      %v2127 = vshra.s32 %v771, 8
      %v2128 = vand.u32 %v772, 255
      %v2129 = vshra.s32 %v772, 8
      %v2130 = vlaneseq
      %v2131 = vshrl.u32 %v2130, 7
      %v2132 = vsub.s32 0, %v2131
      %v2133 = vrot.slane %v2126, %v2132
      %2135 = vbcast.lane.b32.xlu0 %v2133, 256
      %v2136 = vpop.permute.xlu0 %2135
      %s2138 = sor.u32 256, 8
      %2139 = vbcast.lane.b32.xlu0 %v2133, %s2138
      %v2140 = vpop.permute.xlu0 %2139
      %s2142 = sor.u32 256, 16
      %2143 = vbcast.lane.b32.xlu0 %v2133, %s2142
      %v2144 = vpop.permute.xlu0 %2143
      %s2146 = sor.u32 256, 24
      %2147 = vbcast.lane.b32.xlu0 %v2133, %s2146
      %v2148 = vpop.permute.xlu0 %2147
      %s2150 = sor.u32 256, 32
      %2151 = vbcast.lane.b32.xlu0 %v2133, %s2150
      %v2152 = vpop.permute.xlu0 %2151
      %s2154 = sor.u32 256, 40
      %2155 = vbcast.lane.b32.xlu0 %v2133, %s2154
      %v2156 = vpop.permute.xlu0 %2155
      %s2158 = sor.u32 256, 48
      %2159 = vbcast.lane.b32.xlu0 %v2133, %s2158
      %v2160 = vpop.permute.xlu0 %2159
      %s2162 = sor.u32 256, 56
      %2163 = vbcast.lane.b32.xlu0 %v2133, %s2162
      %v2164 = vpop.permute.xlu0 %2163
      %v2165 = vlaneseq
      %v2166 = vshrl.u32 %v2165, 7
      %v2167 = vsub.s32 1, %v2166
      %v2168 = vrot.slane %v2126, %v2167
      %2170 = vbcast.lane.b32.xlu0 %v2168, 256
      %v2171 = vpop.permute.xlu0 %2170
      %s2173 = sor.u32 256, 8
      %2174 = vbcast.lane.b32.xlu0 %v2168, %s2173
      %v2175 = vpop.permute.xlu0 %2174
      %s2177 = sor.u32 256, 16
      %2178 = vbcast.lane.b32.xlu0 %v2168, %s2177
      %v2179 = vpop.permute.xlu0 %2178
      %s2181 = sor.u32 256, 24
      %2182 = vbcast.lane.b32.xlu0 %v2168, %s2181
      %v2183 = vpop.permute.xlu0 %2182
      %s2185 = sor.u32 256, 32
      %2186 = vbcast.lane.b32.xlu0 %v2168, %s2185
      %v2187 = vpop.permute.xlu0 %2186
      %s2189 = sor.u32 256, 40
      %2190 = vbcast.lane.b32.xlu0 %v2168, %s2189
      %v2191 = vpop.permute.xlu0 %2190
      %s2193 = sor.u32 256, 48
      %2194 = vbcast.lane.b32.xlu0 %v2168, %s2193
      %v2195 = vpop.permute.xlu0 %2194
      %s2197 = sor.u32 256, 56
      %2198 = vbcast.lane.b32.xlu0 %v2168, %s2197
      %v2199 = vpop.permute.xlu0 %2198
      %v2200 = vlaneseq
      %v2201 = vshrl.u32 %v2200, 7
      %v2202 = vsub.s32 2, %v2201
      %v2203 = vrot.slane %v2126, %v2202
      %2205 = vbcast.lane.b32.xlu0 %v2203, 256
      %v2206 = vpop.permute.xlu0 %2205
      %s2208 = sor.u32 256, 8
      %2209 = vbcast.lane.b32.xlu0 %v2203, %s2208
      %v2210 = vpop.permute.xlu0 %2209
      %s2212 = sor.u32 256, 16
      %2213 = vbcast.lane.b32.xlu0 %v2203, %s2212
      %v2214 = vpop.permute.xlu0 %2213
      %s2216 = sor.u32 256, 24
      %2217 = vbcast.lane.b32.xlu0 %v2203, %s2216
      %v2218 = vpop.permute.xlu0 %2217
      %s2220 = sor.u32 256, 32
      %2221 = vbcast.lane.b32.xlu0 %v2203, %s2220
      %v2222 = vpop.permute.xlu0 %2221
      %s2224 = sor.u32 256, 40
      %2225 = vbcast.lane.b32.xlu0 %v2203, %s2224
      %v2226 = vpop.permute.xlu0 %2225
      %s2228 = sor.u32 256, 48
      %2229 = vbcast.lane.b32.xlu0 %v2203, %s2228
      %v2230 = vpop.permute.xlu0 %2229
      %s2232 = sor.u32 256, 56
      %2233 = vbcast.lane.b32.xlu0 %v2203, %s2232
      %v2234 = vpop.permute.xlu0 %2233
      %v2235 = vlaneseq
      %v2236 = vshrl.u32 %v2235, 7
      %v2237 = vsub.s32 3, %v2236
      %v2238 = vrot.slane %v2126, %v2237
      %2240 = vbcast.lane.b32.xlu0 %v2238, 256
      %v2241 = vpop.permute.xlu0 %2240
      %s2243 = sor.u32 256, 8
      %2244 = vbcast.lane.b32.xlu0 %v2238, %s2243
      %v2245 = vpop.permute.xlu0 %2244
      %s2247 = sor.u32 256, 16
      %2248 = vbcast.lane.b32.xlu0 %v2238, %s2247
      %v2249 = vpop.permute.xlu0 %2248
      %s2251 = sor.u32 256, 24
      %2252 = vbcast.lane.b32.xlu0 %v2238, %s2251
      %v2253 = vpop.permute.xlu0 %2252
      %s2255 = sor.u32 256, 32
      %2256 = vbcast.lane.b32.xlu0 %v2238, %s2255
      %v2257 = vpop.permute.xlu0 %2256
      %s2259 = sor.u32 256, 40
      %2260 = vbcast.lane.b32.xlu0 %v2238, %s2259
      %v2261 = vpop.permute.xlu0 %2260
      %s2263 = sor.u32 256, 48
      %2264 = vbcast.lane.b32.xlu0 %v2238, %s2263
      %v2265 = vpop.permute.xlu0 %2264
      %s2267 = sor.u32 256, 56
      %2268 = vbcast.lane.b32.xlu0 %v2238, %s2267
      %v2269 = vpop.permute.xlu0 %2268
      %v2270 = vlaneseq
      %v2271 = vshrl.u32 %v2270, 7
      %v2272 = vsub.s32 4, %v2271
      %v2273 = vrot.slane %v2126, %v2272
      %2275 = vbcast.lane.b32.xlu0 %v2273, 256
      %v2276 = vpop.permute.xlu0 %2275
      %s2278 = sor.u32 256, 8
      %2279 = vbcast.lane.b32.xlu0 %v2273, %s2278
      %v2280 = vpop.permute.xlu0 %2279
      %s2282 = sor.u32 256, 16
      %2283 = vbcast.lane.b32.xlu0 %v2273, %s2282
      %v2284 = vpop.permute.xlu0 %2283
      %s2286 = sor.u32 256, 24
      %2287 = vbcast.lane.b32.xlu0 %v2273, %s2286
      %v2288 = vpop.permute.xlu0 %2287
      %s2290 = sor.u32 256, 32
      %2291 = vbcast.lane.b32.xlu0 %v2273, %s2290
      %v2292 = vpop.permute.xlu0 %2291
      %s2294 = sor.u32 256, 40
      %2295 = vbcast.lane.b32.xlu0 %v2273, %s2294
      %v2296 = vpop.permute.xlu0 %2295
      %s2298 = sor.u32 256, 48
      %2299 = vbcast.lane.b32.xlu0 %v2273, %s2298
      %v2300 = vpop.permute.xlu0 %2299
      %s2302 = sor.u32 256, 56
      %2303 = vbcast.lane.b32.xlu0 %v2273, %s2302
      %v2304 = vpop.permute.xlu0 %2303
      %v2305 = vlaneseq
      %v2306 = vshrl.u32 %v2305, 7
      %v2307 = vsub.s32 5, %v2306
      %v2308 = vrot.slane %v2126, %v2307
      %2310 = vbcast.lane.b32.xlu0 %v2308, 256
      %v2311 = vpop.permute.xlu0 %2310
      %s2313 = sor.u32 256, 8
      %2314 = vbcast.lane.b32.xlu0 %v2308, %s2313
      %v2315 = vpop.permute.xlu0 %2314
      %s2317 = sor.u32 256, 16
      %2318 = vbcast.lane.b32.xlu0 %v2308, %s2317
      %v2319 = vpop.permute.xlu0 %2318
      %s2321 = sor.u32 256, 24
      %2322 = vbcast.lane.b32.xlu0 %v2308, %s2321
      %v2323 = vpop.permute.xlu0 %2322
      %s2325 = sor.u32 256, 32
      %2326 = vbcast.lane.b32.xlu0 %v2308, %s2325
      %v2327 = vpop.permute.xlu0 %2326
      %s2329 = sor.u32 256, 40
      %2330 = vbcast.lane.b32.xlu0 %v2308, %s2329
      %v2331 = vpop.permute.xlu0 %2330
      %s2333 = sor.u32 256, 48
      %2334 = vbcast.lane.b32.xlu0 %v2308, %s2333
      %v2335 = vpop.permute.xlu0 %2334
      %s2337 = sor.u32 256, 56
      %2338 = vbcast.lane.b32.xlu0 %v2308, %s2337
      %v2339 = vpop.permute.xlu0 %2338
      %v2340 = vlaneseq
      %v2341 = vshrl.u32 %v2340, 7
      %v2342 = vsub.s32 6, %v2341
      %v2343 = vrot.slane %v2126, %v2342
      %2345 = vbcast.lane.b32.xlu0 %v2343, 256
      %v2346 = vpop.permute.xlu0 %2345
      %s2348 = sor.u32 256, 8
      %2349 = vbcast.lane.b32.xlu0 %v2343, %s2348
      %v2350 = vpop.permute.xlu0 %2349
      %s2352 = sor.u32 256, 16
      %2353 = vbcast.lane.b32.xlu0 %v2343, %s2352
      %v2354 = vpop.permute.xlu0 %2353
      %s2356 = sor.u32 256, 24
      %2357 = vbcast.lane.b32.xlu0 %v2343, %s2356
      %v2358 = vpop.permute.xlu0 %2357
      %s2360 = sor.u32 256, 32
      %2361 = vbcast.lane.b32.xlu0 %v2343, %s2360
      %v2362 = vpop.permute.xlu0 %2361
      %s2364 = sor.u32 256, 40
      %2365 = vbcast.lane.b32.xlu0 %v2343, %s2364
      %v2366 = vpop.permute.xlu0 %2365
      %s2368 = sor.u32 256, 48
      %2369 = vbcast.lane.b32.xlu0 %v2343, %s2368
      %v2370 = vpop.permute.xlu0 %2369
      %s2372 = sor.u32 256, 56
      %2373 = vbcast.lane.b32.xlu0 %v2343, %s2372
      %v2374 = vpop.permute.xlu0 %2373
      %v2375 = vlaneseq
      %v2376 = vshrl.u32 %v2375, 7
      %v2377 = vsub.s32 7, %v2376
      %v2378 = vrot.slane %v2126, %v2377
      %2380 = vbcast.lane.b32.xlu0 %v2378, 256
      %v2381 = vpop.permute.xlu0 %2380
      %s2383 = sor.u32 256, 8
      %2384 = vbcast.lane.b32.xlu0 %v2378, %s2383
      %v2385 = vpop.permute.xlu0 %2384
      %s2387 = sor.u32 256, 16
      %2388 = vbcast.lane.b32.xlu0 %v2378, %s2387
      %v2389 = vpop.permute.xlu0 %2388
      %s2391 = sor.u32 256, 24
      %2392 = vbcast.lane.b32.xlu0 %v2378, %s2391
      %v2393 = vpop.permute.xlu0 %2392
      %s2395 = sor.u32 256, 32
      %2396 = vbcast.lane.b32.xlu0 %v2378, %s2395
      %v2397 = vpop.permute.xlu0 %2396
      %s2399 = sor.u32 256, 40
      %2400 = vbcast.lane.b32.xlu0 %v2378, %s2399
      %v2401 = vpop.permute.xlu0 %2400
      %s2403 = sor.u32 256, 48
      %2404 = vbcast.lane.b32.xlu0 %v2378, %s2403
      %v2405 = vpop.permute.xlu0 %2404
      %s2407 = sor.u32 256, 56
      %2408 = vbcast.lane.b32.xlu0 %v2378, %s2407
      %v2409 = vpop.permute.xlu0 %2408
      %v2410 = vcombine.high %v2128, %v2128
      %v2412 = vunpack.c.l.s4 1966171168
      %v2413 = vunpack.c.0.s8 %v2412
      %v2414 = vlaneseq
      %v2415 = vshrl.u32 %v2414, 7
      %v2416 = vsub.s32 %v2413, %v2415
      %v2417 = vrot.slane %v2128, %v2416
      %v2419 = vunpack.c.l.s4 1966171168
      %v2420 = vunpack.c.0.s8 %v2419
      %v2421 = vlaneseq
      %v2422 = vshrl.u32 %v2421, 7
      %v2423 = vsub.s32 %v2420, %v2422
      %v2424 = vrot.slane %v2410, %v2423
      %v2425 = vcombine.high %v2417, %v2417
      %v2426 = vcombine.high %v2424, %v2424
      %v2428 = vunpack.c.l.s4 1966171168
      %v2429 = vunpack.c.0.s8 %v2428
      %v2430 = vlaneseq
      %v2431 = vshrl.u32 %v2430, 7
      %v2432 = vsub.s32 %v2429, %v2431
      %v2433 = vrot.slane %v2417, %v2432
      %v2435 = vunpack.c.l.s4 1966171168
      %v2436 = vunpack.c.0.s8 %v2435
      %v2437 = vlaneseq
      %v2438 = vshrl.u32 %v2437, 7
      %v2439 = vsub.s32 %v2436, %v2438
      %v2440 = vrot.slane %v2424, %v2439
      %v2442 = vunpack.c.l.s4 1966171168
      %v2443 = vunpack.c.0.s8 %v2442
      %v2444 = vlaneseq
      %v2445 = vshrl.u32 %v2444, 7
      %v2446 = vsub.s32 %v2443, %v2445
      %v2447 = vrot.slane %v2425, %v2446
      %v2449 = vunpack.c.l.s4 1966171168
      %v2450 = vunpack.c.0.s8 %v2449
      %v2451 = vlaneseq
      %v2452 = vshrl.u32 %v2451, 7
      %v2453 = vsub.s32 %v2450, %v2452
      %v2454 = vrot.slane %v2426, %v2453
      %v2455 = vcombine.high %v2433, %v2433
      %v2456 = vcombine.high %v2440, %v2440
      %v2457 = vcombine.high %v2447, %v2447
      %v2458 = vcombine.high %v2454, %v2454
      %v2459 = vlaneseq
      %v2460 = vshrl.u32 %v2459, 7
      %v2461 = vsub.s32 0, %v2460
      %v2462 = vrot.slane %v2433, %v2461
      %v2463 = vlaneseq
      %v2464 = vshrl.u32 %v2463, 7
      %v2465 = vsub.s32 0, %v2464
      %v2466 = vrot.slane %v2447, %v2465
      %v2467 = vlaneseq
      %v2468 = vshrl.u32 %v2467, 7
      %v2469 = vsub.s32 0, %v2468
      %v2470 = vrot.slane %v2455, %v2469
      %v2471 = vlaneseq
      %v2472 = vshrl.u32 %v2471, 7
      %v2473 = vsub.s32 0, %v2472
      %v2474 = vrot.slane %v2457, %v2473
      %v2475 = vlaneseq
      %v2476 = vshrl.u32 %v2475, 7
      %v2477 = vsub.s32 0, %v2476
      %v2478 = vrot.slane %v2440, %v2477
      %v2479 = vlaneseq
      %v2480 = vshrl.u32 %v2479, 7
      %v2481 = vsub.s32 0, %v2480
      %v2482 = vrot.slane %v2454, %v2481
      %v2483 = vlaneseq
      %v2484 = vshrl.u32 %v2483, 7
      %v2485 = vsub.s32 0, %v2484
      %v2486 = vrot.slane %v2456, %v2485
      %v2487 = vlaneseq
      %v2488 = vshrl.u32 %v2487, 7
      %v2489 = vsub.s32 0, %v2488
      %v2490 = vrot.slane %v2458, %v2489
      %vm2491 = vcmp.eq.s32.totalorder %v2136, %v2462
      %vm2492 = vcmp.eq.s32.totalorder %v2140, %v2462
      %vm2493 = vcmp.eq.s32.totalorder %v2144, %v2462
      %vm2494 = vcmp.eq.s32.totalorder %v2148, %v2462
      %vm2495 = vcmp.eq.s32.totalorder %v2152, %v2462
      %vm2496 = vcmp.eq.s32.totalorder %v2156, %v2462
      %vm2497 = vcmp.eq.s32.totalorder %v2160, %v2462
      %vm2498 = vcmp.eq.s32.totalorder %v2164, %v2462
      %vm2499 = vcmp.eq.s32.totalorder %v2171, %v2466
      %vm2500 = vcmp.eq.s32.totalorder %v2175, %v2466
      %vm2501 = vcmp.eq.s32.totalorder %v2179, %v2466
      %vm2502 = vcmp.eq.s32.totalorder %v2183, %v2466
      %vm2503 = vcmp.eq.s32.totalorder %v2187, %v2466
      %vm2504 = vcmp.eq.s32.totalorder %v2191, %v2466
      %vm2505 = vcmp.eq.s32.totalorder %v2195, %v2466
      %vm2506 = vcmp.eq.s32.totalorder %v2199, %v2466
      %vm2507 = vcmp.eq.s32.totalorder %v2206, %v2470
      %vm2508 = vcmp.eq.s32.totalorder %v2210, %v2470
      %vm2509 = vcmp.eq.s32.totalorder %v2214, %v2470
      %vm2510 = vcmp.eq.s32.totalorder %v2218, %v2470
      %vm2511 = vcmp.eq.s32.totalorder %v2222, %v2470
      %vm2512 = vcmp.eq.s32.totalorder %v2226, %v2470
      %vm2513 = vcmp.eq.s32.totalorder %v2230, %v2470
      %vm2514 = vcmp.eq.s32.totalorder %v2234, %v2470
      %vm2515 = vcmp.eq.s32.totalorder %v2241, %v2474
      %vm2516 = vcmp.eq.s32.totalorder %v2245, %v2474
      %vm2517 = vcmp.eq.s32.totalorder %v2249, %v2474
      %vm2518 = vcmp.eq.s32.totalorder %v2253, %v2474
      %vm2519 = vcmp.eq.s32.totalorder %v2257, %v2474
      %vm2520 = vcmp.eq.s32.totalorder %v2261, %v2474
      %vm2521 = vcmp.eq.s32.totalorder %v2265, %v2474
      %vm2522 = vcmp.eq.s32.totalorder %v2269, %v2474
      %vm2523 = vcmp.eq.s32.totalorder %v2276, %v2478
      %vm2524 = vcmp.eq.s32.totalorder %v2280, %v2478
      %vm2525 = vcmp.eq.s32.totalorder %v2284, %v2478
      %vm2526 = vcmp.eq.s32.totalorder %v2288, %v2478
      %vm2527 = vcmp.eq.s32.totalorder %v2292, %v2478
      %vm2528 = vcmp.eq.s32.totalorder %v2296, %v2478
      %vm2529 = vcmp.eq.s32.totalorder %v2300, %v2478
      %vm2530 = vcmp.eq.s32.totalorder %v2304, %v2478
      %vm2531 = vcmp.eq.s32.totalorder %v2311, %v2482
      %vm2532 = vcmp.eq.s32.totalorder %v2315, %v2482
      %vm2533 = vcmp.eq.s32.totalorder %v2319, %v2482
      %vm2534 = vcmp.eq.s32.totalorder %v2323, %v2482
      %vm2535 = vcmp.eq.s32.totalorder %v2327, %v2482
      %vm2536 = vcmp.eq.s32.totalorder %v2331, %v2482
      %vm2537 = vcmp.eq.s32.totalorder %v2335, %v2482
      %vm2538 = vcmp.eq.s32.totalorder %v2339, %v2482
      %vm2539 = vcmp.eq.s32.totalorder %v2346, %v2486
      %vm2540 = vcmp.eq.s32.totalorder %v2350, %v2486
      %vm2541 = vcmp.eq.s32.totalorder %v2354, %v2486
      %vm2542 = vcmp.eq.s32.totalorder %v2358, %v2486
      %vm2543 = vcmp.eq.s32.totalorder %v2362, %v2486
      %vm2544 = vcmp.eq.s32.totalorder %v2366, %v2486
      %vm2545 = vcmp.eq.s32.totalorder %v2370, %v2486
      %vm2546 = vcmp.eq.s32.totalorder %v2374, %v2486
      %vm2547 = vcmp.eq.s32.totalorder %v2381, %v2490
      %vm2548 = vcmp.eq.s32.totalorder %v2385, %v2490
      %vm2549 = vcmp.eq.s32.totalorder %v2389, %v2490
      %vm2550 = vcmp.eq.s32.totalorder %v2393, %v2490
      %vm2551 = vcmp.eq.s32.totalorder %v2397, %v2490
      %vm2552 = vcmp.eq.s32.totalorder %v2401, %v2490
      %vm2553 = vcmp.eq.s32.totalorder %v2405, %v2490
      %vm2554 = vcmp.eq.s32.totalorder %v2409, %v2490
      %v2555 = vsel %vm2491, -50000.0, %v969
      %v2556 = vsel %vm2492, -50000.0, %v972
      %v2557 = vsel %vm2493, -50000.0, %v977
      %v2558 = vsel %vm2494, -50000.0, %v980
      %v2559 = vsel %vm2495, -50000.0, %v985
      %v2560 = vsel %vm2496, -50000.0, %v988
      %v2561 = vsel %vm2497, -50000.0, %v993
      %v2562 = vsel %vm2498, -50000.0, %v996
      %v2563 = vsel %vm2499, -50000.0, %v1130
      %v2564 = vsel %vm2500, -50000.0, %v1133
      %v2565 = vsel %vm2501, -50000.0, %v1138
      %v2566 = vsel %vm2502, -50000.0, %v1141
      %v2567 = vsel %vm2503, -50000.0, %v1146
      %v2568 = vsel %vm2504, -50000.0, %v1149
      %v2569 = vsel %vm2505, -50000.0, %v1154
      %v2570 = vsel %vm2506, -50000.0, %v1157
      %v2571 = vsel %vm2507, -50000.0, %v1291
      %v2572 = vsel %vm2508, -50000.0, %v1294
      %v2573 = vsel %vm2509, -50000.0, %v1299
      %v2574 = vsel %vm2510, -50000.0, %v1302
      %v2575 = vsel %vm2511, -50000.0, %v1307
      %v2576 = vsel %vm2512, -50000.0, %v1310
      %v2577 = vsel %vm2513, -50000.0, %v1315
      %v2578 = vsel %vm2514, -50000.0, %v1318
      %v2579 = vsel %vm2515, -50000.0, %v1452
      %v2580 = vsel %vm2516, -50000.0, %v1455
      %v2581 = vsel %vm2517, -50000.0, %v1460
      %v2582 = vsel %vm2518, -50000.0, %v1463
      %v2583 = vsel %vm2519, -50000.0, %v1468
      %v2584 = vsel %vm2520, -50000.0, %v1471
      %v2585 = vsel %vm2521, -50000.0, %v1476
      %v2586 = vsel %vm2522, -50000.0, %v1479
      %v2587 = vsel %vm2523, -50000.0, %v1613
      %v2588 = vsel %vm2524, -50000.0, %v1616
      %v2589 = vsel %vm2525, -50000.0, %v1621
      %v2590 = vsel %vm2526, -50000.0, %v1624
      %v2591 = vsel %vm2527, -50000.0, %v1629
      %v2592 = vsel %vm2528, -50000.0, %v1632
      %v2593 = vsel %vm2529, -50000.0, %v1637
      %v2594 = vsel %vm2530, -50000.0, %v1640
      %v2595 = vsel %vm2531, -50000.0, %v1774
      %v2596 = vsel %vm2532, -50000.0, %v1777
      %v2597 = vsel %vm2533, -50000.0, %v1782
      %v2598 = vsel %vm2534, -50000.0, %v1785
      %v2599 = vsel %vm2535, -50000.0, %v1790
      %v2600 = vsel %vm2536, -50000.0, %v1793
      %v2601 = vsel %vm2537, -50000.0, %v1798
      %v2602 = vsel %vm2538, -50000.0, %v1801
      %v2603 = vsel %vm2539, -50000.0, %v1935
      %v2604 = vsel %vm2540, -50000.0, %v1938
      %v2605 = vsel %vm2541, -50000.0, %v1943
      %v2606 = vsel %vm2542, -50000.0, %v1946
      %v2607 = vsel %vm2543, -50000.0, %v1951
      %v2608 = vsel %vm2544, -50000.0, %v1954
      %v2609 = vsel %vm2545, -50000.0, %v1959
      %v2610 = vsel %vm2546, -50000.0, %v1962
      %v2611 = vsel %vm2547, -50000.0, %v2096
      %v2612 = vsel %vm2548, -50000.0, %v2099
      %v2613 = vsel %vm2549, -50000.0, %v2104
      %v2614 = vsel %vm2550, -50000.0, %v2107
      %v2615 = vsel %vm2551, -50000.0, %v2112
      %v2616 = vsel %vm2552, -50000.0, %v2115
      %v2617 = vsel %vm2553, -50000.0, %v2120
      %v2618 = vsel %vm2554, -50000.0, %v2123
      %v2619 = vlaneseq
      %v2620 = vshrl.u32 %v2619, 7
      %v2621 = vsub.s32 0, %v2620
      %v2622 = vrot.slane %v2127, %v2621
      %2624 = vbcast.lane.b32.xlu0 %v2622, 256
      %v2625 = vpop.permute.xlu0 %2624
      %s2627 = sor.u32 256, 8
      %2628 = vbcast.lane.b32.xlu0 %v2622, %s2627
      %v2629 = vpop.permute.xlu0 %2628
      %s2631 = sor.u32 256, 16
      %2632 = vbcast.lane.b32.xlu0 %v2622, %s2631
      %v2633 = vpop.permute.xlu0 %2632
      %s2635 = sor.u32 256, 24
      %2636 = vbcast.lane.b32.xlu0 %v2622, %s2635
      %v2637 = vpop.permute.xlu0 %2636
      %s2639 = sor.u32 256, 32
      %2640 = vbcast.lane.b32.xlu0 %v2622, %s2639
      %v2641 = vpop.permute.xlu0 %2640
      %s2643 = sor.u32 256, 40
      %2644 = vbcast.lane.b32.xlu0 %v2622, %s2643
      %v2645 = vpop.permute.xlu0 %2644
      %s2647 = sor.u32 256, 48
      %2648 = vbcast.lane.b32.xlu0 %v2622, %s2647
      %v2649 = vpop.permute.xlu0 %2648
      %s2651 = sor.u32 256, 56
      %2652 = vbcast.lane.b32.xlu0 %v2622, %s2651
      %v2653 = vpop.permute.xlu0 %2652
      %v2654 = vlaneseq
      %v2655 = vshrl.u32 %v2654, 7
      %v2656 = vsub.s32 1, %v2655
      %v2657 = vrot.slane %v2127, %v2656
      %2659 = vbcast.lane.b32.xlu0 %v2657, 256
      %v2660 = vpop.permute.xlu0 %2659
      %s2662 = sor.u32 256, 8
      %2663 = vbcast.lane.b32.xlu0 %v2657, %s2662
      %v2664 = vpop.permute.xlu0 %2663
      %s2666 = sor.u32 256, 16
      %2667 = vbcast.lane.b32.xlu0 %v2657, %s2666
      %v2668 = vpop.permute.xlu0 %2667
      %s2670 = sor.u32 256, 24
      %2671 = vbcast.lane.b32.xlu0 %v2657, %s2670
      %v2672 = vpop.permute.xlu0 %2671
      %s2674 = sor.u32 256, 32
      %2675 = vbcast.lane.b32.xlu0 %v2657, %s2674
      %v2676 = vpop.permute.xlu0 %2675
      %s2678 = sor.u32 256, 40
      %2679 = vbcast.lane.b32.xlu0 %v2657, %s2678
      %v2680 = vpop.permute.xlu0 %2679
      %s2682 = sor.u32 256, 48
      %2683 = vbcast.lane.b32.xlu0 %v2657, %s2682
      %v2684 = vpop.permute.xlu0 %2683
      %s2686 = sor.u32 256, 56
      %2687 = vbcast.lane.b32.xlu0 %v2657, %s2686
      %v2688 = vpop.permute.xlu0 %2687
      %v2689 = vlaneseq
      %v2690 = vshrl.u32 %v2689, 7
      %v2691 = vsub.s32 2, %v2690
      %v2692 = vrot.slane %v2127, %v2691
      %2694 = vbcast.lane.b32.xlu0 %v2692, 256
      %v2695 = vpop.permute.xlu0 %2694
      %s2697 = sor.u32 256, 8
      %2698 = vbcast.lane.b32.xlu0 %v2692, %s2697
      %v2699 = vpop.permute.xlu0 %2698
      %s2701 = sor.u32 256, 16
      %2702 = vbcast.lane.b32.xlu0 %v2692, %s2701
      %v2703 = vpop.permute.xlu0 %2702
      %s2705 = sor.u32 256, 24
      %2706 = vbcast.lane.b32.xlu0 %v2692, %s2705
      %v2707 = vpop.permute.xlu0 %2706
      %s2709 = sor.u32 256, 32
      %2710 = vbcast.lane.b32.xlu0 %v2692, %s2709
      %v2711 = vpop.permute.xlu0 %2710
      %s2713 = sor.u32 256, 40
      %2714 = vbcast.lane.b32.xlu0 %v2692, %s2713
      %v2715 = vpop.permute.xlu0 %2714
      %s2717 = sor.u32 256, 48
      %2718 = vbcast.lane.b32.xlu0 %v2692, %s2717
      %v2719 = vpop.permute.xlu0 %2718
      %s2721 = sor.u32 256, 56
      %2722 = vbcast.lane.b32.xlu0 %v2692, %s2721
      %v2723 = vpop.permute.xlu0 %2722
      %v2724 = vlaneseq
      %v2725 = vshrl.u32 %v2724, 7
      %v2726 = vsub.s32 3, %v2725
      %v2727 = vrot.slane %v2127, %v2726
      %2729 = vbcast.lane.b32.xlu0 %v2727, 256
      %v2730 = vpop.permute.xlu0 %2729
      %s2732 = sor.u32 256, 8
      %2733 = vbcast.lane.b32.xlu0 %v2727, %s2732
      %v2734 = vpop.permute.xlu0 %2733
      %s2736 = sor.u32 256, 16
      %2737 = vbcast.lane.b32.xlu0 %v2727, %s2736
      %v2738 = vpop.permute.xlu0 %2737
      %s2740 = sor.u32 256, 24
      %2741 = vbcast.lane.b32.xlu0 %v2727, %s2740
      %v2742 = vpop.permute.xlu0 %2741
      %s2744 = sor.u32 256, 32
      %2745 = vbcast.lane.b32.xlu0 %v2727, %s2744
      %v2746 = vpop.permute.xlu0 %2745
      %s2748 = sor.u32 256, 40
      %2749 = vbcast.lane.b32.xlu0 %v2727, %s2748
      %v2750 = vpop.permute.xlu0 %2749
      %s2752 = sor.u32 256, 48
      %2753 = vbcast.lane.b32.xlu0 %v2727, %s2752
      %v2754 = vpop.permute.xlu0 %2753
      %s2756 = sor.u32 256, 56
      %2757 = vbcast.lane.b32.xlu0 %v2727, %s2756
      %v2758 = vpop.permute.xlu0 %2757
      %v2759 = vlaneseq
      %v2760 = vshrl.u32 %v2759, 7
      %v2761 = vsub.s32 4, %v2760
      %v2762 = vrot.slane %v2127, %v2761
      %2764 = vbcast.lane.b32.xlu0 %v2762, 256
      %v2765 = vpop.permute.xlu0 %2764
      %s2767 = sor.u32 256, 8
      %2768 = vbcast.lane.b32.xlu0 %v2762, %s2767
      %v2769 = vpop.permute.xlu0 %2768
      %s2771 = sor.u32 256, 16
      %2772 = vbcast.lane.b32.xlu0 %v2762, %s2771
      %v2773 = vpop.permute.xlu0 %2772
      %s2775 = sor.u32 256, 24
      %2776 = vbcast.lane.b32.xlu0 %v2762, %s2775
      %v2777 = vpop.permute.xlu0 %2776
      %s2779 = sor.u32 256, 32
      %2780 = vbcast.lane.b32.xlu0 %v2762, %s2779
      %v2781 = vpop.permute.xlu0 %2780
      %s2783 = sor.u32 256, 40
      %2784 = vbcast.lane.b32.xlu0 %v2762, %s2783
      %v2785 = vpop.permute.xlu0 %2784
      %s2787 = sor.u32 256, 48
      %2788 = vbcast.lane.b32.xlu0 %v2762, %s2787
      %v2789 = vpop.permute.xlu0 %2788
      %s2791 = sor.u32 256, 56
      %2792 = vbcast.lane.b32.xlu0 %v2762, %s2791
      %v2793 = vpop.permute.xlu0 %2792
      %v2794 = vlaneseq
      %v2795 = vshrl.u32 %v2794, 7
      %v2796 = vsub.s32 5, %v2795
      %v2797 = vrot.slane %v2127, %v2796
      %2799 = vbcast.lane.b32.xlu0 %v2797, 256
      %v2800 = vpop.permute.xlu0 %2799
      %s2802 = sor.u32 256, 8
      %2803 = vbcast.lane.b32.xlu0 %v2797, %s2802
      %v2804 = vpop.permute.xlu0 %2803
      %s2806 = sor.u32 256, 16
      %2807 = vbcast.lane.b32.xlu0 %v2797, %s2806
      %v2808 = vpop.permute.xlu0 %2807
      %s2810 = sor.u32 256, 24
      %2811 = vbcast.lane.b32.xlu0 %v2797, %s2810
      %v2812 = vpop.permute.xlu0 %2811
      %s2814 = sor.u32 256, 32
      %2815 = vbcast.lane.b32.xlu0 %v2797, %s2814
      %v2816 = vpop.permute.xlu0 %2815
      %s2818 = sor.u32 256, 40
      %2819 = vbcast.lane.b32.xlu0 %v2797, %s2818
      %v2820 = vpop.permute.xlu0 %2819
      %s2822 = sor.u32 256, 48
      %2823 = vbcast.lane.b32.xlu0 %v2797, %s2822
      %v2824 = vpop.permute.xlu0 %2823
      %s2826 = sor.u32 256, 56
      %2827 = vbcast.lane.b32.xlu0 %v2797, %s2826
      %v2828 = vpop.permute.xlu0 %2827
      %v2829 = vlaneseq
      %v2830 = vshrl.u32 %v2829, 7
      %v2831 = vsub.s32 6, %v2830
      %v2832 = vrot.slane %v2127, %v2831
      %2834 = vbcast.lane.b32.xlu0 %v2832, 256
      %v2835 = vpop.permute.xlu0 %2834
      %s2837 = sor.u32 256, 8
      %2838 = vbcast.lane.b32.xlu0 %v2832, %s2837
      %v2839 = vpop.permute.xlu0 %2838
      %s2841 = sor.u32 256, 16
      %2842 = vbcast.lane.b32.xlu0 %v2832, %s2841
      %v2843 = vpop.permute.xlu0 %2842
      %s2845 = sor.u32 256, 24
      %2846 = vbcast.lane.b32.xlu0 %v2832, %s2845
      %v2847 = vpop.permute.xlu0 %2846
      %s2849 = sor.u32 256, 32
      %2850 = vbcast.lane.b32.xlu0 %v2832, %s2849
      %v2851 = vpop.permute.xlu0 %2850
      %s2853 = sor.u32 256, 40
      %2854 = vbcast.lane.b32.xlu0 %v2832, %s2853
      %v2855 = vpop.permute.xlu0 %2854
      %s2857 = sor.u32 256, 48
      %2858 = vbcast.lane.b32.xlu0 %v2832, %s2857
      %v2859 = vpop.permute.xlu0 %2858
      %s2861 = sor.u32 256, 56
      %2862 = vbcast.lane.b32.xlu0 %v2832, %s2861
      %v2863 = vpop.permute.xlu0 %2862
      %v2864 = vlaneseq
      %v2865 = vshrl.u32 %v2864, 7
      %v2866 = vsub.s32 7, %v2865
      %v2867 = vrot.slane %v2127, %v2866
      %2869 = vbcast.lane.b32.xlu0 %v2867, 256
      %v2870 = vpop.permute.xlu0 %2869
      %s2872 = sor.u32 256, 8
      %2873 = vbcast.lane.b32.xlu0 %v2867, %s2872
      %v2874 = vpop.permute.xlu0 %2873
      %s2876 = sor.u32 256, 16
      %2877 = vbcast.lane.b32.xlu0 %v2867, %s2876
      %v2878 = vpop.permute.xlu0 %2877
      %s2880 = sor.u32 256, 24
      %2881 = vbcast.lane.b32.xlu0 %v2867, %s2880
      %v2882 = vpop.permute.xlu0 %2881
      %s2884 = sor.u32 256, 32
      %2885 = vbcast.lane.b32.xlu0 %v2867, %s2884
      %v2886 = vpop.permute.xlu0 %2885
      %s2888 = sor.u32 256, 40
      %2889 = vbcast.lane.b32.xlu0 %v2867, %s2888
      %v2890 = vpop.permute.xlu0 %2889
      %s2892 = sor.u32 256, 48
      %2893 = vbcast.lane.b32.xlu0 %v2867, %s2892
      %v2894 = vpop.permute.xlu0 %2893
      %s2896 = sor.u32 256, 56
      %2897 = vbcast.lane.b32.xlu0 %v2867, %s2896
      %v2898 = vpop.permute.xlu0 %2897
      %v2899 = vcombine.high %v2129, %v2129
      %v2901 = vunpack.c.l.s4 1966171168
      %v2902 = vunpack.c.0.s8 %v2901
      %v2903 = vlaneseq
      %v2904 = vshrl.u32 %v2903, 7
      %v2905 = vsub.s32 %v2902, %v2904
      %v2906 = vrot.slane %v2129, %v2905
      %v2908 = vunpack.c.l.s4 1966171168
      %v2909 = vunpack.c.0.s8 %v2908
      %v2910 = vlaneseq
      %v2911 = vshrl.u32 %v2910, 7
      %v2912 = vsub.s32 %v2909, %v2911
      %v2913 = vrot.slane %v2899, %v2912
      %v2914 = vcombine.high %v2906, %v2906
      %v2915 = vcombine.high %v2913, %v2913
      %v2917 = vunpack.c.l.s4 1966171168
      %v2918 = vunpack.c.0.s8 %v2917
      %v2919 = vlaneseq
      %v2920 = vshrl.u32 %v2919, 7
      %v2921 = vsub.s32 %v2918, %v2920
      %v2922 = vrot.slane %v2906, %v2921
      %v2924 = vunpack.c.l.s4 1966171168
      %v2925 = vunpack.c.0.s8 %v2924
      %v2926 = vlaneseq
      %v2927 = vshrl.u32 %v2926, 7
      %v2928 = vsub.s32 %v2925, %v2927
      %v2929 = vrot.slane %v2913, %v2928
      %v2931 = vunpack.c.l.s4 1966171168
      %v2932 = vunpack.c.0.s8 %v2931
      %v2933 = vlaneseq
      %v2934 = vshrl.u32 %v2933, 7
      %v2935 = vsub.s32 %v2932, %v2934
      %v2936 = vrot.slane %v2914, %v2935
      %v2938 = vunpack.c.l.s4 1966171168
      %v2939 = vunpack.c.0.s8 %v2938
      %v2940 = vlaneseq
      %v2941 = vshrl.u32 %v2940, 7
      %v2942 = vsub.s32 %v2939, %v2941
      %v2943 = vrot.slane %v2915, %v2942
      %v2944 = vcombine.high %v2922, %v2922
      %v2945 = vcombine.high %v2929, %v2929
      %v2946 = vcombine.high %v2936, %v2936
      %v2947 = vcombine.high %v2943, %v2943
      %v2948 = vlaneseq
      %v2949 = vshrl.u32 %v2948, 7
      %v2950 = vsub.s32 0, %v2949
      %v2951 = vrot.slane %v2922, %v2950
      %v2952 = vlaneseq
      %v2953 = vshrl.u32 %v2952, 7
      %v2954 = vsub.s32 0, %v2953
      %v2955 = vrot.slane %v2936, %v2954
      %v2956 = vlaneseq
      %v2957 = vshrl.u32 %v2956, 7
      %v2958 = vsub.s32 0, %v2957
      %v2959 = vrot.slane %v2944, %v2958
      %v2960 = vlaneseq
      %v2961 = vshrl.u32 %v2960, 7
      %v2962 = vsub.s32 0, %v2961
      %v2963 = vrot.slane %v2946, %v2962
      %v2964 = vlaneseq
      %v2965 = vshrl.u32 %v2964, 7
      %v2966 = vsub.s32 0, %v2965
      %v2967 = vrot.slane %v2929, %v2966
      %v2968 = vlaneseq
      %v2969 = vshrl.u32 %v2968, 7
      %v2970 = vsub.s32 0, %v2969
      %v2971 = vrot.slane %v2943, %v2970
      %v2972 = vlaneseq
      %v2973 = vshrl.u32 %v2972, 7
      %v2974 = vsub.s32 0, %v2973
      %v2975 = vrot.slane %v2945, %v2974
      %v2976 = vlaneseq
      %v2977 = vshrl.u32 %v2976, 7
      %v2978 = vsub.s32 0, %v2977
      %v2979 = vrot.slane %v2947, %v2978
      %vm2980 = vcmp.ne.s32.totalorder %v2625, %v2951
      %vm2981 = vcmp.ne.s32.totalorder %v2629, %v2951
      %vm2982 = vcmp.ne.s32.totalorder %v2633, %v2951
      %vm2983 = vcmp.ne.s32.totalorder %v2637, %v2951
      %vm2984 = vcmp.ne.s32.totalorder %v2641, %v2951
      %vm2985 = vcmp.ne.s32.totalorder %v2645, %v2951
      %vm2986 = vcmp.ne.s32.totalorder %v2649, %v2951
      %vm2987 = vcmp.ne.s32.totalorder %v2653, %v2951
      %vm2988 = vcmp.ne.s32.totalorder %v2660, %v2955
      %vm2989 = vcmp.ne.s32.totalorder %v2664, %v2955
      %vm2990 = vcmp.ne.s32.totalorder %v2668, %v2955
      %vm2991 = vcmp.ne.s32.totalorder %v2672, %v2955
      %vm2992 = vcmp.ne.s32.totalorder %v2676, %v2955
      %vm2993 = vcmp.ne.s32.totalorder %v2680, %v2955
      %vm2994 = vcmp.ne.s32.totalorder %v2684, %v2955
      %vm2995 = vcmp.ne.s32.totalorder %v2688, %v2955
      %vm2996 = vcmp.ne.s32.totalorder %v2695, %v2959
      %vm2997 = vcmp.ne.s32.totalorder %v2699, %v2959
      %vm2998 = vcmp.ne.s32.totalorder %v2703, %v2959
      %vm2999 = vcmp.ne.s32.totalorder %v2707, %v2959
      %vm3000 = vcmp.ne.s32.totalorder %v2711, %v2959
      %vm3001 = vcmp.ne.s32.totalorder %v2715, %v2959
      %vm3002 = vcmp.ne.s32.totalorder %v2719, %v2959
      %vm3003 = vcmp.ne.s32.totalorder %v2723, %v2959
      %vm3004 = vcmp.ne.s32.totalorder %v2730, %v2963
      %vm3005 = vcmp.ne.s32.totalorder %v2734, %v2963
      %vm3006 = vcmp.ne.s32.totalorder %v2738, %v2963
      %vm3007 = vcmp.ne.s32.totalorder %v2742, %v2963
      %vm3008 = vcmp.ne.s32.totalorder %v2746, %v2963
      %vm3009 = vcmp.ne.s32.totalorder %v2750, %v2963
      %vm3010 = vcmp.ne.s32.totalorder %v2754, %v2963
      %vm3011 = vcmp.ne.s32.totalorder %v2758, %v2963
      %vm3012 = vcmp.ne.s32.totalorder %v2765, %v2967
      %vm3013 = vcmp.ne.s32.totalorder %v2769, %v2967
      %vm3014 = vcmp.ne.s32.totalorder %v2773, %v2967
      %vm3015 = vcmp.ne.s32.totalorder %v2777, %v2967
      %vm3016 = vcmp.ne.s32.totalorder %v2781, %v2967
      %vm3017 = vcmp.ne.s32.totalorder %v2785, %v2967
      %vm3018 = vcmp.ne.s32.totalorder %v2789, %v2967
      %vm3019 = vcmp.ne.s32.totalorder %v2793, %v2967
      %vm3020 = vcmp.ne.s32.totalorder %v2800, %v2971
      %vm3021 = vcmp.ne.s32.totalorder %v2804, %v2971
      %vm3022 = vcmp.ne.s32.totalorder %v2808, %v2971
      %vm3023 = vcmp.ne.s32.totalorder %v2812, %v2971
      %vm3024 = vcmp.ne.s32.totalorder %v2816, %v2971
      %vm3025 = vcmp.ne.s32.totalorder %v2820, %v2971
      %vm3026 = vcmp.ne.s32.totalorder %v2824, %v2971
      %vm3027 = vcmp.ne.s32.totalorder %v2828, %v2971
      %vm3028 = vcmp.ne.s32.totalorder %v2835, %v2975
      %vm3029 = vcmp.ne.s32.totalorder %v2839, %v2975
      %vm3030 = vcmp.ne.s32.totalorder %v2843, %v2975
      %vm3031 = vcmp.ne.s32.totalorder %v2847, %v2975
      %vm3032 = vcmp.ne.s32.totalorder %v2851, %v2975
      %vm3033 = vcmp.ne.s32.totalorder %v2855, %v2975
      %vm3034 = vcmp.ne.s32.totalorder %v2859, %v2975
      %vm3035 = vcmp.ne.s32.totalorder %v2863, %v2975
      %vm3036 = vcmp.ne.s32.totalorder %v2870, %v2979
      %vm3037 = vcmp.ne.s32.totalorder %v2874, %v2979
      %vm3038 = vcmp.ne.s32.totalorder %v2878, %v2979
      %vm3039 = vcmp.ne.s32.totalorder %v2882, %v2979
      %vm3040 = vcmp.ne.s32.totalorder %v2886, %v2979
      %vm3041 = vcmp.ne.s32.totalorder %v2890, %v2979
      %vm3042 = vcmp.ne.s32.totalorder %v2894, %v2979
      %vm3043 = vcmp.ne.s32.totalorder %v2898, %v2979
      %v3044 = vsel %vm2980, -3.4028235e+38, %v2555
      %v3045 = vsel %vm2981, -3.4028235e+38, %v2556
      %v3046 = vsel %vm2982, -3.4028235e+38, %v2557
      %v3047 = vsel %vm2983, -3.4028235e+38, %v2558
      %v3048 = vsel %vm2984, -3.4028235e+38, %v2559
      %v3049 = vsel %vm2985, -3.4028235e+38, %v2560
      %v3050 = vsel %vm2986, -3.4028235e+38, %v2561
      %v3051 = vsel %vm2987, -3.4028235e+38, %v2562
      %v3052 = vsel %vm2988, -3.4028235e+38, %v2563
      %v3053 = vsel %vm2989, -3.4028235e+38, %v2564
      %v3054 = vsel %vm2990, -3.4028235e+38, %v2565
      %v3055 = vsel %vm2991, -3.4028235e+38, %v2566
      %v3056 = vsel %vm2992, -3.4028235e+38, %v2567
      %v3057 = vsel %vm2993, -3.4028235e+38, %v2568
      %v3058 = vsel %vm2994, -3.4028235e+38, %v2569
      %v3059 = vsel %vm2995, -3.4028235e+38, %v2570
      %v3060 = vsel %vm2996, -3.4028235e+38, %v2571
      %v3061 = vsel %vm2997, -3.4028235e+38, %v2572
      %v3062 = vsel %vm2998, -3.4028235e+38, %v2573
      %v3063 = vsel %vm2999, -3.4028235e+38, %v2574
      %v3064 = vsel %vm3000, -3.4028235e+38, %v2575
      %v3065 = vsel %vm3001, -3.4028235e+38, %v2576
      %v3066 = vsel %vm3002, -3.4028235e+38, %v2577
      %v3067 = vsel %vm3003, -3.4028235e+38, %v2578
      %v3068 = vsel %vm3004, -3.4028235e+38, %v2579
      %v3069 = vsel %vm3005, -3.4028235e+38, %v2580
      %v3070 = vsel %vm3006, -3.4028235e+38, %v2581
      %v3071 = vsel %vm3007, -3.4028235e+38, %v2582
      %v3072 = vsel %vm3008, -3.4028235e+38, %v2583
      %v3073 = vsel %vm3009, -3.4028235e+38, %v2584
      %v3074 = vsel %vm3010, -3.4028235e+38, %v2585
      %v3075 = vsel %vm3011, -3.4028235e+38, %v2586
      %v3076 = vsel %vm3012, -3.4028235e+38, %v2587
      %v3077 = vsel %vm3013, -3.4028235e+38, %v2588
      %v3078 = vsel %vm3014, -3.4028235e+38, %v2589
      %v3079 = vsel %vm3015, -3.4028235e+38, %v2590
      %v3080 = vsel %vm3016, -3.4028235e+38, %v2591
      %v3081 = vsel %vm3017, -3.4028235e+38, %v2592
      %v3082 = vsel %vm3018, -3.4028235e+38, %v2593
      %v3083 = vsel %vm3019, -3.4028235e+38, %v2594
      %v3084 = vsel %vm3020, -3.4028235e+38, %v2595
      %v3085 = vsel %vm3021, -3.4028235e+38, %v2596
      %v3086 = vsel %vm3022, -3.4028235e+38, %v2597
      %v3087 = vsel %vm3023, -3.4028235e+38, %v2598
      %v3088 = vsel %vm3024, -3.4028235e+38, %v2599
      %v3089 = vsel %vm3025, -3.4028235e+38, %v2600
      %v3090 = vsel %vm3026, -3.4028235e+38, %v2601
      %v3091 = vsel %vm3027, -3.4028235e+38, %v2602
      %v3092 = vsel %vm3028, -3.4028235e+38, %v2603
      %v3093 = vsel %vm3029, -3.4028235e+38, %v2604
      %v3094 = vsel %vm3030, -3.4028235e+38, %v2605
      %v3095 = vsel %vm3031, -3.4028235e+38, %v2606
      %v3096 = vsel %vm3032, -3.4028235e+38, %v2607
      %v3097 = vsel %vm3033, -3.4028235e+38, %v2608
      %v3098 = vsel %vm3034, -3.4028235e+38, %v2609
      %v3099 = vsel %vm3035, -3.4028235e+38, %v2610
      %v3100 = vsel %vm3036, -3.4028235e+38, %v2611
      %v3101 = vsel %vm3037, -3.4028235e+38, %v2612
      %v3102 = vsel %vm3038, -3.4028235e+38, %v2613
      %v3103 = vsel %vm3039, -3.4028235e+38, %v2614
      %v3104 = vsel %vm3040, -3.4028235e+38, %v2615
      %v3105 = vsel %vm3041, -3.4028235e+38, %v2616
      %v3106 = vsel %vm3042, -3.4028235e+38, %v2617
      %v3107 = vsel %vm3043, -3.4028235e+38, %v2618
      %3108 = vmax.xlane.f32.xlu0 %v3044
      %v3109 = vpop.xlane.xlu0 %3108
      %3110 = vmax.xlane.f32.xlu0 %v3045
      %v3111 = vpop.xlane.xlu0 %3110
      %3112 = vmax.xlane.f32.xlu0 %v3046
      %v3113 = vpop.xlane.xlu0 %3112
      %3114 = vmax.xlane.f32.xlu0 %v3047
      %v3115 = vpop.xlane.xlu0 %3114
      %3116 = vmax.xlane.f32.xlu0 %v3048
      %v3117 = vpop.xlane.xlu0 %3116
      %3118 = vmax.xlane.f32.xlu0 %v3049
      %v3119 = vpop.xlane.xlu0 %3118
      %3120 = vmax.xlane.f32.xlu0 %v3050
      %v3121 = vpop.xlane.xlu0 %3120
      %3122 = vmax.xlane.f32.xlu0 %v3051
      %v3123 = vpop.xlane.xlu0 %3122
      %3124 = vmax.xlane.f32.xlu0 %v3052
      %v3125 = vpop.xlane.xlu0 %3124
      %3126 = vmax.xlane.f32.xlu0 %v3053
      %v3127 = vpop.xlane.xlu0 %3126
      %3128 = vmax.xlane.f32.xlu0 %v3054
      %v3129 = vpop.xlane.xlu0 %3128
      %3130 = vmax.xlane.f32.xlu0 %v3055
      %v3131 = vpop.xlane.xlu0 %3130
      %3132 = vmax.xlane.f32.xlu0 %v3056
      %v3133 = vpop.xlane.xlu0 %3132
      %3134 = vmax.xlane.f32.xlu0 %v3057
      %v3135 = vpop.xlane.xlu0 %3134
      %3136 = vmax.xlane.f32.xlu0 %v3058
      %v3137 = vpop.xlane.xlu0 %3136
      %3138 = vmax.xlane.f32.xlu0 %v3059
      %v3139 = vpop.xlane.xlu0 %3138
      %3140 = vmax.xlane.f32.xlu0 %v3060
      %v3141 = vpop.xlane.xlu0 %3140
      %3142 = vmax.xlane.f32.xlu0 %v3061
      %v3143 = vpop.xlane.xlu0 %3142
      %3144 = vmax.xlane.f32.xlu0 %v3062
      %v3145 = vpop.xlane.xlu0 %3144
      %3146 = vmax.xlane.f32.xlu0 %v3063
      %v3147 = vpop.xlane.xlu0 %3146
      %3148 = vmax.xlane.f32.xlu0 %v3064
      %v3149 = vpop.xlane.xlu0 %3148
      %3150 = vmax.xlane.f32.xlu0 %v3065
      %v3151 = vpop.xlane.xlu0 %3150
      %3152 = vmax.xlane.f32.xlu0 %v3066
      %v3153 = vpop.xlane.xlu0 %3152
      %3154 = vmax.xlane.f32.xlu0 %v3067
      %v3155 = vpop.xlane.xlu0 %3154
      %3156 = vmax.xlane.f32.xlu0 %v3068
      %v3157 = vpop.xlane.xlu0 %3156
      %3158 = vmax.xlane.f32.xlu0 %v3069
      %v3159 = vpop.xlane.xlu0 %3158
      %3160 = vmax.xlane.f32.xlu0 %v3070
      %v3161 = vpop.xlane.xlu0 %3160
      %3162 = vmax.xlane.f32.xlu0 %v3071
      %v3163 = vpop.xlane.xlu0 %3162
      %3164 = vmax.xlane.f32.xlu0 %v3072
      %v3165 = vpop.xlane.xlu0 %3164
      %3166 = vmax.xlane.f32.xlu0 %v3073
      %v3167 = vpop.xlane.xlu0 %3166
      %3168 = vmax.xlane.f32.xlu0 %v3074
      %v3169 = vpop.xlane.xlu0 %3168
      %3170 = vmax.xlane.f32.xlu0 %v3075
      %v3171 = vpop.xlane.xlu0 %3170
      %3172 = vmax.xlane.f32.xlu0 %v3076
      %v3173 = vpop.xlane.xlu0 %3172
      %3174 = vmax.xlane.f32.xlu0 %v3077
      %v3175 = vpop.xlane.xlu0 %3174
      %3176 = vmax.xlane.f32.xlu0 %v3078
      %v3177 = vpop.xlane.xlu0 %3176
      %3178 = vmax.xlane.f32.xlu0 %v3079
      %v3179 = vpop.xlane.xlu0 %3178
      %3180 = vmax.xlane.f32.xlu0 %v3080
      %v3181 = vpop.xlane.xlu0 %3180
      %3182 = vmax.xlane.f32.xlu0 %v3081
      %v3183 = vpop.xlane.xlu0 %3182
      %3184 = vmax.xlane.f32.xlu0 %v3082
      %v3185 = vpop.xlane.xlu0 %3184
      %3186 = vmax.xlane.f32.xlu0 %v3083
      %v3187 = vpop.xlane.xlu0 %3186
      %3188 = vmax.xlane.f32.xlu0 %v3084
      %v3189 = vpop.xlane.xlu0 %3188
      %3190 = vmax.xlane.f32.xlu0 %v3085
      %v3191 = vpop.xlane.xlu0 %3190
      %3192 = vmax.xlane.f32.xlu0 %v3086
      %v3193 = vpop.xlane.xlu0 %3192
      %3194 = vmax.xlane.f32.xlu0 %v3087
      %v3195 = vpop.xlane.xlu0 %3194
      %3196 = vmax.xlane.f32.xlu0 %v3088
      %v3197 = vpop.xlane.xlu0 %3196
      %3198 = vmax.xlane.f32.xlu0 %v3089
      %v3199 = vpop.xlane.xlu0 %3198
      %3200 = vmax.xlane.f32.xlu0 %v3090
      %v3201 = vpop.xlane.xlu0 %3200
      %3202 = vmax.xlane.f32.xlu0 %v3091
      %v3203 = vpop.xlane.xlu0 %3202
      %3204 = vmax.xlane.f32.xlu0 %v3092
      %v3205 = vpop.xlane.xlu0 %3204
      %3206 = vmax.xlane.f32.xlu0 %v3093
      %v3207 = vpop.xlane.xlu0 %3206
      %3208 = vmax.xlane.f32.xlu0 %v3094
      %v3209 = vpop.xlane.xlu0 %3208
      %3210 = vmax.xlane.f32.xlu0 %v3095
      %v3211 = vpop.xlane.xlu0 %3210
      %3212 = vmax.xlane.f32.xlu0 %v3096
      %v3213 = vpop.xlane.xlu0 %3212
      %3214 = vmax.xlane.f32.xlu0 %v3097
      %v3215 = vpop.xlane.xlu0 %3214
      %3216 = vmax.xlane.f32.xlu0 %v3098
      %v3217 = vpop.xlane.xlu0 %3216
      %3218 = vmax.xlane.f32.xlu0 %v3099
      %v3219 = vpop.xlane.xlu0 %3218
      %3220 = vmax.xlane.f32.xlu0 %v3100
      %v3221 = vpop.xlane.xlu0 %3220
      %3222 = vmax.xlane.f32.xlu0 %v3101
      %v3223 = vpop.xlane.xlu0 %3222
      %3224 = vmax.xlane.f32.xlu0 %v3102
      %v3225 = vpop.xlane.xlu0 %3224
      %3226 = vmax.xlane.f32.xlu0 %v3103
      %v3227 = vpop.xlane.xlu0 %3226
      %3228 = vmax.xlane.f32.xlu0 %v3104
      %v3229 = vpop.xlane.xlu0 %3228
      %3230 = vmax.xlane.f32.xlu0 %v3105
      %v3231 = vpop.xlane.xlu0 %3230
      %3232 = vmax.xlane.f32.xlu0 %v3106
      %v3233 = vpop.xlane.xlu0 %3232
      %3234 = vmax.xlane.f32.xlu0 %v3107
      %v3235 = vpop.xlane.xlu0 %3234
      %v3236 = vsub.f32 %v3044, %v3109
      %v3237 = vsub.f32 %v3045, %v3111
      %v3238 = vsub.f32 %v3046, %v3113
      %v3239 = vsub.f32 %v3047, %v3115
      %v3240 = vsub.f32 %v3048, %v3117
      %v3241 = vsub.f32 %v3049, %v3119
      %v3242 = vsub.f32 %v3050, %v3121
      %v3243 = vsub.f32 %v3051, %v3123
      %v3244 = vsub.f32 %v3052, %v3125
      %v3245 = vsub.f32 %v3053, %v3127
      %v3246 = vsub.f32 %v3054, %v3129
      %v3247 = vsub.f32 %v3055, %v3131
      %v3248 = vsub.f32 %v3056, %v3133
      %v3249 = vsub.f32 %v3057, %v3135
      %v3250 = vsub.f32 %v3058, %v3137
      %v3251 = vsub.f32 %v3059, %v3139
      %v3252 = vsub.f32 %v3060, %v3141
      %v3253 = vsub.f32 %v3061, %v3143
      %v3254 = vsub.f32 %v3062, %v3145
      %v3255 = vsub.f32 %v3063, %v3147
      %v3256 = vsub.f32 %v3064, %v3149
      %v3257 = vsub.f32 %v3065, %v3151
      %v3258 = vsub.f32 %v3066, %v3153
      %v3259 = vsub.f32 %v3067, %v3155
      %v3260 = vsub.f32 %v3068, %v3157
      %v3261 = vsub.f32 %v3069, %v3159
      %v3262 = vsub.f32 %v3070, %v3161
      %v3263 = vsub.f32 %v3071, %v3163
      %v3264 = vsub.f32 %v3072, %v3165
      %v3265 = vsub.f32 %v3073, %v3167
      %v3266 = vsub.f32 %v3074, %v3169
      %v3267 = vsub.f32 %v3075, %v3171
      %v3268 = vsub.f32 %v3076, %v3173
      %v3269 = vsub.f32 %v3077, %v3175
      %v3270 = vsub.f32 %v3078, %v3177
      %v3271 = vsub.f32 %v3079, %v3179
      %v3272 = vsub.f32 %v3080, %v3181
      %v3273 = vsub.f32 %v3081, %v3183
      %v3274 = vsub.f32 %v3082, %v3185
      %v3275 = vsub.f32 %v3083, %v3187
      %v3276 = vsub.f32 %v3084, %v3189
      %v3277 = vsub.f32 %v3085, %v3191
      %v3278 = vsub.f32 %v3086, %v3193
      %v3279 = vsub.f32 %v3087, %v3195
      %v3280 = vsub.f32 %v3088, %v3197
      %v3281 = vsub.f32 %v3089, %v3199
      %v3282 = vsub.f32 %v3090, %v3201
      %v3283 = vsub.f32 %v3091, %v3203
      %v3284 = vsub.f32 %v3092, %v3205
      %v3285 = vsub.f32 %v3093, %v3207
      %v3286 = vsub.f32 %v3094, %v3209
      %v3287 = vsub.f32 %v3095, %v3211
      %v3288 = vsub.f32 %v3096, %v3213
      %v3289 = vsub.f32 %v3097, %v3215
      %v3290 = vsub.f32 %v3098, %v3217
      %v3291 = vsub.f32 %v3099, %v3219
      %v3292 = vsub.f32 %v3100, %v3221
      %v3293 = vsub.f32 %v3101, %v3223
      %v3294 = vsub.f32 %v3102, %v3225
      %v3295 = vsub.f32 %v3103, %v3227
      %v3296 = vsub.f32 %v3104, %v3229
      %v3297 = vsub.f32 %v3105, %v3231
      %v3298 = vsub.f32 %v3106, %v3233
      %v3299 = vsub.f32 %v3107, %v3235
      %v3300 = vmul.f32 %v3236, 1.442695
      %v3301 = vpow.pop %v3300
      %v3302 = vmul.f32 %v3237, 1.442695
      %v3303 = vpow.pop %v3302
      %v3304 = vmul.f32 %v3238, 1.442695
      %v3305 = vpow.pop %v3304
      %v3306 = vmul.f32 %v3239, 1.442695
      %v3307 = vpow.pop %v3306
      %v3308 = vmul.f32 %v3240, 1.442695
      %v3309 = vpow.pop %v3308
      %v3310 = vmul.f32 %v3241, 1.442695
      %v3311 = vpow.pop %v3310
      %v3312 = vmul.f32 %v3242, 1.442695
      %v3313 = vpow.pop %v3312
      %v3314 = vmul.f32 %v3243, 1.442695
      %v3315 = vpow.pop %v3314
      %v3316 = vmul.f32 %v3244, 1.442695
      %v3317 = vpow.pop %v3316
      %v3318 = vmul.f32 %v3245, 1.442695
      %v3319 = vpow.pop %v3318
      %v3320 = vmul.f32 %v3246, 1.442695
      %v3321 = vpow.pop %v3320
      %v3322 = vmul.f32 %v3247, 1.442695
      %v3323 = vpow.pop %v3322
      %v3324 = vmul.f32 %v3248, 1.442695
      %v3325 = vpow.pop %v3324
      %v3326 = vmul.f32 %v3249, 1.442695
      %v3327 = vpow.pop %v3326
      %v3328 = vmul.f32 %v3250, 1.442695
      %v3329 = vpow.pop %v3328
      %v3330 = vmul.f32 %v3251, 1.442695
      %v3331 = vpow.pop %v3330
      %v3332 = vmul.f32 %v3252, 1.442695
      %v3333 = vpow.pop %v3332
      %v3334 = vmul.f32 %v3253, 1.442695
      %v3335 = vpow.pop %v3334
      %v3336 = vmul.f32 %v3254, 1.442695
      %v3337 = vpow.pop %v3336
      %v3338 = vmul.f32 %v3255, 1.442695
      %v3339 = vpow.pop %v3338
      %v3340 = vmul.f32 %v3256, 1.442695
      %v3341 = vpow.pop %v3340
      %v3342 = vmul.f32 %v3257, 1.442695
      %v3343 = vpow.pop %v3342
      %v3344 = vmul.f32 %v3258, 1.442695
      %v3345 = vpow.pop %v3344
      %v3346 = vmul.f32 %v3259, 1.442695
      %v3347 = vpow.pop %v3346
      %v3348 = vmul.f32 %v3260, 1.442695
      %v3349 = vpow.pop %v3348
      %v3350 = vmul.f32 %v3261, 1.442695
      %v3351 = vpow.pop %v3350
      %v3352 = vmul.f32 %v3262, 1.442695
      %v3353 = vpow.pop %v3352
      %v3354 = vmul.f32 %v3263, 1.442695
      %v3355 = vpow.pop %v3354
      %v3356 = vmul.f32 %v3264, 1.442695
      %v3357 = vpow.pop %v3356
      %v3358 = vmul.f32 %v3265, 1.442695
      %v3359 = vpow.pop %v3358
      %v3360 = vmul.f32 %v3266, 1.442695
      %v3361 = vpow.pop %v3360
      %v3362 = vmul.f32 %v3267, 1.442695
      %v3363 = vpow.pop %v3362
      %v3364 = vmul.f32 %v3268, 1.442695
      %v3365 = vpow.pop %v3364
      %v3366 = vmul.f32 %v3269, 1.442695
      %v3367 = vpow.pop %v3366
      %v3368 = vmul.f32 %v3270, 1.442695
      %v3369 = vpow.pop %v3368
      %v3370 = vmul.f32 %v3271, 1.442695
      %v3371 = vpow.pop %v3370
      %v3372 = vmul.f32 %v3272, 1.442695
      %v3373 = vpow.pop %v3372
      %v3374 = vmul.f32 %v3273, 1.442695
      %v3375 = vpow.pop %v3374
      %v3376 = vmul.f32 %v3274, 1.442695
      %v3377 = vpow.pop %v3376
      %v3378 = vmul.f32 %v3275, 1.442695
      %v3379 = vpow.pop %v3378
      %v3380 = vmul.f32 %v3276, 1.442695
      %v3381 = vpow.pop %v3380
      %v3382 = vmul.f32 %v3277, 1.442695
      %v3383 = vpow.pop %v3382
      %v3384 = vmul.f32 %v3278, 1.442695
      %v3385 = vpow.pop %v3384
      %v3386 = vmul.f32 %v3279, 1.442695
      %v3387 = vpow.pop %v3386
      %v3388 = vmul.f32 %v3280, 1.442695
      %v3389 = vpow.pop %v3388
      %v3390 = vmul.f32 %v3281, 1.442695
      %v3391 = vpow.pop %v3390
      %v3392 = vmul.f32 %v3282, 1.442695
      %v3393 = vpow.pop %v3392
      %v3394 = vmul.f32 %v3283, 1.442695
      %v3395 = vpow.pop %v3394
      %v3396 = vmul.f32 %v3284, 1.442695
      %v3397 = vpow.pop %v3396
      %v3398 = vmul.f32 %v3285, 1.442695
      %v3399 = vpow.pop %v3398
      %v3400 = vmul.f32 %v3286, 1.442695
      %v3401 = vpow.pop %v3400
      %v3402 = vmul.f32 %v3287, 1.442695
      %v3403 = vpow.pop %v3402
      %v3404 = vmul.f32 %v3288, 1.442695
      %v3405 = vpow.pop %v3404
      %v3406 = vmul.f32 %v3289, 1.442695
      %v3407 = vpow.pop %v3406
      %v3408 = vmul.f32 %v3290, 1.442695
      %v3409 = vpow.pop %v3408
      %v3410 = vmul.f32 %v3291, 1.442695
      %v3411 = vpow.pop %v3410
      %v3412 = vmul.f32 %v3292, 1.442695
      %v3413 = vpow.pop %v3412
      %v3414 = vmul.f32 %v3293, 1.442695
      %v3415 = vpow.pop %v3414
      %v3416 = vmul.f32 %v3294, 1.442695
      %v3417 = vpow.pop %v3416
      %v3418 = vmul.f32 %v3295, 1.442695
      %v3419 = vpow.pop %v3418
      %v3420 = vmul.f32 %v3296, 1.442695
      %v3421 = vpow.pop %v3420
      %v3422 = vmul.f32 %v3297, 1.442695
      %v3423 = vpow.pop %v3422
      %v3424 = vmul.f32 %v3298, 1.442695
      %v3425 = vpow.pop %v3424
      %v3426 = vmul.f32 %v3299, 1.442695
      %v3427 = vpow.pop %v3426
      %3428 = vadd.xlane.f32.xlu0 %v3301
      %v3429 = vpop.xlane.xlu0 %3428
      %3430 = vadd.xlane.f32.xlu0 %v3303
      %v3431 = vpop.xlane.xlu0 %3430
      %3432 = vadd.xlane.f32.xlu0 %v3305
      %v3433 = vpop.xlane.xlu0 %3432
      %3434 = vadd.xlane.f32.xlu0 %v3307
      %v3435 = vpop.xlane.xlu0 %3434
      %3436 = vadd.xlane.f32.xlu0 %v3309
      %v3437 = vpop.xlane.xlu0 %3436
      %3438 = vadd.xlane.f32.xlu0 %v3311
      %v3439 = vpop.xlane.xlu0 %3438
      %3440 = vadd.xlane.f32.xlu0 %v3313
      %v3441 = vpop.xlane.xlu0 %3440
      %3442 = vadd.xlane.f32.xlu0 %v3315
      %v3443 = vpop.xlane.xlu0 %3442
      %3444 = vadd.xlane.f32.xlu0 %v3317
      %v3445 = vpop.xlane.xlu0 %3444
      %3446 = vadd.xlane.f32.xlu0 %v3319
      %v3447 = vpop.xlane.xlu0 %3446
      %3448 = vadd.xlane.f32.xlu0 %v3321
      %v3449 = vpop.xlane.xlu0 %3448
      %3450 = vadd.xlane.f32.xlu0 %v3323
      %v3451 = vpop.xlane.xlu0 %3450
      %3452 = vadd.xlane.f32.xlu0 %v3325
      %v3453 = vpop.xlane.xlu0 %3452
      %3454 = vadd.xlane.f32.xlu0 %v3327
      %v3455 = vpop.xlane.xlu0 %3454
      %3456 = vadd.xlane.f32.xlu0 %v3329
      %v3457 = vpop.xlane.xlu0 %3456
      %3458 = vadd.xlane.f32.xlu0 %v3331
      %v3459 = vpop.xlane.xlu0 %3458
      %3460 = vadd.xlane.f32.xlu0 %v3333
      %v3461 = vpop.xlane.xlu0 %3460
      %3462 = vadd.xlane.f32.xlu0 %v3335
      %v3463 = vpop.xlane.xlu0 %3462
      %3464 = vadd.xlane.f32.xlu0 %v3337
      %v3465 = vpop.xlane.xlu0 %3464
      %3466 = vadd.xlane.f32.xlu0 %v3339
      %v3467 = vpop.xlane.xlu0 %3466
      %3468 = vadd.xlane.f32.xlu0 %v3341
      %v3469 = vpop.xlane.xlu0 %3468
      %3470 = vadd.xlane.f32.xlu0 %v3343
      %v3471 = vpop.xlane.xlu0 %3470
      %3472 = vadd.xlane.f32.xlu0 %v3345
      %v3473 = vpop.xlane.xlu0 %3472
      %3474 = vadd.xlane.f32.xlu0 %v3347
      %v3475 = vpop.xlane.xlu0 %3474
      %3476 = vadd.xlane.f32.xlu0 %v3349
      %v3477 = vpop.xlane.xlu0 %3476
      %3478 = vadd.xlane.f32.xlu0 %v3351
      %v3479 = vpop.xlane.xlu0 %3478
      %3480 = vadd.xlane.f32.xlu0 %v3353
      %v3481 = vpop.xlane.xlu0 %3480
      %3482 = vadd.xlane.f32.xlu0 %v3355
      %v3483 = vpop.xlane.xlu0 %3482
      %3484 = vadd.xlane.f32.xlu0 %v3357
      %v3485 = vpop.xlane.xlu0 %3484
      %3486 = vadd.xlane.f32.xlu0 %v3359
      %v3487 = vpop.xlane.xlu0 %3486
      %3488 = vadd.xlane.f32.xlu0 %v3361
      %v3489 = vpop.xlane.xlu0 %3488
      %3490 = vadd.xlane.f32.xlu0 %v3363
      %v3491 = vpop.xlane.xlu0 %3490
      %3492 = vadd.xlane.f32.xlu0 %v3365
      %v3493 = vpop.xlane.xlu0 %3492
      %3494 = vadd.xlane.f32.xlu0 %v3367
      %v3495 = vpop.xlane.xlu0 %3494
      %3496 = vadd.xlane.f32.xlu0 %v3369
      %v3497 = vpop.xlane.xlu0 %3496
      %3498 = vadd.xlane.f32.xlu0 %v3371
      %v3499 = vpop.xlane.xlu0 %3498
      %3500 = vadd.xlane.f32.xlu0 %v3373
      %v3501 = vpop.xlane.xlu0 %3500
      %3502 = vadd.xlane.f32.xlu0 %v3375
      %v3503 = vpop.xlane.xlu0 %3502
      %3504 = vadd.xlane.f32.xlu0 %v3377
      %v3505 = vpop.xlane.xlu0 %3504
      %3506 = vadd.xlane.f32.xlu0 %v3379
      %v3507 = vpop.xlane.xlu0 %3506
      %3508 = vadd.xlane.f32.xlu0 %v3381
      %v3509 = vpop.xlane.xlu0 %3508
      %3510 = vadd.xlane.f32.xlu0 %v3383
      %v3511 = vpop.xlane.xlu0 %3510
      %3512 = vadd.xlane.f32.xlu0 %v3385
      %v3513 = vpop.xlane.xlu0 %3512
      %3514 = vadd.xlane.f32.xlu0 %v3387
      %v3515 = vpop.xlane.xlu0 %3514
      %3516 = vadd.xlane.f32.xlu0 %v3389
      %v3517 = vpop.xlane.xlu0 %3516
      %3518 = vadd.xlane.f32.xlu0 %v3391
      %v3519 = vpop.xlane.xlu0 %3518
      %3520 = vadd.xlane.f32.xlu0 %v3393
      %v3521 = vpop.xlane.xlu0 %3520
      %3522 = vadd.xlane.f32.xlu0 %v3395
      %v3523 = vpop.xlane.xlu0 %3522
      %3524 = vadd.xlane.f32.xlu0 %v3397
      %v3525 = vpop.xlane.xlu0 %3524
      %3526 = vadd.xlane.f32.xlu0 %v3399
      %v3527 = vpop.xlane.xlu0 %3526
      %3528 = vadd.xlane.f32.xlu0 %v3401
      %v3529 = vpop.xlane.xlu0 %3528
      %3530 = vadd.xlane.f32.xlu0 %v3403
      %v3531 = vpop.xlane.xlu0 %3530
      %3532 = vadd.xlane.f32.xlu0 %v3405
      %v3533 = vpop.xlane.xlu0 %3532
      %3534 = vadd.xlane.f32.xlu0 %v3407
      %v3535 = vpop.xlane.xlu0 %3534
      %3536 = vadd.xlane.f32.xlu0 %v3409
      %v3537 = vpop.xlane.xlu0 %3536
      %3538 = vadd.xlane.f32.xlu0 %v3411
      %v3539 = vpop.xlane.xlu0 %3538
      %3540 = vadd.xlane.f32.xlu0 %v3413
      %v3541 = vpop.xlane.xlu0 %3540
      %3542 = vadd.xlane.f32.xlu0 %v3415
      %v3543 = vpop.xlane.xlu0 %3542
      %3544 = vadd.xlane.f32.xlu0 %v3417
      %v3545 = vpop.xlane.xlu0 %3544
      %3546 = vadd.xlane.f32.xlu0 %v3419
      %v3547 = vpop.xlane.xlu0 %3546
      %3548 = vadd.xlane.f32.xlu0 %v3421
      %v3549 = vpop.xlane.xlu0 %3548
      %3550 = vadd.xlane.f32.xlu0 %v3423
      %v3551 = vpop.xlane.xlu0 %3550
      %3552 = vadd.xlane.f32.xlu0 %v3425
      %v3553 = vpop.xlane.xlu0 %3552
      %3554 = vadd.xlane.f32.xlu0 %v3427
      %v3555 = vpop.xlane.xlu0 %3554
      %v3556 = vlog2.pop %v3429
      %v3557 = vmul.f32 %v3556, 0.6931472
      %v3558 = vlog2.pop %v3431
      %v3559 = vmul.f32 %v3558, 0.6931472
      %v3560 = vlog2.pop %v3433
      %v3561 = vmul.f32 %v3560, 0.6931472
      %v3562 = vlog2.pop %v3435
      %v3563 = vmul.f32 %v3562, 0.6931472
      %v3564 = vlog2.pop %v3437
      %v3565 = vmul.f32 %v3564, 0.6931472
      %v3566 = vlog2.pop %v3439
      %v3567 = vmul.f32 %v3566, 0.6931472
      %v3568 = vlog2.pop %v3441
      %v3569 = vmul.f32 %v3568, 0.6931472
      %v3570 = vlog2.pop %v3443
      %v3571 = vmul.f32 %v3570, 0.6931472
      %v3572 = vlog2.pop %v3445
      %v3573 = vmul.f32 %v3572, 0.6931472
      %v3574 = vlog2.pop %v3447
      %v3575 = vmul.f32 %v3574, 0.6931472
      %v3576 = vlog2.pop %v3449
      %v3577 = vmul.f32 %v3576, 0.6931472
      %v3578 = vlog2.pop %v3451
      %v3579 = vmul.f32 %v3578, 0.6931472
      %v3580 = vlog2.pop %v3453
      %v3581 = vmul.f32 %v3580, 0.6931472
      %v3582 = vlog2.pop %v3455
      %v3583 = vmul.f32 %v3582, 0.6931472
      %v3584 = vlog2.pop %v3457
      %v3585 = vmul.f32 %v3584, 0.6931472
      %v3586 = vlog2.pop %v3459
      %v3587 = vmul.f32 %v3586, 0.6931472
      %v3588 = vlog2.pop %v3461
      %v3589 = vmul.f32 %v3588, 0.6931472
      %v3590 = vlog2.pop %v3463
      %v3591 = vmul.f32 %v3590, 0.6931472
      %v3592 = vlog2.pop %v3465
      %v3593 = vmul.f32 %v3592, 0.6931472
      %v3594 = vlog2.pop %v3467
      %v3595 = vmul.f32 %v3594, 0.6931472
      %v3596 = vlog2.pop %v3469
      %v3597 = vmul.f32 %v3596, 0.6931472
      %v3598 = vlog2.pop %v3471
      %v3599 = vmul.f32 %v3598, 0.6931472
      %v3600 = vlog2.pop %v3473
      %v3601 = vmul.f32 %v3600, 0.6931472
      %v3602 = vlog2.pop %v3475
      %v3603 = vmul.f32 %v3602, 0.6931472
      %v3604 = vlog2.pop %v3477
      %v3605 = vmul.f32 %v3604, 0.6931472
      %v3606 = vlog2.pop %v3479
      %v3607 = vmul.f32 %v3606, 0.6931472
      %v3608 = vlog2.pop %v3481
      %v3609 = vmul.f32 %v3608, 0.6931472
      %v3610 = vlog2.pop %v3483
      %v3611 = vmul.f32 %v3610, 0.6931472
      %v3612 = vlog2.pop %v3485
      %v3613 = vmul.f32 %v3612, 0.6931472
      %v3614 = vlog2.pop %v3487
      %v3615 = vmul.f32 %v3614, 0.6931472
      %v3616 = vlog2.pop %v3489
      %v3617 = vmul.f32 %v3616, 0.6931472
      %v3618 = vlog2.pop %v3491
      %v3619 = vmul.f32 %v3618, 0.6931472
      %v3620 = vlog2.pop %v3493
      %v3621 = vmul.f32 %v3620, 0.6931472
      %v3622 = vlog2.pop %v3495
      %v3623 = vmul.f32 %v3622, 0.6931472
      %v3624 = vlog2.pop %v3497
      %v3625 = vmul.f32 %v3624, 0.6931472
      %v3626 = vlog2.pop %v3499
      %v3627 = vmul.f32 %v3626, 0.6931472
      %v3628 = vlog2.pop %v3501
      %v3629 = vmul.f32 %v3628, 0.6931472
      %v3630 = vlog2.pop %v3503
      %v3631 = vmul.f32 %v3630, 0.6931472
      %v3632 = vlog2.pop %v3505
      %v3633 = vmul.f32 %v3632, 0.6931472
      %v3634 = vlog2.pop %v3507
      %v3635 = vmul.f32 %v3634, 0.6931472
      %v3636 = vlog2.pop %v3509
      %v3637 = vmul.f32 %v3636, 0.6931472
      %v3638 = vlog2.pop %v3511
      %v3639 = vmul.f32 %v3638, 0.6931472
      %v3640 = vlog2.pop %v3513
      %v3641 = vmul.f32 %v3640, 0.6931472
      %v3642 = vlog2.pop %v3515
      %v3643 = vmul.f32 %v3642, 0.6931472
      %v3644 = vlog2.pop %v3517
      %v3645 = vmul.f32 %v3644, 0.6931472
      %v3646 = vlog2.pop %v3519
      %v3647 = vmul.f32 %v3646, 0.6931472
      %v3648 = vlog2.pop %v3521
      %v3649 = vmul.f32 %v3648, 0.6931472
      %v3650 = vlog2.pop %v3523
      %v3651 = vmul.f32 %v3650, 0.6931472
      %v3652 = vlog2.pop %v3525
      %v3653 = vmul.f32 %v3652, 0.6931472
      %v3654 = vlog2.pop %v3527
      %v3655 = vmul.f32 %v3654, 0.6931472
      %v3656 = vlog2.pop %v3529
      %v3657 = vmul.f32 %v3656, 0.6931472
      %v3658 = vlog2.pop %v3531
      %v3659 = vmul.f32 %v3658, 0.6931472
      %v3660 = vlog2.pop %v3533
      %v3661 = vmul.f32 %v3660, 0.6931472
      %v3662 = vlog2.pop %v3535
      %v3663 = vmul.f32 %v3662, 0.6931472
      %v3664 = vlog2.pop %v3537
      %v3665 = vmul.f32 %v3664, 0.6931472
      %v3666 = vlog2.pop %v3539
      %v3667 = vmul.f32 %v3666, 0.6931472
      %v3668 = vlog2.pop %v3541
      %v3669 = vmul.f32 %v3668, 0.6931472
      %v3670 = vlog2.pop %v3543
      %v3671 = vmul.f32 %v3670, 0.6931472
      %v3672 = vlog2.pop %v3545
      %v3673 = vmul.f32 %v3672, 0.6931472
      %v3674 = vlog2.pop %v3547
      %v3675 = vmul.f32 %v3674, 0.6931472
      %v3676 = vlog2.pop %v3549
      %v3677 = vmul.f32 %v3676, 0.6931472
      %v3678 = vlog2.pop %v3551
      %v3679 = vmul.f32 %v3678, 0.6931472
      %v3680 = vlog2.pop %v3553
      %v3681 = vmul.f32 %v3680, 0.6931472
      %v3682 = vlog2.pop %v3555
      %v3683 = vmul.f32 %v3682, 0.6931472
      %v3684 = vadd.f32 %v3109, %v3557
      %v3685 = vadd.f32 %v3111, %v3559
      %v3686 = vadd.f32 %v3113, %v3561
      %v3687 = vadd.f32 %v3115, %v3563
      %v3688 = vadd.f32 %v3117, %v3565
      %v3689 = vadd.f32 %v3119, %v3567
      %v3690 = vadd.f32 %v3121, %v3569
      %v3691 = vadd.f32 %v3123, %v3571
      %v3692 = vadd.f32 %v3125, %v3573
      %v3693 = vadd.f32 %v3127, %v3575
      %v3694 = vadd.f32 %v3129, %v3577
      %v3695 = vadd.f32 %v3131, %v3579
      %v3696 = vadd.f32 %v3133, %v3581
      %v3697 = vadd.f32 %v3135, %v3583
      %v3698 = vadd.f32 %v3137, %v3585
      %v3699 = vadd.f32 %v3139, %v3587
      %v3700 = vadd.f32 %v3141, %v3589
      %v3701 = vadd.f32 %v3143, %v3591
      %v3702 = vadd.f32 %v3145, %v3593
      %v3703 = vadd.f32 %v3147, %v3595
      %v3704 = vadd.f32 %v3149, %v3597
      %v3705 = vadd.f32 %v3151, %v3599
      %v3706 = vadd.f32 %v3153, %v3601
      %v3707 = vadd.f32 %v3155, %v3603
      %v3708 = vadd.f32 %v3157, %v3605
      %v3709 = vadd.f32 %v3159, %v3607
      %v3710 = vadd.f32 %v3161, %v3609
      %v3711 = vadd.f32 %v3163, %v3611
      %v3712 = vadd.f32 %v3165, %v3613
      %v3713 = vadd.f32 %v3167, %v3615
      %v3714 = vadd.f32 %v3169, %v3617
      %v3715 = vadd.f32 %v3171, %v3619
      %v3716 = vadd.f32 %v3173, %v3621
      %v3717 = vadd.f32 %v3175, %v3623
      %v3718 = vadd.f32 %v3177, %v3625
      %v3719 = vadd.f32 %v3179, %v3627
      %v3720 = vadd.f32 %v3181, %v3629
      %v3721 = vadd.f32 %v3183, %v3631
      %v3722 = vadd.f32 %v3185, %v3633
      %v3723 = vadd.f32 %v3187, %v3635
      %v3724 = vadd.f32 %v3189, %v3637
      %v3725 = vadd.f32 %v3191, %v3639
      %v3726 = vadd.f32 %v3193, %v3641
      %v3727 = vadd.f32 %v3195, %v3643
      %v3728 = vadd.f32 %v3197, %v3645
      %v3729 = vadd.f32 %v3199, %v3647
      %v3730 = vadd.f32 %v3201, %v3649
      %v3731 = vadd.f32 %v3203, %v3651
      %v3732 = vadd.f32 %v3205, %v3653
      %v3733 = vadd.f32 %v3207, %v3655
      %v3734 = vadd.f32 %v3209, %v3657
      %v3735 = vadd.f32 %v3211, %v3659
      %v3736 = vadd.f32 %v3213, %v3661
      %v3737 = vadd.f32 %v3215, %v3663
      %v3738 = vadd.f32 %v3217, %v3665
      %v3739 = vadd.f32 %v3219, %v3667
      %v3740 = vadd.f32 %v3221, %v3669
      %v3741 = vadd.f32 %v3223, %v3671
      %v3742 = vadd.f32 %v3225, %v3673
      %v3743 = vadd.f32 %v3227, %v3675
      %v3744 = vadd.f32 %v3229, %v3677
      %v3745 = vadd.f32 %v3231, %v3679
      %v3746 = vadd.f32 %v3233, %v3681
      %v3747 = vadd.f32 %v3235, %v3683
      %v3748 = vrcp.pop %v3429
      %v3749 = vrcp.pop %v3431
      %v3750 = vrcp.pop %v3433
      %v3751 = vrcp.pop %v3435
      %v3752 = vrcp.pop %v3437
      %v3753 = vrcp.pop %v3439
      %v3754 = vrcp.pop %v3441
      %v3755 = vrcp.pop %v3443
      %v3756 = vrcp.pop %v3445
      %v3757 = vrcp.pop %v3447
      %v3758 = vrcp.pop %v3449
      %v3759 = vrcp.pop %v3451
      %v3760 = vrcp.pop %v3453
      %v3761 = vrcp.pop %v3455
      %v3762 = vrcp.pop %v3457
      %v3763 = vrcp.pop %v3459
      %v3764 = vrcp.pop %v3461
      %v3765 = vrcp.pop %v3463
      %v3766 = vrcp.pop %v3465
      %v3767 = vrcp.pop %v3467
      %v3768 = vrcp.pop %v3469
      %v3769 = vrcp.pop %v3471
      %v3770 = vrcp.pop %v3473
      %v3771 = vrcp.pop %v3475
      %v3772 = vrcp.pop %v3477
      %v3773 = vrcp.pop %v3479
      %v3774 = vrcp.pop %v3481
      %v3775 = vrcp.pop %v3483
      %v3776 = vrcp.pop %v3485
      %v3777 = vrcp.pop %v3487
      %v3778 = vrcp.pop %v3489
      %v3779 = vrcp.pop %v3491
      %v3780 = vrcp.pop %v3493
      %v3781 = vrcp.pop %v3495
      %v3782 = vrcp.pop %v3497
      %v3783 = vrcp.pop %v3499
      %v3784 = vrcp.pop %v3501
      %v3785 = vrcp.pop %v3503
      %v3786 = vrcp.pop %v3505
      %v3787 = vrcp.pop %v3507
      %v3788 = vrcp.pop %v3509
      %v3789 = vrcp.pop %v3511
      %v3790 = vrcp.pop %v3513
      %v3791 = vrcp.pop %v3515
      %v3792 = vrcp.pop %v3517
      %v3793 = vrcp.pop %v3519
      %v3794 = vrcp.pop %v3521
      %v3795 = vrcp.pop %v3523
      %v3796 = vrcp.pop %v3525
      %v3797 = vrcp.pop %v3527
      %v3798 = vrcp.pop %v3529
      %v3799 = vrcp.pop %v3531
      %v3800 = vrcp.pop %v3533
      %v3801 = vrcp.pop %v3535
      %v3802 = vrcp.pop %v3537
      %v3803 = vrcp.pop %v3539
      %v3804 = vrcp.pop %v3541
      %v3805 = vrcp.pop %v3543
      %v3806 = vrcp.pop %v3545
      %v3807 = vrcp.pop %v3547
      %v3808 = vrcp.pop %v3549
      %v3809 = vrcp.pop %v3551
      %v3810 = vrcp.pop %v3553
      %v3811 = vrcp.pop %v3555
      %v3812 = vmul.f32 %v3301, %v3748
      %v3813 = vmul.f32 %v3303, %v3749
      %v3814 = vmul.f32 %v3305, %v3750
      %v3815 = vmul.f32 %v3307, %v3751
      %v3816 = vmul.f32 %v3309, %v3752
      %v3817 = vmul.f32 %v3311, %v3753
      %v3818 = vmul.f32 %v3313, %v3754
      %v3819 = vmul.f32 %v3315, %v3755
      %v3820 = vmul.f32 %v3317, %v3756
      %v3821 = vmul.f32 %v3319, %v3757
      %v3822 = vmul.f32 %v3321, %v3758
      %v3823 = vmul.f32 %v3323, %v3759
      %v3824 = vmul.f32 %v3325, %v3760
      %v3825 = vmul.f32 %v3327, %v3761
      %v3826 = vmul.f32 %v3329, %v3762
      %v3827 = vmul.f32 %v3331, %v3763
      %v3828 = vmul.f32 %v3333, %v3764
      %v3829 = vmul.f32 %v3335, %v3765
      %v3830 = vmul.f32 %v3337, %v3766
      %v3831 = vmul.f32 %v3339, %v3767
      %v3832 = vmul.f32 %v3341, %v3768
      %v3833 = vmul.f32 %v3343, %v3769
      %v3834 = vmul.f32 %v3345, %v3770
      %v3835 = vmul.f32 %v3347, %v3771
      %v3836 = vmul.f32 %v3349, %v3772
      %v3837 = vmul.f32 %v3351, %v3773
      %v3838 = vmul.f32 %v3353, %v3774
      %v3839 = vmul.f32 %v3355, %v3775
      %v3840 = vmul.f32 %v3357, %v3776
      %v3841 = vmul.f32 %v3359, %v3777
      %v3842 = vmul.f32 %v3361, %v3778
      %v3843 = vmul.f32 %v3363, %v3779
      %v3844 = vmul.f32 %v3365, %v3780
      %v3845 = vmul.f32 %v3367, %v3781
      %v3846 = vmul.f32 %v3369, %v3782
      %v3847 = vmul.f32 %v3371, %v3783
      %v3848 = vmul.f32 %v3373, %v3784
      %v3849 = vmul.f32 %v3375, %v3785
      %v3850 = vmul.f32 %v3377, %v3786
      %v3851 = vmul.f32 %v3379, %v3787
      %v3852 = vmul.f32 %v3381, %v3788
      %v3853 = vmul.f32 %v3383, %v3789
      %v3854 = vmul.f32 %v3385, %v3790
      %v3855 = vmul.f32 %v3387, %v3791
      %v3856 = vmul.f32 %v3389, %v3792
      %v3857 = vmul.f32 %v3391, %v3793
      %v3858 = vmul.f32 %v3393, %v3794
      %v3859 = vmul.f32 %v3395, %v3795
      %v3860 = vmul.f32 %v3397, %v3796
      %v3861 = vmul.f32 %v3399, %v3797
      %v3862 = vmul.f32 %v3401, %v3798
      %v3863 = vmul.f32 %v3403, %v3799
      %v3864 = vmul.f32 %v3405, %v3800
      %v3865 = vmul.f32 %v3407, %v3801
      %v3866 = vmul.f32 %v3409, %v3802
      %v3867 = vmul.f32 %v3411, %v3803
      %v3868 = vmul.f32 %v3413, %v3804
      %v3869 = vmul.f32 %v3415, %v3805
      %v3870 = vmul.f32 %v3417, %v3806
      %v3871 = vmul.f32 %v3419, %v3807
      %v3872 = vmul.f32 %v3421, %v3808
      %v3873 = vmul.f32 %v3423, %v3809
      %v3874 = vmul.f32 %v3425, %v3810
      %v3875 = vmul.f32 %v3427, %v3811
      %v3876 = vpack.c.bf16 %v3813, %v3812
      %v3877 = vpack.c.bf16 %v3815, %v3814
      %v3878 = vpack.c.bf16 %v3817, %v3816
      %v3879 = vpack.c.bf16 %v3819, %v3818
      %v3880 = vpack.c.bf16 %v3821, %v3820
      %v3881 = vpack.c.bf16 %v3823, %v3822
      %v3882 = vpack.c.bf16 %v3825, %v3824
      %v3883 = vpack.c.bf16 %v3827, %v3826
      %v3884 = vpack.c.bf16 %v3829, %v3828
      %v3885 = vpack.c.bf16 %v3831, %v3830
      %v3886 = vpack.c.bf16 %v3833, %v3832
      %v3887 = vpack.c.bf16 %v3835, %v3834
      %v3888 = vpack.c.bf16 %v3837, %v3836
      %v3889 = vpack.c.bf16 %v3839, %v3838
      %v3890 = vpack.c.bf16 %v3841, %v3840
      %v3891 = vpack.c.bf16 %v3843, %v3842
      %v3892 = vpack.c.bf16 %v3845, %v3844
      %v3893 = vpack.c.bf16 %v3847, %v3846
      %v3894 = vpack.c.bf16 %v3849, %v3848
      %v3895 = vpack.c.bf16 %v3851, %v3850
      %v3896 = vpack.c.bf16 %v3853, %v3852
      %v3897 = vpack.c.bf16 %v3855, %v3854
      %v3898 = vpack.c.bf16 %v3857, %v3856
      %v3899 = vpack.c.bf16 %v3859, %v3858
      %v3900 = vpack.c.bf16 %v3861, %v3860
      %v3901 = vpack.c.bf16 %v3863, %v3862
      %v3902 = vpack.c.bf16 %v3865, %v3864
      %v3903 = vpack.c.bf16 %v3867, %v3866
      %v3904 = vpack.c.bf16 %v3869, %v3868
      %v3905 = vpack.c.bf16 %v3871, %v3870
      %v3906 = vpack.c.bf16 %v3873, %v3872
      %v3907 = vpack.c.bf16 %v3875, %v3874
      %v3924 = vunpack.c.l.b16 %v643
      %v3925 = vunpack.c.l.b16 %v644
      %v3926 = vunpack.c.l.b16 %v645
      %v3927 = vunpack.c.l.b16 %v646
      %v3928 = vunpack.c.l.b16 %v647
      %v3929 = vunpack.c.l.b16 %v648
      %v3930 = vunpack.c.l.b16 %v649
      %v3931 = vunpack.c.l.b16 %v650
      %v3932 = vunpack.c.l.b16 %v651
      %v3933 = vunpack.c.l.b16 %v652
      %v3934 = vunpack.c.l.b16 %v653
      %v3935 = vunpack.c.l.b16 %v654
      %v3936 = vunpack.c.l.b16 %v655
      %v3937 = vunpack.c.l.b16 %v656
      %v3938 = vunpack.c.l.b16 %v657
      %v3939 = vunpack.c.l.b16 %v658
      %v3940 = vpack.c.b16 %v3925, %v3924
      %v3941 = vpack.c.b16 %v3927, %v3926
      %v3942 = vpack.c.b16 %v3929, %v3928
      %v3943 = vpack.c.b16 %v3931, %v3930
      %v3944 = vpack.c.b16 %v3933, %v3932
      %v3945 = vpack.c.b16 %v3935, %v3934
      %v3946 = vpack.c.b16 %v3937, %v3936
      %v3947 = vpack.c.b16 %v3939, %v3938
      %3956 = vmatprep.subr.bf16.mxu0 0
      %3957 = vmatpush1.bf16.msra.mxu0 %v3940
      %3958 = vmatprep.subr.bf16.mxu0 0
      %3959 = vmatpush1.bf16.msra.mxu0 %v3941
      %3960 = vmatprep.subr.bf16.mxu0 0
      %3961 = vmatpush1.bf16.msra.mxu0 %v3942
      %3962 = vmatprep.subr.bf16.mxu0 0
      %3963 = vmatpush1.bf16.msra.mxu0 %v3943
      %3964 = vmatprep.subr.bf16.mxu0 0
      %3965 = vmatpush1.bf16.msra.mxu0 %v3944
      %3966 = vmatprep.subr.bf16.mxu0 0
      %3967 = vmatpush1.bf16.msra.mxu0 %v3945
      %3968 = vmatprep.subr.bf16.mxu0 0
      %3969 = vmatpush1.bf16.msra.mxu0 %v3946
      %3970 = vmatprep.subr.bf16.mxu0 0
      %3971 = vmatpush1.bf16.msra.mxu0 %v3947
      %3972 = vmatprep.subr.bf16.mxu0 0
      %3973 = vmatpush1.bf16.msra.mxu0 0
      %3974 = vmatprep.subr.bf16.mxu0 0
      %3975 = vmatpush1.bf16.msra.mxu0 0
      %3976 = vmatprep.subr.bf16.mxu0 0
      %3977 = vmatpush1.bf16.msra.mxu0 0
      %3978 = vmatprep.subr.bf16.mxu0 0
      %3979 = vmatpush1.bf16.msra.mxu0 0
      %3980 = vmatprep.subr.bf16.mxu0 0
      %3981 = vmatpush1.bf16.msra.mxu0 0
      %3982 = vmatprep.subr.bf16.mxu0 0
      %3983 = vmatpush1.bf16.msra.mxu0 0
      %3984 = vmatprep.subr.bf16.mxu0 0
      %3985 = vmatpush1.bf16.msra.mxu0 0
      %3986 = vmatprep.subr.bf16.mxu0 0
      %3987 = vmatpush1.bf16.msra.mxu0 0
      %3988 = vmatprep.mubr.bf16.mxu0 0
      %3989 = vmatmul.mubr.bf16.gmra.mrb[0].mxu0 %v3876
      %v3990 = vpop.f32.mrb[0].mxu0
      %v3991 = vadd.f32 0.0, %v3990
      %v3992 = vpop.f32.mrb[0].mxu0
      %v3993 = vpop.f32.mrb[0].mxu0
      %v3994 = vadd.f32 0.0, %v3993
      %v3995 = vpop.f32.mrb[0].mxu0
      %3996 = vmatprep.mubr.bf16.mxu0 0
      %3997 = vmatmul.mubr.bf16.gmra.mrb[0].mxu0 %v3877
      %v3998 = vpop.f32.mrb[0].mxu0
      %v3999 = vadd.f32 0.0, %v3998
      %v4000 = vpop.f32.mrb[0].mxu0
      %v4001 = vpop.f32.mrb[0].mxu0
      %v4002 = vadd.f32 0.0, %v4001
      %v4003 = vpop.f32.mrb[0].mxu0
      %4004 = vmatprep.mubr.bf16.mxu0 0
      %4005 = vmatmul.mubr.bf16.gmra.mrb[0].mxu0 %v3878
      %v4006 = vpop.f32.mrb[0].mxu0
      %v4007 = vadd.f32 0.0, %v4006
      %v4008 = vpop.f32.mrb[0].mxu0
      %v4009 = vpop.f32.mrb[0].mxu0
      %v4010 = vadd.f32 0.0, %v4009
      %v4011 = vpop.f32.mrb[0].mxu0
      %4012 = vmatprep.mubr.bf16.mxu0 0
      %4013 = vmatmul.mubr.bf16.gmra.mrb[0].mxu0 %v3879
      %v4014 = vpop.f32.mrb[0].mxu0
      %v4015 = vadd.f32 0.0, %v4014
      %v4016 = vpop.f32.mrb[0].mxu0
      %v4017 = vpop.f32.mrb[0].mxu0
      %v4018 = vadd.f32 0.0, %v4017
      %v4019 = vpop.f32.mrb[0].mxu0
      %4020 = vdwg.mxu0
      %v4037 = vunpack.c.l.b16 %v659
      %v4038 = vunpack.c.l.b16 %v660
      %v4039 = vunpack.c.l.b16 %v661
      %v4040 = vunpack.c.l.b16 %v662
      %v4041 = vunpack.c.l.b16 %v663
      %v4042 = vunpack.c.l.b16 %v664
      %v4043 = vunpack.c.l.b16 %v665
      %v4044 = vunpack.c.l.b16 %v666
      %v4045 = vunpack.c.l.b16 %v667
      %v4046 = vunpack.c.l.b16 %v668
      %v4047 = vunpack.c.l.b16 %v669
      %v4048 = vunpack.c.l.b16 %v670
      %v4049 = vunpack.c.l.b16 %v671
      %v4050 = vunpack.c.l.b16 %v672
      %v4051 = vunpack.c.l.b16 %v673
      %v4052 = vunpack.c.l.b16 %v674
      %v4053 = vpack.c.b16 %v4038, %v4037
      %v4054 = vpack.c.b16 %v4040, %v4039
      %v4055 = vpack.c.b16 %v4042, %v4041
      %v4056 = vpack.c.b16 %v4044, %v4043
      %v4057 = vpack.c.b16 %v4046, %v4045
      %v4058 = vpack.c.b16 %v4048, %v4047
      %v4059 = vpack.c.b16 %v4050, %v4049
      %v4060 = vpack.c.b16 %v4052, %v4051
      %4069 = vmatprep.subr.bf16.mxu0 0
      %4070 = vmatpush1.bf16.msra.mxu0 %v4053
      %4071 = vmatprep.subr.bf16.mxu0 0
      %4072 = vmatpush1.bf16.msra.mxu0 %v4054
      %4073 = vmatprep.subr.bf16.mxu0 0
      %4074 = vmatpush1.bf16.msra.mxu0 %v4055
      %4075 = vmatprep.subr.bf16.mxu0 0
      %4076 = vmatpush1.bf16.msra.mxu0 %v4056
      %4077 = vmatprep.subr.bf16.mxu0 0
      %4078 = vmatpush1.bf16.msra.mxu0 %v4057
      %4079 = vmatprep.subr.bf16.mxu0 0
      %4080 = vmatpush1.bf16.msra.mxu0 %v4058
      %4081 = vmatprep.subr.bf16.mxu0 0
      %4082 = vmatpush1.bf16.msra.mxu0 %v4059
      %4083 = vmatprep.subr.bf16.mxu0 0
      %4084 = vmatpush1.bf16.msra.mxu0 %v4060
      %4085 = vmatprep.subr.bf16.mxu0 0
      %4086 = vmatpush1.bf16.msra.mxu0 0
      %4087 = vmatprep.subr.bf16.mxu0 0
      %4088 = vmatpush1.bf16.msra.mxu0 0
      %4089 = vmatprep.subr.bf16.mxu0 0
      %4090 = vmatpush1.bf16.msra.mxu0 0
      %4091 = vmatprep.subr.bf16.mxu0 0
      %4092 = vmatpush1.bf16.msra.mxu0 0
      %4093 = vmatprep.subr.bf16.mxu0 0
      %4094 = vmatpush1.bf16.msra.mxu0 0
      %4095 = vmatprep.subr.bf16.mxu0 0
      %4096 = vmatpush1.bf16.msra.mxu0 0
      %4097 = vmatprep.subr.bf16.mxu0 0
      %4098 = vmatpush1.bf16.msra.mxu0 0
      %4099 = vmatprep.subr.bf16.mxu0 0
      %4100 = vmatpush1.bf16.msra.mxu0 0
      %4101 = vmatprep.mubr.bf16.mxu0 0
      %4102 = vmatmul.mubr.bf16.gmra.mrb[0].mxu0 %v3880
      %v4103 = vpop.f32.mrb[0].mxu0
      %v4104 = vadd.f32 0.0, %v4103
      %v4105 = vpop.f32.mrb[0].mxu0
      %v4106 = vpop.f32.mrb[0].mxu0
      %v4107 = vadd.f32 0.0, %v4106
      %v4108 = vpop.f32.mrb[0].mxu0
      %4109 = vmatprep.mubr.bf16.mxu0 0
      %4110 = vmatmul.mubr.bf16.gmra.mrb[0].mxu0 %v3881
      %v4111 = vpop.f32.mrb[0].mxu0
      %v4112 = vadd.f32 0.0, %v4111
      %v4113 = vpop.f32.mrb[0].mxu0
      %v4114 = vpop.f32.mrb[0].mxu0
      %v4115 = vadd.f32 0.0, %v4114
      %v4116 = vpop.f32.mrb[0].mxu0
      %4117 = vmatprep.mubr.bf16.mxu0 0
      %4118 = vmatmul.mubr.bf16.gmra.mrb[0].mxu0 %v3882
      %v4119 = vpop.f32.mrb[0].mxu0
      %v4120 = vadd.f32 0.0, %v4119
      %v4121 = vpop.f32.mrb[0].mxu0
      %v4122 = vpop.f32.mrb[0].mxu0
      %v4123 = vadd.f32 0.0, %v4122
      %v4124 = vpop.f32.mrb[0].mxu0
      %4125 = vmatprep.mubr.bf16.mxu0 0
      %4126 = vmatmul.mubr.bf16.gmra.mrb[0].mxu0 %v3883
      %v4127 = vpop.f32.mrb[0].mxu0
      %v4128 = vadd.f32 0.0, %v4127
      %v4129 = vpop.f32.mrb[0].mxu0
      %v4130 = vpop.f32.mrb[0].mxu0
      %v4131 = vadd.f32 0.0, %v4130
      %v4132 = vpop.f32.mrb[0].mxu0
      %4133 = vdwg.mxu0
      %v4150 = vunpack.c.l.b16 %v675
      %v4151 = vunpack.c.l.b16 %v676
      %v4152 = vunpack.c.l.b16 %v677
      %v4153 = vunpack.c.l.b16 %v678
      %v4154 = vunpack.c.l.b16 %v679
      %v4155 = vunpack.c.l.b16 %v680
      %v4156 = vunpack.c.l.b16 %v681
      %v4157 = vunpack.c.l.b16 %v682
      %v4158 = vunpack.c.l.b16 %v683
      %v4159 = vunpack.c.l.b16 %v684
      %v4160 = vunpack.c.l.b16 %v685
      %v4161 = vunpack.c.l.b16 %v686
      %v4162 = vunpack.c.l.b16 %v687
      %v4163 = vunpack.c.l.b16 %v688
      %v4164 = vunpack.c.l.b16 %v689
      %v4165 = vunpack.c.l.b16 %v690
      %v4166 = vpack.c.b16 %v4151, %v4150
      %v4167 = vpack.c.b16 %v4153, %v4152
      %v4168 = vpack.c.b16 %v4155, %v4154
      %v4169 = vpack.c.b16 %v4157, %v4156
      %v4170 = vpack.c.b16 %v4159, %v4158
      %v4171 = vpack.c.b16 %v4161, %v4160
      %v4172 = vpack.c.b16 %v4163, %v4162
      %v4173 = vpack.c.b16 %v4165, %v4164
      %4182 = vmatprep.subr.bf16.mxu0 0
      %4183 = vmatpush1.bf16.msra.mxu0 %v4166
      %4184 = vmatprep.subr.bf16.mxu0 0
      %4185 = vmatpush1.bf16.msra.mxu0 %v4167
      %4186 = vmatprep.subr.bf16.mxu0 0
      %4187 = vmatpush1.bf16.msra.mxu0 %v4168
      %4188 = vmatprep.subr.bf16.mxu0 0
      %4189 = vmatpush1.bf16.msra.mxu0 %v4169
      %4190 = vmatprep.subr.bf16.mxu0 0
      %4191 = vmatpush1.bf16.msra.mxu0 %v4170
      %4192 = vmatprep.subr.bf16.mxu0 0
      %4193 = vmatpush1.bf16.msra.mxu0 %v4171
      %4194 = vmatprep.subr.bf16.mxu0 0
      %4195 = vmatpush1.bf16.msra.mxu0 %v4172
      %4196 = vmatprep.subr.bf16.mxu0 0
      %4197 = vmatpush1.bf16.msra.mxu0 %v4173
      %4198 = vmatprep.subr.bf16.mxu0 0
      %4199 = vmatpush1.bf16.msra.mxu0 0
      %4200 = vmatprep.subr.bf16.mxu0 0
      %4201 = vmatpush1.bf16.msra.mxu0 0
      %4202 = vmatprep.subr.bf16.mxu0 0
      %4203 = vmatpush1.bf16.msra.mxu0 0
      %4204 = vmatprep.subr.bf16.mxu0 0
      %4205 = vmatpush1.bf16.msra.mxu0 0
      %4206 = vmatprep.subr.bf16.mxu0 0
      %4207 = vmatpush1.bf16.msra.mxu0 0
      %4208 = vmatprep.subr.bf16.mxu0 0
      %4209 = vmatpush1.bf16.msra.mxu0 0
      %4210 = vmatprep.subr.bf16.mxu0 0
      %4211 = vmatpush1.bf16.msra.mxu0 0
      %4212 = vmatprep.subr.bf16.mxu0 0
      %4213 = vmatpush1.bf16.msra.mxu0 0
      %4214 = vmatprep.mubr.bf16.mxu0 0
      %4215 = vmatmul.mubr.bf16.gmra.mrb[0].mxu0 %v3884
      %v4216 = vpop.f32.mrb[0].mxu0
      %v4217 = vadd.f32 0.0, %v4216
      %v4218 = vpop.f32.mrb[0].mxu0
      %v4219 = vpop.f32.mrb[0].mxu0
      %v4220 = vadd.f32 0.0, %v4219
      %v4221 = vpop.f32.mrb[0].mxu0
      %4222 = vmatprep.mubr.bf16.mxu0 0
      %4223 = vmatmul.mubr.bf16.gmra.mrb[0].mxu0 %v3885
      %v4224 = vpop.f32.mrb[0].mxu0
      %v4225 = vadd.f32 0.0, %v4224
      %v4226 = vpop.f32.mrb[0].mxu0
      %v4227 = vpop.f32.mrb[0].mxu0
      %v4228 = vadd.f32 0.0, %v4227
      %v4229 = vpop.f32.mrb[0].mxu0
      %4230 = vmatprep.mubr.bf16.mxu0 0
      %4231 = vmatmul.mubr.bf16.gmra.mrb[0].mxu0 %v3886
      %v4232 = vpop.f32.mrb[0].mxu0
      %v4233 = vadd.f32 0.0, %v4232
      %v4234 = vpop.f32.mrb[0].mxu0
      %v4235 = vpop.f32.mrb[0].mxu0
      %v4236 = vadd.f32 0.0, %v4235
      %v4237 = vpop.f32.mrb[0].mxu0
      %4238 = vmatprep.mubr.bf16.mxu0 0
      %4239 = vmatmul.mubr.bf16.gmra.mrb[0].mxu0 %v3887
      %v4240 = vpop.f32.mrb[0].mxu0
      %v4241 = vadd.f32 0.0, %v4240
      %v4242 = vpop.f32.mrb[0].mxu0
      %v4243 = vpop.f32.mrb[0].mxu0
      %v4244 = vadd.f32 0.0, %v4243
      %v4245 = vpop.f32.mrb[0].mxu0
      %4246 = vdwg.mxu0
      %v4263 = vunpack.c.l.b16 %v691
      %v4264 = vunpack.c.l.b16 %v692
      %v4265 = vunpack.c.l.b16 %v693
      %v4266 = vunpack.c.l.b16 %v694
      %v4267 = vunpack.c.l.b16 %v695
      %v4268 = vunpack.c.l.b16 %v696
      %v4269 = vunpack.c.l.b16 %v697
      %v4270 = vunpack.c.l.b16 %v698
      %v4271 = vunpack.c.l.b16 %v699
      %v4272 = vunpack.c.l.b16 %v700
      %v4273 = vunpack.c.l.b16 %v701
      %v4274 = vunpack.c.l.b16 %v702
      %v4275 = vunpack.c.l.b16 %v703
      %v4276 = vunpack.c.l.b16 %v704
      %v4277 = vunpack.c.l.b16 %v705
      %v4278 = vunpack.c.l.b16 %v706
      %v4279 = vpack.c.b16 %v4264, %v4263
      %v4280 = vpack.c.b16 %v4266, %v4265
      %v4281 = vpack.c.b16 %v4268, %v4267
      %v4282 = vpack.c.b16 %v4270, %v4269
      %v4283 = vpack.c.b16 %v4272, %v4271
      %v4284 = vpack.c.b16 %v4274, %v4273
      %v4285 = vpack.c.b16 %v4276, %v4275
      %v4286 = vpack.c.b16 %v4278, %v4277
      %4295 = vmatprep.subr.bf16.mxu0 0
      %4296 = vmatpush1.bf16.msra.mxu0 %v4279
      %4297 = vmatprep.subr.bf16.mxu0 0
      %4298 = vmatpush1.bf16.msra.mxu0 %v4280
      %4299 = vmatprep.subr.bf16.mxu0 0
      %4300 = vmatpush1.bf16.msra.mxu0 %v4281
      %4301 = vmatprep.subr.bf16.mxu0 0
      %4302 = vmatpush1.bf16.msra.mxu0 %v4282
      %4303 = vmatprep.subr.bf16.mxu0 0
      %4304 = vmatpush1.bf16.msra.mxu0 %v4283
      %4305 = vmatprep.subr.bf16.mxu0 0
      %4306 = vmatpush1.bf16.msra.mxu0 %v4284
      %4307 = vmatprep.subr.bf16.mxu0 0
      %4308 = vmatpush1.bf16.msra.mxu0 %v4285
      %4309 = vmatprep.subr.bf16.mxu0 0
      %4310 = vmatpush1.bf16.msra.mxu0 %v4286
      %4311 = vmatprep.subr.bf16.mxu0 0
      %4312 = vmatpush1.bf16.msra.mxu0 0
      %4313 = vmatprep.subr.bf16.mxu0 0
      %4314 = vmatpush1.bf16.msra.mxu0 0
      %4315 = vmatprep.subr.bf16.mxu0 0
      %4316 = vmatpush1.bf16.msra.mxu0 0
      %4317 = vmatprep.subr.bf16.mxu0 0
      %4318 = vmatpush1.bf16.msra.mxu0 0
      %4319 = vmatprep.subr.bf16.mxu0 0
      %4320 = vmatpush1.bf16.msra.mxu0 0
      %4321 = vmatprep.subr.bf16.mxu0 0
      %4322 = vmatpush1.bf16.msra.mxu0 0
      %4323 = vmatprep.subr.bf16.mxu0 0
      %4324 = vmatpush1.bf16.msra.mxu0 0
      %4325 = vmatprep.subr.bf16.mxu0 0
      %4326 = vmatpush1.bf16.msra.mxu0 0
      %4327 = vmatprep.mubr.bf16.mxu0 0
      %4328 = vmatmul.mubr.bf16.gmra.mrb[0].mxu0 %v3888
      %v4329 = vpop.f32.mrb[0].mxu0
      %v4330 = vadd.f32 0.0, %v4329
      %v4331 = vpop.f32.mrb[0].mxu0
      %v4332 = vpop.f32.mrb[0].mxu0
      %v4333 = vadd.f32 0.0, %v4332
      %v4334 = vpop.f32.mrb[0].mxu0
      %4335 = vmatprep.mubr.bf16.mxu0 0
      %4336 = vmatmul.mubr.bf16.gmra.mrb[0].mxu0 %v3889
      %v4337 = vpop.f32.mrb[0].mxu0
      %v4338 = vadd.f32 0.0, %v4337
      %v4339 = vpop.f32.mrb[0].mxu0
      %v4340 = vpop.f32.mrb[0].mxu0
      %v4341 = vadd.f32 0.0, %v4340
      %v4342 = vpop.f32.mrb[0].mxu0
      %4343 = vmatprep.mubr.bf16.mxu0 0
      %4344 = vmatmul.mubr.bf16.gmra.mrb[0].mxu0 %v3890
      %v4345 = vpop.f32.mrb[0].mxu0
      %v4346 = vadd.f32 0.0, %v4345
      %v4347 = vpop.f32.mrb[0].mxu0
      %v4348 = vpop.f32.mrb[0].mxu0
      %v4349 = vadd.f32 0.0, %v4348
      %v4350 = vpop.f32.mrb[0].mxu0
      %4351 = vmatprep.mubr.bf16.mxu0 0
      %4352 = vmatmul.mubr.bf16.gmra.mrb[0].mxu0 %v3891
      %v4353 = vpop.f32.mrb[0].mxu0
      %v4354 = vadd.f32 0.0, %v4353
      %v4355 = vpop.f32.mrb[0].mxu0
      %v4356 = vpop.f32.mrb[0].mxu0
      %v4357 = vadd.f32 0.0, %v4356
      %v4358 = vpop.f32.mrb[0].mxu0
      %4359 = vdwg.mxu0
      %v4376 = vunpack.c.l.b16 %v707
      %v4377 = vunpack.c.l.b16 %v708
      %v4378 = vunpack.c.l.b16 %v709
      %v4379 = vunpack.c.l.b16 %v710
      %v4380 = vunpack.c.l.b16 %v711
      %v4381 = vunpack.c.l.b16 %v712
      %v4382 = vunpack.c.l.b16 %v713
      %v4383 = vunpack.c.l.b16 %v714
      %v4384 = vunpack.c.l.b16 %v715
      %v4385 = vunpack.c.l.b16 %v716
      %v4386 = vunpack.c.l.b16 %v717
      %v4387 = vunpack.c.l.b16 %v718
      %v4388 = vunpack.c.l.b16 %v719
      %v4389 = vunpack.c.l.b16 %v720
      %v4390 = vunpack.c.l.b16 %v721
      %v4391 = vunpack.c.l.b16 %v722
      %v4392 = vpack.c.b16 %v4377, %v4376
      %v4393 = vpack.c.b16 %v4379, %v4378
      %v4394 = vpack.c.b16 %v4381, %v4380
      %v4395 = vpack.c.b16 %v4383, %v4382
      %v4396 = vpack.c.b16 %v4385, %v4384
      %v4397 = vpack.c.b16 %v4387, %v4386
      %v4398 = vpack.c.b16 %v4389, %v4388
      %v4399 = vpack.c.b16 %v4391, %v4390
      %4408 = vmatprep.subr.bf16.mxu0 0
      %4409 = vmatpush1.bf16.msra.mxu0 %v4392
      %4410 = vmatprep.subr.bf16.mxu0 0
      %4411 = vmatpush1.bf16.msra.mxu0 %v4393
      %4412 = vmatprep.subr.bf16.mxu0 0
      %4413 = vmatpush1.bf16.msra.mxu0 %v4394
      %4414 = vmatprep.subr.bf16.mxu0 0
      %4415 = vmatpush1.bf16.msra.mxu0 %v4395
      %4416 = vmatprep.subr.bf16.mxu0 0
      %4417 = vmatpush1.bf16.msra.mxu0 %v4396
      %4418 = vmatprep.subr.bf16.mxu0 0
      %4419 = vmatpush1.bf16.msra.mxu0 %v4397
      %4420 = vmatprep.subr.bf16.mxu0 0
      %4421 = vmatpush1.bf16.msra.mxu0 %v4398
      %4422 = vmatprep.subr.bf16.mxu0 0
      %4423 = vmatpush1.bf16.msra.mxu0 %v4399
      %4424 = vmatprep.subr.bf16.mxu0 0
      %4425 = vmatpush1.bf16.msra.mxu0 0
      %4426 = vmatprep.subr.bf16.mxu0 0
      %4427 = vmatpush1.bf16.msra.mxu0 0
      %4428 = vmatprep.subr.bf16.mxu0 0
      %4429 = vmatpush1.bf16.msra.mxu0 0
      %4430 = vmatprep.subr.bf16.mxu0 0
      %4431 = vmatpush1.bf16.msra.mxu0 0
      %4432 = vmatprep.subr.bf16.mxu0 0
      %4433 = vmatpush1.bf16.msra.mxu0 0
      %4434 = vmatprep.subr.bf16.mxu0 0
      %4435 = vmatpush1.bf16.msra.mxu0 0
      %4436 = vmatprep.subr.bf16.mxu0 0
      %4437 = vmatpush1.bf16.msra.mxu0 0
      %4438 = vmatprep.subr.bf16.mxu0 0
      %4439 = vmatpush1.bf16.msra.mxu0 0
      %4440 = vmatprep.mubr.bf16.mxu0 0
      %4441 = vmatmul.mubr.bf16.gmra.mrb[0].mxu0 %v3892
      %v4442 = vpop.f32.mrb[0].mxu0
      %v4443 = vadd.f32 0.0, %v4442
      %v4444 = vpop.f32.mrb[0].mxu0
      %v4445 = vpop.f32.mrb[0].mxu0
      %v4446 = vadd.f32 0.0, %v4445
      %v4447 = vpop.f32.mrb[0].mxu0
      %4448 = vmatprep.mubr.bf16.mxu0 0
      %4449 = vmatmul.mubr.bf16.gmra.mrb[0].mxu0 %v3893
      %v4450 = vpop.f32.mrb[0].mxu0
      %v4451 = vadd.f32 0.0, %v4450
      %v4452 = vpop.f32.mrb[0].mxu0
      %v4453 = vpop.f32.mrb[0].mxu0
      %v4454 = vadd.f32 0.0, %v4453
      %v4455 = vpop.f32.mrb[0].mxu0
      %4456 = vmatprep.mubr.bf16.mxu0 0
      %4457 = vmatmul.mubr.bf16.gmra.mrb[0].mxu0 %v3894
      %v4458 = vpop.f32.mrb[0].mxu0
      %v4459 = vadd.f32 0.0, %v4458
      %v4460 = vpop.f32.mrb[0].mxu0
      %v4461 = vpop.f32.mrb[0].mxu0
      %v4462 = vadd.f32 0.0, %v4461
      %v4463 = vpop.f32.mrb[0].mxu0
      %4464 = vmatprep.mubr.bf16.mxu0 0
      %4465 = vmatmul.mubr.bf16.gmra.mrb[0].mxu0 %v3895
      %v4466 = vpop.f32.mrb[0].mxu0
      %v4467 = vadd.f32 0.0, %v4466
      %v4468 = vpop.f32.mrb[0].mxu0
      %v4469 = vpop.f32.mrb[0].mxu0
      %v4470 = vadd.f32 0.0, %v4469
      %v4471 = vpop.f32.mrb[0].mxu0
      %4472 = vdwg.mxu0
      %v4489 = vunpack.c.l.b16 %v723
      %v4490 = vunpack.c.l.b16 %v724
      %v4491 = vunpack.c.l.b16 %v725
      %v4492 = vunpack.c.l.b16 %v726
      %v4493 = vunpack.c.l.b16 %v727
      %v4494 = vunpack.c.l.b16 %v728
      %v4495 = vunpack.c.l.b16 %v729
      %v4496 = vunpack.c.l.b16 %v730
      %v4497 = vunpack.c.l.b16 %v731
      %v4498 = vunpack.c.l.b16 %v732
      %v4499 = vunpack.c.l.b16 %v733
      %v4500 = vunpack.c.l.b16 %v734
      %v4501 = vunpack.c.l.b16 %v735
      %v4502 = vunpack.c.l.b16 %v736
      %v4503 = vunpack.c.l.b16 %v737
      %v4504 = vunpack.c.l.b16 %v738
      %v4505 = vpack.c.b16 %v4490, %v4489
      %v4506 = vpack.c.b16 %v4492, %v4491
      %v4507 = vpack.c.b16 %v4494, %v4493
      %v4508 = vpack.c.b16 %v4496, %v4495
      %v4509 = vpack.c.b16 %v4498, %v4497
      %v4510 = vpack.c.b16 %v4500, %v4499
      %v4511 = vpack.c.b16 %v4502, %v4501
      %v4512 = vpack.c.b16 %v4504, %v4503
      %4521 = vmatprep.subr.bf16.mxu0 0
      %4522 = vmatpush1.bf16.msra.mxu0 %v4505
      %4523 = vmatprep.subr.bf16.mxu0 0
      %4524 = vmatpush1.bf16.msra.mxu0 %v4506
      %4525 = vmatprep.subr.bf16.mxu0 0
      %4526 = vmatpush1.bf16.msra.mxu0 %v4507
      %4527 = vmatprep.subr.bf16.mxu0 0
      %4528 = vmatpush1.bf16.msra.mxu0 %v4508
      %4529 = vmatprep.subr.bf16.mxu0 0
      %4530 = vmatpush1.bf16.msra.mxu0 %v4509
      %4531 = vmatprep.subr.bf16.mxu0 0
      %4532 = vmatpush1.bf16.msra.mxu0 %v4510
      %4533 = vmatprep.subr.bf16.mxu0 0
      %4534 = vmatpush1.bf16.msra.mxu0 %v4511
      %4535 = vmatprep.subr.bf16.mxu0 0
      %4536 = vmatpush1.bf16.msra.mxu0 %v4512
      %4537 = vmatprep.subr.bf16.mxu0 0
      %4538 = vmatpush1.bf16.msra.mxu0 0
      %4539 = vmatprep.subr.bf16.mxu0 0
      %4540 = vmatpush1.bf16.msra.mxu0 0
      %4541 = vmatprep.subr.bf16.mxu0 0
      %4542 = vmatpush1.bf16.msra.mxu0 0
      %4543 = vmatprep.subr.bf16.mxu0 0
      %4544 = vmatpush1.bf16.msra.mxu0 0
      %4545 = vmatprep.subr.bf16.mxu0 0
      %4546 = vmatpush1.bf16.msra.mxu0 0
      %4547 = vmatprep.subr.bf16.mxu0 0
      %4548 = vmatpush1.bf16.msra.mxu0 0
      %4549 = vmatprep.subr.bf16.mxu0 0
      %4550 = vmatpush1.bf16.msra.mxu0 0
      %4551 = vmatprep.subr.bf16.mxu0 0
      %4552 = vmatpush1.bf16.msra.mxu0 0
      %4553 = vmatprep.mubr.bf16.mxu0 0
      %4554 = vmatmul.mubr.bf16.gmra.mrb[0].mxu0 %v3896
      %v4555 = vpop.f32.mrb[0].mxu0
      %v4556 = vadd.f32 0.0, %v4555
      %v4557 = vpop.f32.mrb[0].mxu0
      %v4558 = vpop.f32.mrb[0].mxu0
      %v4559 = vadd.f32 0.0, %v4558
      %v4560 = vpop.f32.mrb[0].mxu0
      %4561 = vmatprep.mubr.bf16.mxu0 0
      %4562 = vmatmul.mubr.bf16.gmra.mrb[0].mxu0 %v3897
      %v4563 = vpop.f32.mrb[0].mxu0
      %v4564 = vadd.f32 0.0, %v4563
      %v4565 = vpop.f32.mrb[0].mxu0
      %v4566 = vpop.f32.mrb[0].mxu0
      %v4567 = vadd.f32 0.0, %v4566
      %v4568 = vpop.f32.mrb[0].mxu0
      %4569 = vmatprep.mubr.bf16.mxu0 0
      %4570 = vmatmul.mubr.bf16.gmra.mrb[0].mxu0 %v3898
      %v4571 = vpop.f32.mrb[0].mxu0
      %v4572 = vadd.f32 0.0, %v4571
      %v4573 = vpop.f32.mrb[0].mxu0
      %v4574 = vpop.f32.mrb[0].mxu0
      %v4575 = vadd.f32 0.0, %v4574
      %v4576 = vpop.f32.mrb[0].mxu0
      %4577 = vmatprep.mubr.bf16.mxu0 0
      %4578 = vmatmul.mubr.bf16.gmra.mrb[0].mxu0 %v3899
      %v4579 = vpop.f32.mrb[0].mxu0
      %v4580 = vadd.f32 0.0, %v4579
      %v4581 = vpop.f32.mrb[0].mxu0
      %v4582 = vpop.f32.mrb[0].mxu0
      %v4583 = vadd.f32 0.0, %v4582
      %v4584 = vpop.f32.mrb[0].mxu0
      %4585 = vdwg.mxu0
      %v4602 = vunpack.c.l.b16 %v739
      %v4603 = vunpack.c.l.b16 %v740
      %v4604 = vunpack.c.l.b16 %v741
      %v4605 = vunpack.c.l.b16 %v742
      %v4606 = vunpack.c.l.b16 %v743
      %v4607 = vunpack.c.l.b16 %v744
      %v4608 = vunpack.c.l.b16 %v745
      %v4609 = vunpack.c.l.b16 %v746
      %v4610 = vunpack.c.l.b16 %v747
      %v4611 = vunpack.c.l.b16 %v748
      %v4612 = vunpack.c.l.b16 %v749
      %v4613 = vunpack.c.l.b16 %v750
      %v4614 = vunpack.c.l.b16 %v751
      %v4615 = vunpack.c.l.b16 %v752
      %v4616 = vunpack.c.l.b16 %v753
      %v4617 = vunpack.c.l.b16 %v754
      %v4618 = vpack.c.b16 %v4603, %v4602
      %v4619 = vpack.c.b16 %v4605, %v4604
      %v4620 = vpack.c.b16 %v4607, %v4606
      %v4621 = vpack.c.b16 %v4609, %v4608
      %v4622 = vpack.c.b16 %v4611, %v4610
      %v4623 = vpack.c.b16 %v4613, %v4612
      %v4624 = vpack.c.b16 %v4615, %v4614
      %v4625 = vpack.c.b16 %v4617, %v4616
      %4634 = vmatprep.subr.bf16.mxu0 0
      %4635 = vmatpush1.bf16.msra.mxu0 %v4618
      %4636 = vmatprep.subr.bf16.mxu0 0
      %4637 = vmatpush1.bf16.msra.mxu0 %v4619
      %4638 = vmatprep.subr.bf16.mxu0 0
      %4639 = vmatpush1.bf16.msra.mxu0 %v4620
      %4640 = vmatprep.subr.bf16.mxu0 0
      %4641 = vmatpush1.bf16.msra.mxu0 %v4621
      %4642 = vmatprep.subr.bf16.mxu0 0
      %4643 = vmatpush1.bf16.msra.mxu0 %v4622
      %4644 = vmatprep.subr.bf16.mxu0 0
      %4645 = vmatpush1.bf16.msra.mxu0 %v4623
      %4646 = vmatprep.subr.bf16.mxu0 0
      %4647 = vmatpush1.bf16.msra.mxu0 %v4624
      %4648 = vmatprep.subr.bf16.mxu0 0
      %4649 = vmatpush1.bf16.msra.mxu0 %v4625
      %4650 = vmatprep.subr.bf16.mxu0 0
      %4651 = vmatpush1.bf16.msra.mxu0 0
      %4652 = vmatprep.subr.bf16.mxu0 0
      %4653 = vmatpush1.bf16.msra.mxu0 0
      %4654 = vmatprep.subr.bf16.mxu0 0
      %4655 = vmatpush1.bf16.msra.mxu0 0
      %4656 = vmatprep.subr.bf16.mxu0 0
      %4657 = vmatpush1.bf16.msra.mxu0 0
      %4658 = vmatprep.subr.bf16.mxu0 0
      %4659 = vmatpush1.bf16.msra.mxu0 0
      %4660 = vmatprep.subr.bf16.mxu0 0
      %4661 = vmatpush1.bf16.msra.mxu0 0
      %4662 = vmatprep.subr.bf16.mxu0 0
      %4663 = vmatpush1.bf16.msra.mxu0 0
      %4664 = vmatprep.subr.bf16.mxu0 0
      %4665 = vmatpush1.bf16.msra.mxu0 0
      %4666 = vmatprep.mubr.bf16.mxu0 0
      %4667 = vmatmul.mubr.bf16.gmra.mrb[0].mxu0 %v3900
      %v4668 = vpop.f32.mrb[0].mxu0
      %v4669 = vadd.f32 0.0, %v4668
      %v4670 = vpop.f32.mrb[0].mxu0
      %v4671 = vpop.f32.mrb[0].mxu0
      %v4672 = vadd.f32 0.0, %v4671
      %v4673 = vpop.f32.mrb[0].mxu0
      %4674 = vmatprep.mubr.bf16.mxu0 0
      %4675 = vmatmul.mubr.bf16.gmra.mrb[0].mxu0 %v3901
      %v4676 = vpop.f32.mrb[0].mxu0
      %v4677 = vadd.f32 0.0, %v4676
      %v4678 = vpop.f32.mrb[0].mxu0
      %v4679 = vpop.f32.mrb[0].mxu0
      %v4680 = vadd.f32 0.0, %v4679
      %v4681 = vpop.f32.mrb[0].mxu0
      %4682 = vmatprep.mubr.bf16.mxu0 0
      %4683 = vmatmul.mubr.bf16.gmra.mrb[0].mxu0 %v3902
      %v4684 = vpop.f32.mrb[0].mxu0
      %v4685 = vadd.f32 0.0, %v4684
      %v4686 = vpop.f32.mrb[0].mxu0
      %v4687 = vpop.f32.mrb[0].mxu0
      %v4688 = vadd.f32 0.0, %v4687
      %v4689 = vpop.f32.mrb[0].mxu0
      %4690 = vmatprep.mubr.bf16.mxu0 0
      %4691 = vmatmul.mubr.bf16.gmra.mrb[0].mxu0 %v3903
      %v4692 = vpop.f32.mrb[0].mxu0
      %v4693 = vadd.f32 0.0, %v4692
      %v4694 = vpop.f32.mrb[0].mxu0
      %v4695 = vpop.f32.mrb[0].mxu0
      %v4696 = vadd.f32 0.0, %v4695
      %v4697 = vpop.f32.mrb[0].mxu0
      %4698 = vdwg.mxu0
      %v4715 = vunpack.c.l.b16 %v755
      %v4716 = vunpack.c.l.b16 %v756
      %v4717 = vunpack.c.l.b16 %v757
      %v4718 = vunpack.c.l.b16 %v758
      %v4719 = vunpack.c.l.b16 %v759
      %v4720 = vunpack.c.l.b16 %v760
      %v4721 = vunpack.c.l.b16 %v761
      %v4722 = vunpack.c.l.b16 %v762
      %v4723 = vunpack.c.l.b16 %v763
      %v4724 = vunpack.c.l.b16 %v764
      %v4725 = vunpack.c.l.b16 %v765
      %v4726 = vunpack.c.l.b16 %v766
      %v4727 = vunpack.c.l.b16 %v767
      %v4728 = vunpack.c.l.b16 %v768
      %v4729 = vunpack.c.l.b16 %v769
      %v4730 = vunpack.c.l.b16 %v770
      %v4731 = vpack.c.b16 %v4716, %v4715
      %v4732 = vpack.c.b16 %v4718, %v4717
      %v4733 = vpack.c.b16 %v4720, %v4719
      %v4734 = vpack.c.b16 %v4722, %v4721
      %v4735 = vpack.c.b16 %v4724, %v4723
      %v4736 = vpack.c.b16 %v4726, %v4725
      %v4737 = vpack.c.b16 %v4728, %v4727
      %v4738 = vpack.c.b16 %v4730, %v4729
      %4747 = vmatprep.subr.bf16.mxu0 0
      %4748 = vmatpush1.bf16.msra.mxu0 %v4731
      %4749 = vmatprep.subr.bf16.mxu0 0
      %4750 = vmatpush1.bf16.msra.mxu0 %v4732
      %4751 = vmatprep.subr.bf16.mxu0 0
      %4752 = vmatpush1.bf16.msra.mxu0 %v4733
      %4753 = vmatprep.subr.bf16.mxu0 0
      %4754 = vmatpush1.bf16.msra.mxu0 %v4734
      %4755 = vmatprep.subr.bf16.mxu0 0
      %4756 = vmatpush1.bf16.msra.mxu0 %v4735
      %4757 = vmatprep.subr.bf16.mxu0 0
      %4758 = vmatpush1.bf16.msra.mxu0 %v4736
      %4759 = vmatprep.subr.bf16.mxu0 0
      %4760 = vmatpush1.bf16.msra.mxu0 %v4737
      %4761 = vmatprep.subr.bf16.mxu0 0
      %4762 = vmatpush1.bf16.msra.mxu0 %v4738
      %4763 = vmatprep.subr.bf16.mxu0 0
      %4764 = vmatpush1.bf16.msra.mxu0 0
      %4765 = vmatprep.subr.bf16.mxu0 0
      %4766 = vmatpush1.bf16.msra.mxu0 0
      %4767 = vmatprep.subr.bf16.mxu0 0
      %4768 = vmatpush1.bf16.msra.mxu0 0
      %4769 = vmatprep.subr.bf16.mxu0 0
      %4770 = vmatpush1.bf16.msra.mxu0 0
      %4771 = vmatprep.subr.bf16.mxu0 0
      %4772 = vmatpush1.bf16.msra.mxu0 0
      %4773 = vmatprep.subr.bf16.mxu0 0
      %4774 = vmatpush1.bf16.msra.mxu0 0
      %4775 = vmatprep.subr.bf16.mxu0 0
      %4776 = vmatpush1.bf16.msra.mxu0 0
      %4777 = vmatprep.subr.bf16.mxu0 0
      %4778 = vmatpush1.bf16.msra.mxu0 0
      %4779 = vmatprep.mubr.bf16.mxu0 0
      %4780 = vmatmul.mubr.bf16.gmra.mrb[0].mxu0 %v3904
      %v4781 = vpop.f32.mrb[0].mxu0
      %v4782 = vadd.f32 0.0, %v4781
      %v4783 = vpop.f32.mrb[0].mxu0
      %v4784 = vpop.f32.mrb[0].mxu0
      %v4785 = vadd.f32 0.0, %v4784
      %v4786 = vpop.f32.mrb[0].mxu0
      %4787 = vmatprep.mubr.bf16.mxu0 0
      %4788 = vmatmul.mubr.bf16.gmra.mrb[0].mxu0 %v3905
      %v4789 = vpop.f32.mrb[0].mxu0
      %v4790 = vadd.f32 0.0, %v4789
      %v4791 = vpop.f32.mrb[0].mxu0
      %v4792 = vpop.f32.mrb[0].mxu0
      %v4793 = vadd.f32 0.0, %v4792
      %v4794 = vpop.f32.mrb[0].mxu0
      %4795 = vmatprep.mubr.bf16.mxu0 0
      %4796 = vmatmul.mubr.bf16.gmra.mrb[0].mxu0 %v3906
      %v4797 = vpop.f32.mrb[0].mxu0
      %v4798 = vadd.f32 0.0, %v4797
      %v4799 = vpop.f32.mrb[0].mxu0
      %v4800 = vpop.f32.mrb[0].mxu0
      %v4801 = vadd.f32 0.0, %v4800
      %v4802 = vpop.f32.mrb[0].mxu0
      %4803 = vmatprep.mubr.bf16.mxu0 0
      %4804 = vmatmul.mubr.bf16.gmra.mrb[0].mxu0 %v3907
      %v4805 = vpop.f32.mrb[0].mxu0
      %v4806 = vadd.f32 0.0, %v4805
      %v4807 = vpop.f32.mrb[0].mxu0
      %v4808 = vpop.f32.mrb[0].mxu0
      %v4809 = vadd.f32 0.0, %v4808
      %v4810 = vpop.f32.mrb[0].mxu0
      %4811 = vdwg.mxu0
      %4812 = vst.msk [vmem:[%s440] sm:$0xff] %vm897, %v3991
      %4813 = vst.msk [vmem:[%s440 + $0x8] sm:$0xff] %vm897, %v3994
      %4814 = vst.msk [vmem:[%s440 + $0x10] sm:$0xff] %vm897, %v3999
      %4815 = vst.msk [vmem:[%s440 + $0x18] sm:$0xff] %vm897, %v4002
      %4816 = vst.msk [vmem:[%s440 + $0x20] sm:$0xff] %vm897, %v4007
      %4817 = vst.msk [vmem:[%s440 + $0x28] sm:$0xff] %vm897, %v4010
      %4818 = vst.msk [vmem:[%s440 + $0x30] sm:$0xff] %vm897, %v4015
      %4819 = vst.msk [vmem:[%s440 + $0x38] sm:$0xff] %vm897, %v4018
      %4820 = vst.msk [vmem:[%s440 + $0x40] sm:$0xff] %vm897, %v4104
      %4821 = vst.msk [vmem:[%s440 + $0x48] sm:$0xff] %vm897, %v4107
      %4822 = vst.msk [vmem:[%s440 + $0x50] sm:$0xff] %vm897, %v4112
      %4823 = vst.msk [vmem:[%s440 + $0x58] sm:$0xff] %vm897, %v4115
      %4824 = vst.msk [vmem:[%s440 + $0x60] sm:$0xff] %vm897, %v4120
      %4825 = vst.msk [vmem:[%s440 + $0x68] sm:$0xff] %vm897, %v4123
      %4826 = vst.msk [vmem:[%s440 + $0x70] sm:$0xff] %vm897, %v4128
      %4827 = vst.msk [vmem:[%s440 + $0x78] sm:$0xff] %vm897, %v4131
      %4828 = vst.msk [vmem:[%s440 + $0x80] sm:$0xff] %vm897, %v4217
      %4829 = vst.msk [vmem:[%s440 + $0x88] sm:$0xff] %vm897, %v4220
      %4830 = vst.msk [vmem:[%s440 + $0x90] sm:$0xff] %vm897, %v4225
      %4831 = vst.msk [vmem:[%s440 + $0x98] sm:$0xff] %vm897, %v4228
      %4832 = vst.msk [vmem:[%s440 + $0xa0] sm:$0xff] %vm897, %v4233
      %4833 = vst.msk [vmem:[%s440 + $0xa8] sm:$0xff] %vm897, %v4236
      %4834 = vst.msk [vmem:[%s440 + $0xb0] sm:$0xff] %vm897, %v4241
      %4835 = vst.msk [vmem:[%s440 + $0xb8] sm:$0xff] %vm897, %v4244
      %4836 = vst.msk [vmem:[%s440 + $0xc0] sm:$0xff] %vm897, %v4330
      %4837 = vst.msk [vmem:[%s440 + $0xc8] sm:$0xff] %vm897, %v4333
      %4838 = vst.msk [vmem:[%s440 + $0xd0] sm:$0xff] %vm897, %v4338
      %4839 = vst.msk [vmem:[%s440 + $0xd8] sm:$0xff] %vm897, %v4341
      %4840 = vst.msk [vmem:[%s440 + $0xe0] sm:$0xff] %vm897, %v4346
      %4841 = vst.msk [vmem:[%s440 + $0xe8] sm:$0xff] %vm897, %v4349
      %4842 = vst.msk [vmem:[%s440 + $0xf0] sm:$0xff] %vm897, %v4354
      %4843 = vst.msk [vmem:[%s440 + $0xf8] sm:$0xff] %vm897, %v4357
      %4844 = vst.msk [vmem:[%s440 + $0x100] sm:$0xff] %vm897, %v4443
      %4845 = vst.msk [vmem:[%s440 + $0x108] sm:$0xff] %vm897, %v4446
      %4846 = vst.msk [vmem:[%s440 + $0x110] sm:$0xff] %vm897, %v4451
      %4847 = vst.msk [vmem:[%s440 + $0x118] sm:$0xff] %vm897, %v4454
      %4848 = vst.msk [vmem:[%s440 + $0x120] sm:$0xff] %vm897, %v4459
      %4849 = vst.msk [vmem:[%s440 + $0x128] sm:$0xff] %vm897, %v4462
      %4850 = vst.msk [vmem:[%s440 + $0x130] sm:$0xff] %vm897, %v4467
      %4851 = vst.msk [vmem:[%s440 + $0x138] sm:$0xff] %vm897, %v4470
      %4852 = vst.msk [vmem:[%s440 + $0x140] sm:$0xff] %vm897, %v4556
      %4853 = vst.msk [vmem:[%s440 + $0x148] sm:$0xff] %vm897, %v4559
      %4854 = vst.msk [vmem:[%s440 + $0x150] sm:$0xff] %vm897, %v4564
      %4855 = vst.msk [vmem:[%s440 + $0x158] sm:$0xff] %vm897, %v4567
      %4856 = vst.msk [vmem:[%s440 + $0x160] sm:$0xff] %vm897, %v4572
      %4857 = vst.msk [vmem:[%s440 + $0x168] sm:$0xff] %vm897, %v4575
      %4858 = vst.msk [vmem:[%s440 + $0x170] sm:$0xff] %vm897, %v4580
      %4859 = vst.msk [vmem:[%s440 + $0x178] sm:$0xff] %vm897, %v4583
      %4860 = vst.msk [vmem:[%s440 + $0x180] sm:$0xff] %vm897, %v4669
      %4861 = vst.msk [vmem:[%s440 + $0x188] sm:$0xff] %vm897, %v4672
      %4862 = vst.msk [vmem:[%s440 + $0x190] sm:$0xff] %vm897, %v4677
      %4863 = vst.msk [vmem:[%s440 + $0x198] sm:$0xff] %vm897, %v4680
      %4864 = vst.msk [vmem:[%s440 + $0x1a0] sm:$0xff] %vm897, %v4685
      %4865 = vst.msk [vmem:[%s440 + $0x1a8] sm:$0xff] %vm897, %v4688
      %4866 = vst.msk [vmem:[%s440 + $0x1b0] sm:$0xff] %vm897, %v4693
      %4867 = vst.msk [vmem:[%s440 + $0x1b8] sm:$0xff] %vm897, %v4696
      %4868 = vst.msk [vmem:[%s440 + $0x1c0] sm:$0xff] %vm897, %v4782
      %4869 = vst.msk [vmem:[%s440 + $0x1c8] sm:$0xff] %vm897, %v4785
      %4870 = vst.msk [vmem:[%s440 + $0x1d0] sm:$0xff] %vm897, %v4790
      %4871 = vst.msk [vmem:[%s440 + $0x1d8] sm:$0xff] %vm897, %v4793
      %4872 = vst.msk [vmem:[%s440 + $0x1e0] sm:$0xff] %vm897, %v4798
      %4873 = vst.msk [vmem:[%s440 + $0x1e8] sm:$0xff] %vm897, %v4801
      %4874 = vst.msk [vmem:[%s440 + $0x1f0] sm:$0xff] %vm897, %v4806
      %4875 = vst.msk [vmem:[%s440 + $0x1f8] sm:$0xff] %vm897, %v4809
      %v4940 = vlaneseq
      %v4941 = vand.u32 %v4940, 127
      %v4942 = vlaneseq
      %v4943 = vshrl.u32 %v4942, 7
      %v4944 = vsub.s32 %v4941, %v4943
      %v4945 = vrot.slane %v3684, %v4944
      %v4946 = vadd.s32 %v4941, 4294967288
      %v4947 = vlaneseq
      %v4948 = vshrl.u32 %v4947, 7
      %v4949 = vsub.s32 %v4946, %v4948
      %v4950 = vrot.slane %v3685, %v4949
      %vm4951 = vcmask 130112
      %v4952 = vsel %vm4951, %v4950, %v4945
      %v4953 = vadd.s32 %v4941, 4294967280
      %v4954 = vlaneseq
      %v4955 = vshrl.u32 %v4954, 7
      %v4956 = vsub.s32 %v4953, %v4955
      %v4957 = vrot.slane %v3686, %v4956
      %vm4958 = vcmask 195712
      %v4959 = vsel %vm4958, %v4957, %v4952
      %v4960 = vadd.s32 %v4941, 4294967272
      %v4961 = vlaneseq
      %v4962 = vshrl.u32 %v4961, 7
      %v4963 = vsub.s32 %v4960, %v4962
      %v4964 = vrot.slane %v3687, %v4963
      %vm4965 = vcmask 261312
      %v4966 = vsel %vm4965, %v4964, %v4959
      %v4967 = vadd.s32 %v4941, 4294967264
      %v4968 = vlaneseq
      %v4969 = vshrl.u32 %v4968, 7
      %v4970 = vsub.s32 %v4967, %v4969
      %v4971 = vrot.slane %v3688, %v4970
      %vm4972 = vcmask 326912
      %v4973 = vsel %vm4972, %v4971, %v4966
      %v4974 = vadd.s32 %v4941, 4294967256
      %v4975 = vlaneseq
      %v4976 = vshrl.u32 %v4975, 7
      %v4977 = vsub.s32 %v4974, %v4976
      %v4978 = vrot.slane %v3689, %v4977
      %vm4979 = vcmask 392512
      %v4980 = vsel %vm4979, %v4978, %v4973
      %v4981 = vadd.s32 %v4941, 4294967248
      %v4982 = vlaneseq
      %v4983 = vshrl.u32 %v4982, 7
      %v4984 = vsub.s32 %v4981, %v4983
      %v4985 = vrot.slane %v3690, %v4984
      %vm4986 = vcmask 458112
      %v4987 = vsel %vm4986, %v4985, %v4980
      %v4988 = vadd.s32 %v4941, 4294967240
      %v4989 = vlaneseq
      %v4990 = vshrl.u32 %v4989, 7
      %v4991 = vsub.s32 %v4988, %v4990
      %v4992 = vrot.slane %v3691, %v4991
      %vm4993 = vcmask 523712
      %v4994 = vsel %vm4993, %v4992, %v4987
      %v4995 = vlaneseq
      %v4996 = vshrl.u32 %v4995, 7
      %v4997 = vsub.s32 %v4941, %v4996
      %v4998 = vrot.slane %v3692, %v4997
      %v4999 = vlaneseq
      %v5000 = vshrl.u32 %v4999, 7
      %v5001 = vsub.s32 %v4946, %v5000
      %v5002 = vrot.slane %v3693, %v5001
      %v5003 = vsel %vm4951, %v5002, %v4998
      %v5004 = vlaneseq
      %v5005 = vshrl.u32 %v5004, 7
      %v5006 = vsub.s32 %v4953, %v5005
      %v5007 = vrot.slane %v3694, %v5006
      %v5008 = vsel %vm4958, %v5007, %v5003
      %v5009 = vlaneseq
      %v5010 = vshrl.u32 %v5009, 7
      %v5011 = vsub.s32 %v4960, %v5010
      %v5012 = vrot.slane %v3695, %v5011
      %v5013 = vsel %vm4965, %v5012, %v5008
      %v5014 = vlaneseq
      %v5015 = vshrl.u32 %v5014, 7
      %v5016 = vsub.s32 %v4967, %v5015
      %v5017 = vrot.slane %v3696, %v5016
      %v5018 = vsel %vm4972, %v5017, %v5013
      %v5019 = vlaneseq
      %v5020 = vshrl.u32 %v5019, 7
      %v5021 = vsub.s32 %v4974, %v5020
      %v5022 = vrot.slane %v3697, %v5021
      %v5023 = vsel %vm4979, %v5022, %v5018
      %v5024 = vlaneseq
      %v5025 = vshrl.u32 %v5024, 7
      %v5026 = vsub.s32 %v4981, %v5025
      %v5027 = vrot.slane %v3698, %v5026
      %v5028 = vsel %vm4986, %v5027, %v5023
      %v5029 = vlaneseq
      %v5030 = vshrl.u32 %v5029, 7
      %v5031 = vsub.s32 %v4988, %v5030
      %v5032 = vrot.slane %v3699, %v5031
      %v5033 = vsel %vm4993, %v5032, %v5028
      %v5034 = vlaneseq
      %v5035 = vshrl.u32 %v5034, 7
      %v5036 = vsub.s32 %v4941, %v5035
      %v5037 = vrot.slane %v3700, %v5036
      %v5038 = vlaneseq
      %v5039 = vshrl.u32 %v5038, 7
      %v5040 = vsub.s32 %v4946, %v5039
      %v5041 = vrot.slane %v3701, %v5040
      %v5042 = vsel %vm4951, %v5041, %v5037
      %v5043 = vlaneseq
      %v5044 = vshrl.u32 %v5043, 7
      %v5045 = vsub.s32 %v4953, %v5044
      %v5046 = vrot.slane %v3702, %v5045
      %v5047 = vsel %vm4958, %v5046, %v5042
      %v5048 = vlaneseq
      %v5049 = vshrl.u32 %v5048, 7
      %v5050 = vsub.s32 %v4960, %v5049
      %v5051 = vrot.slane %v3703, %v5050
      %v5052 = vsel %vm4965, %v5051, %v5047
      %v5053 = vlaneseq
      %v5054 = vshrl.u32 %v5053, 7
      %v5055 = vsub.s32 %v4967, %v5054
      %v5056 = vrot.slane %v3704, %v5055
      %v5057 = vsel %vm4972, %v5056, %v5052
      %v5058 = vlaneseq
      %v5059 = vshrl.u32 %v5058, 7
      %v5060 = vsub.s32 %v4974, %v5059
      %v5061 = vrot.slane %v3705, %v5060
      %v5062 = vsel %vm4979, %v5061, %v5057
      %v5063 = vlaneseq
      %v5064 = vshrl.u32 %v5063, 7
      %v5065 = vsub.s32 %v4981, %v5064
      %v5066 = vrot.slane %v3706, %v5065
      %v5067 = vsel %vm4986, %v5066, %v5062
      %v5068 = vlaneseq
      %v5069 = vshrl.u32 %v5068, 7
      %v5070 = vsub.s32 %v4988, %v5069
      %v5071 = vrot.slane %v3707, %v5070
      %v5072 = vsel %vm4993, %v5071, %v5067
      %v5073 = vlaneseq
      %v5074 = vshrl.u32 %v5073, 7
      %v5075 = vsub.s32 %v4941, %v5074
      %v5076 = vrot.slane %v3708, %v5075
      %v5077 = vlaneseq
      %v5078 = vshrl.u32 %v5077, 7
      %v5079 = vsub.s32 %v4946, %v5078
      %v5080 = vrot.slane %v3709, %v5079
      %v5081 = vsel %vm4951, %v5080, %v5076
      %v5082 = vlaneseq
      %v5083 = vshrl.u32 %v5082, 7
      %v5084 = vsub.s32 %v4953, %v5083
      %v5085 = vrot.slane %v3710, %v5084
      %v5086 = vsel %vm4958, %v5085, %v5081
      %v5087 = vlaneseq
      %v5088 = vshrl.u32 %v5087, 7
      %v5089 = vsub.s32 %v4960, %v5088
      %v5090 = vrot.slane %v3711, %v5089
      %v5091 = vsel %vm4965, %v5090, %v5086
      %v5092 = vlaneseq
      %v5093 = vshrl.u32 %v5092, 7
      %v5094 = vsub.s32 %v4967, %v5093
      %v5095 = vrot.slane %v3712, %v5094
      %v5096 = vsel %vm4972, %v5095, %v5091
      %v5097 = vlaneseq
      %v5098 = vshrl.u32 %v5097, 7
      %v5099 = vsub.s32 %v4974, %v5098
      %v5100 = vrot.slane %v3713, %v5099
      %v5101 = vsel %vm4979, %v5100, %v5096
      %v5102 = vlaneseq
      %v5103 = vshrl.u32 %v5102, 7
      %v5104 = vsub.s32 %v4981, %v5103
      %v5105 = vrot.slane %v3714, %v5104
      %v5106 = vsel %vm4986, %v5105, %v5101
      %v5107 = vlaneseq
      %v5108 = vshrl.u32 %v5107, 7
      %v5109 = vsub.s32 %v4988, %v5108
      %v5110 = vrot.slane %v3715, %v5109
      %v5111 = vsel %vm4993, %v5110, %v5106
      %v5112 = vlaneseq
      %v5113 = vshrl.u32 %v5112, 7
      %v5114 = vsub.s32 %v4941, %v5113
      %v5115 = vrot.slane %v3716, %v5114
      %v5116 = vlaneseq
      %v5117 = vshrl.u32 %v5116, 7
      %v5118 = vsub.s32 %v4946, %v5117
      %v5119 = vrot.slane %v3717, %v5118
      %v5120 = vsel %vm4951, %v5119, %v5115
      %v5121 = vlaneseq
      %v5122 = vshrl.u32 %v5121, 7
      %v5123 = vsub.s32 %v4953, %v5122
      %v5124 = vrot.slane %v3718, %v5123
      %v5125 = vsel %vm4958, %v5124, %v5120
      %v5126 = vlaneseq
      %v5127 = vshrl.u32 %v5126, 7
      %v5128 = vsub.s32 %v4960, %v5127
      %v5129 = vrot.slane %v3719, %v5128
      %v5130 = vsel %vm4965, %v5129, %v5125
      %v5131 = vlaneseq
      %v5132 = vshrl.u32 %v5131, 7
      %v5133 = vsub.s32 %v4967, %v5132
      %v5134 = vrot.slane %v3720, %v5133
      %v5135 = vsel %vm4972, %v5134, %v5130
      %v5136 = vlaneseq
      %v5137 = vshrl.u32 %v5136, 7
      %v5138 = vsub.s32 %v4974, %v5137
      %v5139 = vrot.slane %v3721, %v5138
      %v5140 = vsel %vm4979, %v5139, %v5135
      %v5141 = vlaneseq
      %v5142 = vshrl.u32 %v5141, 7
      %v5143 = vsub.s32 %v4981, %v5142
      %v5144 = vrot.slane %v3722, %v5143
      %v5145 = vsel %vm4986, %v5144, %v5140
      %v5146 = vlaneseq
      %v5147 = vshrl.u32 %v5146, 7
      %v5148 = vsub.s32 %v4988, %v5147
      %v5149 = vrot.slane %v3723, %v5148
      %v5150 = vsel %vm4993, %v5149, %v5145
      %v5151 = vlaneseq
      %v5152 = vshrl.u32 %v5151, 7
      %v5153 = vsub.s32 %v4941, %v5152
      %v5154 = vrot.slane %v3724, %v5153
      %v5155 = vlaneseq
      %v5156 = vshrl.u32 %v5155, 7
      %v5157 = vsub.s32 %v4946, %v5156
      %v5158 = vrot.slane %v3725, %v5157
      %v5159 = vsel %vm4951, %v5158, %v5154
      %v5160 = vlaneseq
      %v5161 = vshrl.u32 %v5160, 7
      %v5162 = vsub.s32 %v4953, %v5161
      %v5163 = vrot.slane %v3726, %v5162
      %v5164 = vsel %vm4958, %v5163, %v5159
      %v5165 = vlaneseq
      %v5166 = vshrl.u32 %v5165, 7
      %v5167 = vsub.s32 %v4960, %v5166
      %v5168 = vrot.slane %v3727, %v5167
      %v5169 = vsel %vm4965, %v5168, %v5164
      %v5170 = vlaneseq
      %v5171 = vshrl.u32 %v5170, 7
      %v5172 = vsub.s32 %v4967, %v5171
      %v5173 = vrot.slane %v3728, %v5172
      %v5174 = vsel %vm4972, %v5173, %v5169
      %v5175 = vlaneseq
      %v5176 = vshrl.u32 %v5175, 7
      %v5177 = vsub.s32 %v4974, %v5176
      %v5178 = vrot.slane %v3729, %v5177
      %v5179 = vsel %vm4979, %v5178, %v5174
      %v5180 = vlaneseq
      %v5181 = vshrl.u32 %v5180, 7
      %v5182 = vsub.s32 %v4981, %v5181
      %v5183 = vrot.slane %v3730, %v5182
      %v5184 = vsel %vm4986, %v5183, %v5179
      %v5185 = vlaneseq
      %v5186 = vshrl.u32 %v5185, 7
      %v5187 = vsub.s32 %v4988, %v5186
      %v5188 = vrot.slane %v3731, %v5187
      %v5189 = vsel %vm4993, %v5188, %v5184
      %v5190 = vlaneseq
      %v5191 = vshrl.u32 %v5190, 7
      %v5192 = vsub.s32 %v4941, %v5191
      %v5193 = vrot.slane %v3732, %v5192
      %v5194 = vlaneseq
      %v5195 = vshrl.u32 %v5194, 7
      %v5196 = vsub.s32 %v4946, %v5195
      %v5197 = vrot.slane %v3733, %v5196
      %v5198 = vsel %vm4951, %v5197, %v5193
      %v5199 = vlaneseq
      %v5200 = vshrl.u32 %v5199, 7
      %v5201 = vsub.s32 %v4953, %v5200
      %v5202 = vrot.slane %v3734, %v5201
      %v5203 = vsel %vm4958, %v5202, %v5198
      %v5204 = vlaneseq
      %v5205 = vshrl.u32 %v5204, 7
      %v5206 = vsub.s32 %v4960, %v5205
      %v5207 = vrot.slane %v3735, %v5206
      %v5208 = vsel %vm4965, %v5207, %v5203
      %v5209 = vlaneseq
      %v5210 = vshrl.u32 %v5209, 7
      %v5211 = vsub.s32 %v4967, %v5210
      %v5212 = vrot.slane %v3736, %v5211
      %v5213 = vsel %vm4972, %v5212, %v5208
      %v5214 = vlaneseq
      %v5215 = vshrl.u32 %v5214, 7
      %v5216 = vsub.s32 %v4974, %v5215
      %v5217 = vrot.slane %v3737, %v5216
      %v5218 = vsel %vm4979, %v5217, %v5213
      %v5219 = vlaneseq
      %v5220 = vshrl.u32 %v5219, 7
      %v5221 = vsub.s32 %v4981, %v5220
      %v5222 = vrot.slane %v3738, %v5221
      %v5223 = vsel %vm4986, %v5222, %v5218
      %v5224 = vlaneseq
      %v5225 = vshrl.u32 %v5224, 7
      %v5226 = vsub.s32 %v4988, %v5225
      %v5227 = vrot.slane %v3739, %v5226
      %v5228 = vsel %vm4993, %v5227, %v5223
      %v5229 = vlaneseq
      %v5230 = vshrl.u32 %v5229, 7
      %v5231 = vsub.s32 %v4941, %v5230
      %v5232 = vrot.slane %v3740, %v5231
      %v5233 = vlaneseq
      %v5234 = vshrl.u32 %v5233, 7
      %v5235 = vsub.s32 %v4946, %v5234
      %v5236 = vrot.slane %v3741, %v5235
      %v5237 = vsel %vm4951, %v5236, %v5232
      %v5238 = vlaneseq
      %v5239 = vshrl.u32 %v5238, 7
      %v5240 = vsub.s32 %v4953, %v5239
      %v5241 = vrot.slane %v3742, %v5240
      %v5242 = vsel %vm4958, %v5241, %v5237
      %v5243 = vlaneseq
      %v5244 = vshrl.u32 %v5243, 7
      %v5245 = vsub.s32 %v4960, %v5244
      %v5246 = vrot.slane %v3743, %v5245
      %v5247 = vsel %vm4965, %v5246, %v5242
      %v5248 = vlaneseq
      %v5249 = vshrl.u32 %v5248, 7
      %v5250 = vsub.s32 %v4967, %v5249
      %v5251 = vrot.slane %v3744, %v5250
      %v5252 = vsel %vm4972, %v5251, %v5247
      %v5253 = vlaneseq
      %v5254 = vshrl.u32 %v5253, 7
      %v5255 = vsub.s32 %v4974, %v5254
      %v5256 = vrot.slane %v3745, %v5255
      %v5257 = vsel %vm4979, %v5256, %v5252
      %v5258 = vlaneseq
      %v5259 = vshrl.u32 %v5258, 7
      %v5260 = vsub.s32 %v4981, %v5259
      %v5261 = vrot.slane %v3746, %v5260
      %v5262 = vsel %vm4986, %v5261, %v5257
      %v5263 = vlaneseq
      %v5264 = vshrl.u32 %v5263, 7
      %v5265 = vsub.s32 %v4988, %v5264
      %v5266 = vrot.slane %v3747, %v5265
      %v5267 = vsel %vm4993, %v5266, %v5262
      %vm5268 = vcmask 1041409
      %v5269 = vsel %vm5268, %v5033, %v4994
      %vm5270 = vcmask 1042434
      %v5271 = vsel %vm5270, %v5072, %v5269
      %vm5272 = vcmask 1043459
      %v5273 = vsel %vm5272, %v5111, %v5271
      %vm5274 = vcmask 1044484
      %v5275 = vsel %vm5274, %v5150, %v5273
      %vm5276 = vcmask 1045509
      %v5277 = vsel %vm5276, %v5189, %v5275
      %vm5278 = vcmask 1046534
      %v5279 = vsel %vm5278, %v5228, %v5277
      %vm5280 = vcmask 1047559
      %v5281 = vsel %vm5280, %v5267, %v5279
      %vm5283 = vcmask 523264
      %5284 = vst.msk [vmem:[%s448] sm:$0xff] %vm5283, %v5281
      %s5285 = smul.u32 8, %s23
      %p5286 = scmp.lt.s32.totalorder %s22, 1
      %s5287 = scalar_select %p5286, %s22, 1
      %p5288 = scmp.lt.s32.totalorder %s5285, 7
      %s5289 = scalar_select %p5288, %s5285, 7
      %s5290 = smul.addr %s5289, 8
      %s5291 = smul.addr %s5287, 64
      %s5292 = sadd.s32 %s5290, %s5291
      %s5293 = smul.addr %s5292, 8
      %s5294 = scalar_lea.vmem %s5, %s5293
      %p5295 = scmp.lt.s32.totalorder %s22, 1
      %s5296 = scalar_select %p5295, %s22, 1
      %p5297 = scmp.lt.s32.totalorder %s23, 0
      %s5298 = scalar_select %p5297, %s23, 0
      %s5299 = sadd.s32 %s5298, %s5296
      %s5300 = smul.addr %s5299, 8
      %s5301 = scalar_lea.vmem %s6, %s5300
      // Predicated region
      $region41: #{lsh_attention_forward.1} parent=39 // pred_check
        %p5302 = pneg %p190
      $region42: #{lsh_attention_forward.1} parent=39 // pred_check_branch
        %5304 = sbr.rel (%p5302) target = $region44
      $region43: #{lsh_attention_forward.1} parent=39 // pred_region
        %s5305 = smul.u32 8, %s23
      $region44: #{lsh_attention_forward.1} parent=39 // pred_fallthru
        _
      // Predicated region
      $region45: #{lsh_attention_forward.1} parent=39 // pred_check
        %p5306 = pneg %p218
      $region46: #{lsh_attention_forward.1} parent=39 // pred_check_branch
        %5308 = sbr.rel (%p5306) target = $region48
      $region47: #{lsh_attention_forward.1} parent=39 // pred_region
        _
      $region48: #{lsh_attention_forward.1} parent=39 // pred_fallthru
        _
    $region40: #{lsh_attention_forward.1} parent=5 // pred_fallthru
      _
    %p5309 = scmp.le.s32.totalorder 2, %s13
    // Predicated region
    $region49: #{lsh_attention_forward.1} parent=5 // pred_check
      %p5310 = pneg %p5309
    $region50: #{lsh_attention_forward.1} parent=5 // pred_check_branch
      %5312 = sbr.rel (%p5310) target = $region52
    $region51: #{lsh_attention_forward.1} parent=5 // pred_region
      %s5313 = ssub.s32 %s13, 2
      // Predicated region
      $region53: #{lsh_attention_forward.1} parent=51 // pred_check
        %p5314 = pneg %p196
      $region54: #{lsh_attention_forward.1} parent=51 // pred_check_branch
        %5316 = sbr.rel (%p5314) target = $region56
      $region55: #{lsh_attention_forward.1} parent=51 // pred_region
        %s5317 = smul.u32 8, %s25
        %p5318 = scmp.lt.s32.totalorder %s24, 1
        %s5319 = scalar_select %p5318, %s24, 1
        %p5320 = scmp.lt.s32.totalorder %s5317, 7
        %s5321 = scalar_select %p5320, %s5317, 7
        %s5322 = smul.addr %s5321, 8
        %s5323 = smul.addr %s5319, 64
        %s5324 = sadd.s32 %s5322, %s5323
        %s5325 = smul.addr %s5324, 8
        %s5326 = scalar_lea.vmem %s5, %s5325
      $region56: #{lsh_attention_forward.1} parent=51 // pred_fallthru
        _
      // Predicated region
      $region57: #{lsh_attention_forward.1} parent=51 // pred_check
        %p5327 = pneg %p224
      $region58: #{lsh_attention_forward.1} parent=51 // pred_check_branch
        %5329 = sbr.rel (%p5327) target = $region60
      $region59: #{lsh_attention_forward.1} parent=51 // pred_region
        %p5330 = scmp.lt.s32.totalorder %s24, 1
        %s5331 = scalar_select %p5330, %s24, 1
        %p5332 = scmp.lt.s32.totalorder %s25, 0
        %s5333 = scalar_select %p5332, %s25, 0
        %s5334 = sadd.s32 %s5333, %s5331
        %s5335 = smul.addr %s5334, 8
        %s5336 = scalar_lea.vmem %s6, %s5335
      $region60: #{lsh_attention_forward.1} parent=51 // pred_fallthru
        _
    $region52: #{lsh_attention_forward.1} parent=5 // pred_fallthru
      _
  $region6: #{lsh_attention_forward.1} parent=0 // loop_footer
    %s17 = sadd.s32 1, %s13
  $region7: #{lsh_attention_forward.1} parent=0 // loop_footer_branch
    %12 = sbr.rel target = $region3
  $region8: #{lsh_attention_forward.1} parent=0 // loop_exit
    _

</llo_original>
